<compile_context>
chip_gen: v5e
topology: v5e:2x2
jax: 0.10.0
libtpu: 0.0.40
codegen_flags: <defaults>
</compile_context>

<pallas_src>
import math

import jax
import jax.numpy as jnp
from jax.experimental import pallas as pl
from jax.experimental.pallas import tpu as pltpu

# ----------------------------- tiny BERT config -----------------------------
VOCAB = 100
HIDDEN = 32
N_HEADS = 2
HEAD_DIM = HIDDEN // N_HEADS
N_LAYERS = 2
INTERMEDIATE = 64
MAX_POS = 16
NUM_LABELS = 1
LN_EPS = 1e-12

BATCH = 2
SEQ = 8


# ------------------------------ in-kernel helpers -----------------------------
def _gelu(x):
    # tanh approximation of GELU (EUP-friendly).
    return 0.5 * x * (1.0 + jnp.tanh(0.7978845608028654 * (x + 0.044715 * x * x * x)))


def _layer_norm(x, g, b):
    mu = jnp.mean(x, axis=-1, keepdims=True)
    xc = x - mu
    var = jnp.mean(xc * xc, axis=-1, keepdims=True)
    return xc * jax.lax.rsqrt(var + LN_EPS) * g + b


# ------------------------------ fused Pallas kernel ---------------------------
def fused_qe_kernel(x_ref, mask_ref,
                    emb_g_ref, emb_b_ref,
                    wqkv_ref, bqkv_ref, wo_ref, bo_ref,
                    ln1g_ref, ln1b_ref,
                    w1_ref, b1_ref, w2_ref, b2_ref,
                    ln2g_ref, ln2b_ref,
                    wp_ref, bp_ref, wc_ref, bc_ref,
                    o_ref):
    BB = 2 * BATCH          # low + high stacked along batch
    M = BB * SEQ            # token rows
    H = HIDDEN
    scale = 1.0 / math.sqrt(HEAD_DIM)

    # Embedding layer-norm.
    x = _layer_norm(x_ref[...], emb_g_ref[...], emb_b_ref[...])        # (M, H) f32

    # Additive attention-mask bias, broadcast over query rows inside the kernel.
    mask_b = mask_ref[...].reshape(BB, 1, SEQ)                          # (BB, 1, S)

    # Transformer layers — statically unrolled (N_LAYERS = 2).
    for l in range(N_LAYERS):
        # Fused QKV projection: one (M, H) x (H, 3H) matmul.
        qkv = jnp.dot(x, wqkv_ref[l], preferred_element_type=jnp.float32) + bqkv_ref[l]

        wo_l = wo_ref[l]                                                # (H, H)
        attn_out = jnp.zeros((M, H), jnp.float32)
        # Per-head attention; heads statically unrolled, merge folded into Wo.
        for h in range(N_HEADS):
            lo = h * HEAD_DIM
            hi = lo + HEAD_DIM
            qh = qkv[:, lo:hi].reshape(BB, SEQ, HEAD_DIM)
            kh = qkv[:, H + lo:H + hi].reshape(BB, SEQ, HEAD_DIM)
            vh = qkv[:, 2 * H + lo:2 * H + hi].reshape(BB, SEQ, HEAD_DIM)

            s = jnp.einsum('bqd,bkd->bqk', qh, kh,
                           preferred_element_type=jnp.float32) * scale  # (BB, S, S)
            s = s + mask_b
            m = jnp.max(s, axis=-1, keepdims=True)
            p = jnp.exp(s - m)
            p = p * pl.reciprocal(jnp.sum(p, axis=-1, keepdims=True), approx=True)
            ctx_h = jnp.einsum('bqk,bkd->bqd', p, vh,
                               preferred_element_type=jnp.float32)      # (BB, S, dh)
            # Merge heads implicitly: ctx @ Wo == sum_h ctx_h @ Wo[h*dh:(h+1)*dh, :]
            attn_out = attn_out + jnp.dot(ctx_h.reshape(M, HEAD_DIM),
                                          wo_l[lo:hi, :],
                                          preferred_element_type=jnp.float32)
        attn_out = attn_out + bo_ref[l]
        x = _layer_norm(x + attn_out, ln1g_ref[l], ln1b_ref[l])

        # FFN for both (low/high) passes at once: (M, H) x (H, I) then (M, I) x (I, H).
        hmid = _gelu(jnp.dot(x, w1_ref[l], preferred_element_type=jnp.float32)
                     + b1_ref[l])
        ff = jnp.dot(hmid, w2_ref[l], preferred_element_type=jnp.float32) + b2_ref[l]
        x = _layer_norm(x + ff, ln2g_ref[l], ln2b_ref[l])

    # CLS-token gather (rows 0, S, 2S, ...) via a tiny selection matmul — avoids
    # strided sublane gathers.
    col = jax.lax.broadcasted_iota(jnp.int32, (BB, M), 1)
    row = jax.lax.broadcasted_iota(jnp.int32, (BB, M), 0)
    sel = (col == row * SEQ).astype(jnp.float32)                        # (BB, M)
    cls = jnp.dot(sel, x, preferred_element_type=jnp.float32)           # (BB, H)

    # Pooler + classifier (NUM_LABELS=1 classifier as a lane-reduction).
    pooled = jnp.tanh(jnp.dot(cls, wp_ref[...], preferred_element_type=jnp.float32)
                      + bp_ref[...])                                    # (BB, H)
    logits = jnp.sum(pooled * wc_ref[...], axis=-1, keepdims=True) + bc_ref[...]  # (BB, 1)

    # loss = mean(sigmoid(low_logits - high_logits))
    d = logits[0:BATCH, :] - logits[BATCH:2 * BATCH, :]                 # (B, 1)
    sgm = 1.0 / (1.0 + jnp.exp(-d))
    o_ref[...] = jnp.sum(sgm, keepdims=True) / float(BATCH * NUM_LABELS)


def _full_spec(a):
    nd = a.ndim
    return pl.BlockSpec(a.shape, lambda i, _nd=nd: (0,) * _nd)


def quality_estimator_fused(params, x_emb, mask_bias):
    inputs = [
        x_emb, mask_bias,
        params["emb_ln_g"].reshape(1, HIDDEN), params["emb_ln_b"].reshape(1, HIDDEN),
        params["wqkv"], params["bqkv"],
        params["wo"], params["bo"],
        params["ln1_g"], params["ln1_b"],
        params["w1"], params["b1"],
        params["w2"], params["b2"],
        params["ln2_g"], params["ln2_b"],
        params["wp"], params["bp"].reshape(1, HIDDEN),
        params["wc"].reshape(1, HIDDEN), params["bc"].reshape(1, 1),
    ]
    out = pl.pallas_call(
        fused_qe_kernel,
        grid=(1,),
        out_shape=jax.ShapeDtypeStruct((1, 1), jnp.float32),
        in_specs=[_full_spec(a) for a in inputs],
        out_specs=pl.BlockSpec((1, 1), lambda i: (0, 0)),
        compiler_params=pltpu.CompilerParams(dimension_semantics=("arbitrary",)),
    )(*inputs)
    return out[0, 0]


# ------------------------------ params / JAX glue ------------------------------
def init_params(key):
    def nrm(k, shape, scale=0.02):
        return (scale * jax.random.normal(k, shape)).astype(jnp.float32)

    keys = jax.random.split(key, 8 + N_LAYERS)
    params = {
        "word_emb": nrm(keys[0], (VOCAB, HIDDEN)),
        "pos_emb": nrm(keys[1], (MAX_POS, HIDDEN)),
        "type_emb": nrm(keys[2], (2, HIDDEN)),
        "emb_ln_g": jnp.ones((HIDDEN,), jnp.float32),
        "emb_ln_b": jnp.zeros((HIDDEN,), jnp.float32),
        "wp": nrm(keys[3], (HIDDEN, HIDDEN)),
        "bp": jnp.zeros((HIDDEN,), jnp.float32),
        "wc": nrm(keys[4], (HIDDEN, NUM_LABELS)),
        "bc": jnp.zeros((NUM_LABELS,), jnp.float32),
    }
    wqkv, bqkv, wo, bo = [], [], [], []
    ln1_g, ln1_b, w1, b1, w2, b2, ln2_g, ln2_b = [], [], [], [], [], [], [], []
    for l in range(N_LAYERS):
        lk = jax.random.split(keys[8 + l], 6)
        wq = nrm(lk[0], (HIDDEN, HIDDEN))
        wk = nrm(lk[1], (HIDDEN, HIDDEN))
        wv = nrm(lk[2], (HIDDEN, HIDDEN))
        wqkv.append(jnp.concatenate([wq, wk, wv], axis=1))              # (H, 3H) fused QKV
        bqkv.append(jnp.zeros((1, 3 * HIDDEN), jnp.float32))
        wo.append(nrm(lk[3], (HIDDEN, HIDDEN)))
        bo.append(jnp.zeros((1, HIDDEN), jnp.float32))
        ln1_g.append(jnp.ones((1, HIDDEN), jnp.float32))
        ln1_b.append(jnp.zeros((1, HIDDEN), jnp.float32))
        w1.append(nrm(lk[4], (HIDDEN, INTERMEDIATE)))
        b1.append(jnp.zeros((1, INTERMEDIATE), jnp.float32))
        w2.append(nrm(lk[5], (INTERMEDIATE, HIDDEN)))
        b2.append(jnp.zeros((1, HIDDEN), jnp.float32))
        ln2_g.append(jnp.ones((1, HIDDEN), jnp.float32))
        ln2_b.append(jnp.zeros((1, HIDDEN), jnp.float32))
    params.update({
        "wqkv": jnp.stack(wqkv), "bqkv": jnp.stack(bqkv),
        "wo": jnp.stack(wo), "bo": jnp.stack(bo),
        "ln1_g": jnp.stack(ln1_g), "ln1_b": jnp.stack(ln1_b),
        "w1": jnp.stack(w1), "b1": jnp.stack(b1),
        "w2": jnp.stack(w2), "b2": jnp.stack(b2),
        "ln2_g": jnp.stack(ln2_g), "ln2_b": jnp.stack(ln2_b),
    })
    return params


@jax.jit
def quality_estimator_for_train(params, low_input_ids, low_attention_mask,
                                high_input_ids, high_attention_mask):
    # Stack low/high along batch so a single fused kernel handles both passes.
    input_ids = jnp.concatenate([low_input_ids, high_input_ids], axis=0)       # (2B, S)
    attention_mask = jnp.concatenate([low_attention_mask, high_attention_mask], axis=0)
    BB, S = input_ids.shape

    # Embedding gather (JAX glue; data-dependent gather).
    x = (jnp.take(params["word_emb"], input_ids, axis=0)
         + params["pos_emb"][:S][None, :, :]
         + params["type_emb"][0][None, None, :])
    x = x.reshape(BB * S, HIDDEN).astype(jnp.float32)

    mask_bias = (1.0 - attention_mask.astype(jnp.float32)) * -10000.0          # (2B, S)
    return quality_estimator_fused(params, x, mask_bias)


# ------------------------------------ main ------------------------------------
if __name__ == "__main__":
    key = jax.random.PRNGKey(0)
    k_low, k_high = jax.random.split(key, 2)

    low_input_ids = jax.random.randint(k_low, (BATCH, SEQ), 0, VOCAB, dtype=jnp.int32)
    high_input_ids = jax.random.randint(k_high, (BATCH, SEQ), 0, VOCAB, dtype=jnp.int32)
    low_attention_mask = jnp.ones((BATCH, SEQ), jnp.int32).at[:, SEQ - 1].set(0)
    high_attention_mask = jnp.ones((BATCH, SEQ), jnp.int32)

    params = init_params(jax.random.PRNGKey(42))

    loss = quality_estimator_for_train(params, low_input_ids, low_attention_mask,
                                       high_input_ids, high_attention_mask)
    jax.block_until_ready(loss)
    assert loss.shape == () and jnp.isfinite(loss)
    print("KERNEL_OK")
</pallas_src>

<mosaic_0001>
module attributes {stable_mosaic.version = 11 : i64} {
  func.func @fused_qe_kernel(%arg0: i32, %arg1: memref<32x32xf32, #tpu.memory_space<vmem>>, %arg2: memref<4x8xf32, #tpu.memory_space<vmem>>, %arg3: memref<1x32xf32, #tpu.memory_space<vmem>>, %arg4: memref<1x32xf32, #tpu.memory_space<vmem>>, %arg5: memref<2x32x96xf32, #tpu.memory_space<vmem>>, %arg6: memref<2x1x96xf32, #tpu.memory_space<vmem>>, %arg7: memref<2x32x32xf32, #tpu.memory_space<vmem>>, %arg8: memref<2x1x32xf32, #tpu.memory_space<vmem>>, %arg9: memref<2x1x32xf32, #tpu.memory_space<vmem>>, %arg10: memref<2x1x32xf32, #tpu.memory_space<vmem>>, %arg11: memref<2x32x64xf32, #tpu.memory_space<vmem>>, %arg12: memref<2x1x64xf32, #tpu.memory_space<vmem>>, %arg13: memref<2x64x32xf32, #tpu.memory_space<vmem>>, %arg14: memref<2x1x32xf32, #tpu.memory_space<vmem>>, %arg15: memref<2x1x32xf32, #tpu.memory_space<vmem>>, %arg16: memref<2x1x32xf32, #tpu.memory_space<vmem>>, %arg17: memref<32x32xf32, #tpu.memory_space<vmem>>, %arg18: memref<1x32xf32, #tpu.memory_space<vmem>>, %arg19: memref<1x32xf32, #tpu.memory_space<vmem>>, %arg20: memref<1x1xf32, #tpu.memory_space<vmem>>, %arg21: memref<1x1xf32, #tpu.memory_space<vmem>>) attributes {dimension_semantics = [#tpu.dimension_semantics<arbitrary>], iteration_bounds = array<i64: 1>, scalar_prefetch = 0 : i64, scratch_operands = 0 : i64, tpu.core_type = #tpu.core_type<tc>, window_params = [{pipeline_mode = #tpu.pipeline_mode<synchronous>, transform_indices = @transform_0, window_bounds = array<i64: 32, 32>}, {pipeline_mode = #tpu.pipeline_mode<synchronous>, transform_indices = @transform_1, window_bounds = array<i64: 4, 8>}, {pipeline_mode = #tpu.pipeline_mode<synchronous>, transform_indices = @transform_2, window_bounds = array<i64: 1, 32>}, {pipeline_mode = #tpu.pipeline_mode<synchronous>, transform_indices = @transform_3, window_bounds = array<i64: 1, 32>}, {pipeline_mode = #tpu.pipeline_mode<synchronous>, transform_indices = @transform_4, window_bounds = array<i64: 2, 32, 96>}, {pipeline_mode = #tpu.pipeline_mode<synchronous>, transform_indices = @transform_5, window_bounds = array<i64: 2, 1, 96>}, {pipeline_mode = #tpu.pipeline_mode<synchronous>, transform_indices = @transform_6, window_bounds = array<i64: 2, 32, 32>}, {pipeline_mode = #tpu.pipeline_mode<synchronous>, transform_indices = @transform_7, window_bounds = array<i64: 2, 1, 32>}, {pipeline_mode = #tpu.pipeline_mode<synchronous>, transform_indices = @transform_8, window_bounds = array<i64: 2, 1, 32>}, {pipeline_mode = #tpu.pipeline_mode<synchronous>, transform_indices = @transform_9, window_bounds = array<i64: 2, 1, 32>}, {pipeline_mode = #tpu.pipeline_mode<synchronous>, transform_indices = @transform_10, window_bounds = array<i64: 2, 32, 64>}, {pipeline_mode = #tpu.pipeline_mode<synchronous>, transform_indices = @transform_11, window_bounds = array<i64: 2, 1, 64>}, {pipeline_mode = #tpu.pipeline_mode<synchronous>, transform_indices = @transform_12, window_bounds = array<i64: 2, 64, 32>}, {pipeline_mode = #tpu.pipeline_mode<synchronous>, transform_indices = @transform_13, window_bounds = array<i64: 2, 1, 32>}, {pipeline_mode = #tpu.pipeline_mode<synchronous>, transform_indices = @transform_14, window_bounds = array<i64: 2, 1, 32>}, {pipeline_mode = #tpu.pipeline_mode<synchronous>, transform_indices = @transform_15, window_bounds = array<i64: 2, 1, 32>}, {pipeline_mode = #tpu.pipeline_mode<synchronous>, transform_indices = @transform_16, window_bounds = array<i64: 32, 32>}, {pipeline_mode = #tpu.pipeline_mode<synchronous>, transform_indices = @transform_17, window_bounds = array<i64: 1, 32>}, {pipeline_mode = #tpu.pipeline_mode<synchronous>, transform_indices = @transform_18, window_bounds = array<i64: 1, 32>}, {pipeline_mode = #tpu.pipeline_mode<synchronous>, transform_indices = @transform_19, window_bounds = array<i64: 1, 1>}, {pipeline_mode = #tpu.pipeline_mode<synchronous>, transform_indices = @transform_20, window_bounds = array<i64: 1, 1>}]} {
    %c0 = arith.constant 0 : index
    %c0_0 = arith.constant 0 : index
    %0 = vector.load %arg1[%c0, %c0_0] : memref<32x32xf32, #tpu.memory_space<vmem>>, vector<32x32xf32>
    %c0_1 = arith.constant 0 : index
    %c0_2 = arith.constant 0 : index
    %1 = vector.load %arg3[%c0_1, %c0_2] : memref<1x32xf32, #tpu.memory_space<vmem>>, vector<1x32xf32>
    %c0_3 = arith.constant 0 : index
    %c0_4 = arith.constant 0 : index
    %2 = vector.load %arg4[%c0_3, %c0_4] : memref<1x32xf32, #tpu.memory_space<vmem>>, vector<1x32xf32>
    %cst = arith.constant dense<0.000000e+00> : vector<32xf32>
    %3 = vector.multi_reduction <add>, %0, %cst [1] : vector<32x32xf32> to vector<32xf32>
    %4 = vector.shape_cast %3 : vector<32xf32> to vector<32x1xf32>
    %cst_5 = arith.constant 3.200000e+01 : f32
    %5 = vector.broadcast %cst_5 : f32 to vector<32x1xf32>
    %6 = arith.divf %4, %5 : vector<32x1xf32>
    %7 = vector.broadcast %6 : vector<32x1xf32> to vector<32x32xf32>
    %8 = arith.subf %0, %7 : vector<32x32xf32>
    %9 = arith.mulf %8, %8 : vector<32x32xf32>
    %cst_6 = arith.constant dense<0.000000e+00> : vector<32xf32>
    %10 = vector.multi_reduction <add>, %9, %cst_6 [1] : vector<32x32xf32> to vector<32xf32>
    %11 = vector.shape_cast %10 : vector<32xf32> to vector<32x1xf32>
    %cst_7 = arith.constant 3.200000e+01 : f32
    %12 = vector.broadcast %cst_7 : f32 to vector<32x1xf32>
    %13 = arith.divf %11, %12 : vector<32x1xf32>
    %cst_8 = arith.constant 9.99999996E-13 : f32
    %14 = vector.broadcast %cst_8 : f32 to vector<32x1xf32>
    %15 = arith.addf %13, %14 : vector<32x1xf32>
    %16 = math.rsqrt %15 : vector<32x1xf32>
    %17 = vector.broadcast %16 : vector<32x1xf32> to vector<32x32xf32>
    %18 = arith.mulf %8, %17 : vector<32x32xf32>
    %19 = vector.broadcast %1 : vector<1x32xf32> to vector<32x32xf32>
    %20 = arith.mulf %18, %19 : vector<32x32xf32>
    %21 = vector.broadcast %2 : vector<1x32xf32> to vector<32x32xf32>
    %22 = arith.addf %20, %21 : vector<32x32xf32>
    %c0_9 = arith.constant 0 : index
    %c0_10 = arith.constant 0 : index
    %23 = vector.load %arg2[%c0_9, %c0_10] : memref<4x8xf32, #tpu.memory_space<vmem>>, vector<4x8xf32>
    %24 = vector.shape_cast %23 : vector<4x8xf32> to vector<4x1x8xf32>
    %c0_11 = arith.constant 0 : index
    %c0_12 = arith.constant 0 : index
    %c0_13 = arith.constant 0 : index
    %25 = vector.load %arg5[%c0_11, %c0_12, %c0_13] : memref<2x32x96xf32, #tpu.memory_space<vmem>>, vector<1x32x96xf32>
    %26 = vector.shape_cast %25 : vector<1x32x96xf32> to vector<32x96xf32>
    %cst_14 = arith.constant dense<0.000000e+00> : vector<32x96xf32>
    %27 = tpu.matmul %22, %26, %cst_14 {dimension_numbers = #tpu.dot_dimension_numbers<[1], [0], [0], [1], [0, 0, 1, 1], [], []>} : vector<32x32xf32>, vector<32x96xf32>, vector<32x96xf32> -> vector<32x96xf32>
    %c0_15 = arith.constant 0 : index
    %c0_16 = arith.constant 0 : index
    %c0_17 = arith.constant 0 : index
    %28 = vector.load %arg6[%c0_15, %c0_16, %c0_17] : memref<2x1x96xf32, #tpu.memory_space<vmem>>, vector<1x1x96xf32>
    %29 = vector.shape_cast %28 : vector<1x1x96xf32> to vector<1x96xf32>
    %30 = vector.broadcast %29 : vector<1x96xf32> to vector<32x96xf32>
    %31 = arith.addf %27, %30 : vector<32x96xf32>
    %c0_18 = arith.constant 0 : index
    %c0_19 = arith.constant 0 : index
    %c0_20 = arith.constant 0 : index
    %32 = vector.load %arg7[%c0_18, %c0_19, %c0_20] : memref<2x32x32xf32, #tpu.memory_space<vmem>>, vector<1x32x32xf32>
    %33 = vector.shape_cast %32 : vector<1x32x32xf32> to vector<32x32xf32>
    %cst_21 = arith.constant 0.000000e+00 : f32
    %34 = vector.broadcast %cst_21 : f32 to vector<32x32xf32>
    %35 = vector.extract_strided_slice %31 {offsets = [0, 0], sizes = [32, 16], strides = [1, 1]} : vector<32x96xf32> to vector<32x16xf32>
    %36 = vector.shape_cast %35 : vector<32x16xf32> to vector<4x8x16xf32>
    %37 = vector.extract_strided_slice %31 {offsets = [0, 32], sizes = [32, 16], strides = [1, 1]} : vector<32x96xf32> to vector<32x16xf32>
    %38 = vector.shape_cast %37 : vector<32x16xf32> to vector<4x8x16xf32>
    %39 = vector.extract_strided_slice %31 {offsets = [0, 64], sizes = [32, 16], strides = [1, 1]} : vector<32x96xf32> to vector<32x16xf32>
    %40 = vector.shape_cast %39 : vector<32x16xf32> to vector<4x8x16xf32>
    "tpu.trace_start"() <{level = 10 : i32, message = "bqd,bkd->bqk"}> : () -> ()
    %cst_22 = arith.constant dense<0.000000e+00> : vector<4x8x8xf32>
    %41 = tpu.matmul %36, %38, %cst_22 {dimension_numbers = #tpu.dot_dimension_numbers<[2], [2], [1], [1], [0, 0, 0, 1, 1, 1], [0], [0]>} : vector<4x8x16xf32>, vector<4x8x16xf32>, vector<4x8x8xf32> -> vector<4x8x8xf32>
    "tpu.trace_stop"() : () -> ()
    %cst_23 = arith.constant 2.500000e-01 : f32
    %42 = vector.broadcast %cst_23 : f32 to vector<4x8x8xf32>
    %43 = arith.mulf %41, %42 : vector<4x8x8xf32>
    %44 = vector.broadcast %24 : vector<4x1x8xf32> to vector<4x8x8xf32>
    %45 = arith.addf %43, %44 : vector<4x8x8xf32>
    %cst_24 = arith.constant dense<0xFF800000> : vector<4x8xf32>
    %46 = vector.multi_reduction <maximumf>, %45, %cst_24 [2] : vector<4x8x8xf32> to vector<4x8xf32>
    %47 = vector.shape_cast %46 : vector<4x8xf32> to vector<4x8x1xf32>
    %48 = vector.broadcast %47 : vector<4x8x1xf32> to vector<4x8x8xf32>
    %49 = arith.subf %45, %48 : vector<4x8x8xf32>
    %50 = math.exp %49 : vector<4x8x8xf32>
    %cst_25 = arith.constant dense<0.000000e+00> : vector<4x8xf32>
    %51 = vector.multi_reduction <add>, %50, %cst_25 [2] : vector<4x8x8xf32> to vector<4x8xf32>
    %52 = vector.shape_cast %51 : vector<4x8xf32> to vector<4x8x1xf32>
    %53 = tpu.reciprocal %52 {approx = true} : vector<4x8x1xf32> -> vector<4x8x1xf32>
    %54 = vector.broadcast %53 : vector<4x8x1xf32> to vector<4x8x8xf32>
    %55 = arith.mulf %50, %54 : vector<4x8x8xf32>
    "tpu.trace_start"() <{level = 10 : i32, message = "bqk,bkd->bqd"}> : () -> ()
    %cst_26 = arith.constant dense<0.000000e+00> : vector<4x8x16xf32>
    %56 = tpu.matmul %55, %40, %cst_26 {dimension_numbers = #tpu.dot_dimension_numbers<[2], [1], [1], [2], [0, 0, 0, 1, 1, 2], [0], [0]>} : vector<4x8x8xf32>, vector<4x8x16xf32>, vector<4x8x16xf32> -> vector<4x8x16xf32>
    "tpu.trace_stop"() : () -> ()
    %57 = vector.shape_cast %56 : vector<4x8x16xf32> to vector<32x16xf32>
    %58 = vector.extract_strided_slice %33 {offsets = [0, 0], sizes = [16, 32], strides = [1, 1]} : vector<32x32xf32> to vector<16x32xf32>
    %cst_27 = arith.constant dense<0.000000e+00> : vector<32x32xf32>
    %59 = tpu.matmul %57, %58, %cst_27 {dimension_numbers = #tpu.dot_dimension_numbers<[1], [0], [0], [1], [0, 0, 1, 1], [], []>} : vector<32x16xf32>, vector<16x32xf32>, vector<32x32xf32> -> vector<32x32xf32>
    %60 = arith.addf %34, %59 : vector<32x32xf32>
    %61 = vector.extract_strided_slice %31 {offsets = [0, 16], sizes = [32, 16], strides = [1, 1]} : vector<32x96xf32> to vector<32x16xf32>
    %62 = vector.shape_cast %61 : vector<32x16xf32> to vector<4x8x16xf32>
    %63 = vector.extract_strided_slice %31 {offsets = [0, 48], sizes = [32, 16], strides = [1, 1]} : vector<32x96xf32> to vector<32x16xf32>
    %64 = vector.shape_cast %63 : vector<32x16xf32> to vector<4x8x16xf32>
    %65 = vector.extract_strided_slice %31 {offsets = [0, 80], sizes = [32, 16], strides = [1, 1]} : vector<32x96xf32> to vector<32x16xf32>
    %66 = vector.shape_cast %65 : vector<32x16xf32> to vector<4x8x16xf32>
    "tpu.trace_start"() <{level = 10 : i32, message = "bqd,bkd->bqk"}> : () -> ()
    %cst_28 = arith.constant dense<0.000000e+00> : vector<4x8x8xf32>
    %67 = tpu.matmul %62, %64, %cst_28 {dimension_numbers = #tpu.dot_dimension_numbers<[2], [2], [1], [1], [0, 0, 0, 1, 1, 1], [0], [0]>} : vector<4x8x16xf32>, vector<4x8x16xf32>, vector<4x8x8xf32> -> vector<4x8x8xf32>
    "tpu.trace_stop"() : () -> ()
    %cst_29 = arith.constant 2.500000e-01 : f32
    %68 = vector.broadcast %cst_29 : f32 to vector<4x8x8xf32>
    %69 = arith.mulf %67, %68 : vector<4x8x8xf32>
    %70 = vector.broadcast %24 : vector<4x1x8xf32> to vector<4x8x8xf32>
    %71 = arith.addf %69, %70 : vector<4x8x8xf32>
    %cst_30 = arith.constant dense<0xFF800000> : vector<4x8xf32>
    %72 = vector.multi_reduction <maximumf>, %71, %cst_30 [2] : vector<4x8x8xf32> to vector<4x8xf32>
    %73 = vector.shape_cast %72 : vector<4x8xf32> to vector<4x8x1xf32>
    %74 = vector.broadcast %73 : vector<4x8x1xf32> to vector<4x8x8xf32>
    %75 = arith.subf %71, %74 : vector<4x8x8xf32>
    %76 = math.exp %75 : vector<4x8x8xf32>
    %cst_31 = arith.constant dense<0.000000e+00> : vector<4x8xf32>
    %77 = vector.multi_reduction <add>, %76, %cst_31 [2] : vector<4x8x8xf32> to vector<4x8xf32>
    %78 = vector.shape_cast %77 : vector<4x8xf32> to vector<4x8x1xf32>
    %79 = tpu.reciprocal %78 {approx = true} : vector<4x8x1xf32> -> vector<4x8x1xf32>
    %80 = vector.broadcast %79 : vector<4x8x1xf32> to vector<4x8x8xf32>
    %81 = arith.mulf %76, %80 : vector<4x8x8xf32>
    "tpu.trace_start"() <{level = 10 : i32, message = "bqk,bkd->bqd"}> : () -> ()
    %cst_32 = arith.constant dense<0.000000e+00> : vector<4x8x16xf32>
    %82 = tpu.matmul %81, %66, %cst_32 {dimension_numbers = #tpu.dot_dimension_numbers<[2], [1], [1], [2], [0, 0, 0, 1, 1, 2], [0], [0]>} : vector<4x8x8xf32>, vector<4x8x16xf32>, vector<4x8x16xf32> -> vector<4x8x16xf32>
    "tpu.trace_stop"() : () -> ()
    %83 = vector.shape_cast %82 : vector<4x8x16xf32> to vector<32x16xf32>
    %84 = vector.extract_strided_slice %33 {offsets = [16, 0], sizes = [16, 32], strides = [1, 1]} : vector<32x32xf32> to vector<16x32xf32>
    %cst_33 = arith.constant dense<0.000000e+00> : vector<32x32xf32>
    %85 = tpu.matmul %83, %84, %cst_33 {dimension_numbers = #tpu.dot_dimension_numbers<[1], [0], [0], [1], [0, 0, 1, 1], [], []>} : vector<32x16xf32>, vector<16x32xf32>, vector<32x32xf32> -> vector<32x32xf32>
    %86 = arith.addf %60, %85 : vector<32x32xf32>
    %c0_34 = arith.constant 0 : index
    %c0_35 = arith.constant 0 : index
    %c0_36 = arith.constant 0 : index
    %87 = vector.load %arg8[%c0_34, %c0_35, %c0_36] : memref<2x1x32xf32, #tpu.memory_space<vmem>>, vector<1x1x32xf32>
    %88 = vector.shape_cast %87 : vector<1x1x32xf32> to vector<1x32xf32>
    %89 = vector.broadcast %88 : vector<1x32xf32> to vector<32x32xf32>
    %90 = arith.addf %86, %89 : vector<32x32xf32>
    %91 = arith.addf %22, %90 : vector<32x32xf32>
    %c0_37 = arith.constant 0 : index
    %c0_38 = arith.constant 0 : index
    %c0_39 = arith.constant 0 : index
    %92 = vector.load %arg9[%c0_37, %c0_38, %c0_39] : memref<2x1x32xf32, #tpu.memory_space<vmem>>, vector<1x1x32xf32>
    %93 = vector.shape_cast %92 : vector<1x1x32xf32> to vector<1x32xf32>
    %c0_40 = arith.constant 0 : index
    %c0_41 = arith.constant 0 : index
    %c0_42 = arith.constant 0 : index
    %94 = vector.load %arg10[%c0_40, %c0_41, %c0_42] : memref<2x1x32xf32, #tpu.memory_space<vmem>>, vector<1x1x32xf32>
    %95 = vector.shape_cast %94 : vector<1x1x32xf32> to vector<1x32xf32>
    %cst_43 = arith.constant dense<0.000000e+00> : vector<32xf32>
    %96 = vector.multi_reduction <add>, %91, %cst_43 [1] : vector<32x32xf32> to vector<32xf32>
    %97 = vector.shape_cast %96 : vector<32xf32> to vector<32x1xf32>
    %cst_44 = arith.constant 3.200000e+01 : f32
    %98 = vector.broadcast %cst_44 : f32 to vector<32x1xf32>
    %99 = arith.divf %97, %98 : vector<32x1xf32>
    %100 = vector.broadcast %99 : vector<32x1xf32> to vector<32x32xf32>
    %101 = arith.subf %91, %100 : vector<32x32xf32>
    %102 = arith.mulf %101, %101 : vector<32x32xf32>
    %cst_45 = arith.constant dense<0.000000e+00> : vector<32xf32>
    %103 = vector.multi_reduction <add>, %102, %cst_45 [1] : vector<32x32xf32> to vector<32xf32>
    %104 = vector.shape_cast %103 : vector<32xf32> to vector<32x1xf32>
    %cst_46 = arith.constant 3.200000e+01 : f32
    %105 = vector.broadcast %cst_46 : f32 to vector<32x1xf32>
    %106 = arith.divf %104, %105 : vector<32x1xf32>
    %cst_47 = arith.constant 9.99999996E-13 : f32
    %107 = vector.broadcast %cst_47 : f32 to vector<32x1xf32>
    %108 = arith.addf %106, %107 : vector<32x1xf32>
    %109 = math.rsqrt %108 : vector<32x1xf32>
    %110 = vector.broadcast %109 : vector<32x1xf32> to vector<32x32xf32>
    %111 = arith.mulf %101, %110 : vector<32x32xf32>
    %112 = vector.broadcast %93 : vector<1x32xf32> to vector<32x32xf32>
    %113 = arith.mulf %111, %112 : vector<32x32xf32>
    %114 = vector.broadcast %95 : vector<1x32xf32> to vector<32x32xf32>
    %115 = arith.addf %113, %114 : vector<32x32xf32>
    %c0_48 = arith.constant 0 : index
    %c0_49 = arith.constant 0 : index
    %c0_50 = arith.constant 0 : index
    %116 = vector.load %arg11[%c0_48, %c0_49, %c0_50] : memref<2x32x64xf32, #tpu.memory_space<vmem>>, vector<1x32x64xf32>
    %117 = vector.shape_cast %116 : vector<1x32x64xf32> to vector<32x64xf32>
    %cst_51 = arith.constant dense<0.000000e+00> : vector<32x64xf32>
    %118 = tpu.matmul %115, %117, %cst_51 {dimension_numbers = #tpu.dot_dimension_numbers<[1], [0], [0], [1], [0, 0, 1, 1], [], []>} : vector<32x32xf32>, vector<32x64xf32>, vector<32x64xf32> -> vector<32x64xf32>
    %c0_52 = arith.constant 0 : index
    %c0_53 = arith.constant 0 : index
    %c0_54 = arith.constant 0 : index
    %119 = vector.load %arg12[%c0_52, %c0_53, %c0_54] : memref<2x1x64xf32, #tpu.memory_space<vmem>>, vector<1x1x64xf32>
    %120 = vector.shape_cast %119 : vector<1x1x64xf32> to vector<1x64xf32>
    %121 = vector.broadcast %120 : vector<1x64xf32> to vector<32x64xf32>
    %122 = arith.addf %118, %121 : vector<32x64xf32>
    %cst_55 = arith.constant 5.000000e-01 : f32
    %123 = vector.broadcast %cst_55 : f32 to vector<32x64xf32>
    %124 = arith.mulf %123, %122 : vector<32x64xf32>
    %cst_56 = arith.constant 4.471500e-02 : f32
    %125 = vector.broadcast %cst_56 : f32 to vector<32x64xf32>
    %126 = arith.mulf %125, %122 : vector<32x64xf32>
    %127 = arith.mulf %126, %122 : vector<32x64xf32>
    %128 = arith.mulf %127, %122 : vector<32x64xf32>
    %129 = arith.addf %122, %128 : vector<32x64xf32>
    %cst_57 = arith.constant 0.797884583 : f32
    %130 = vector.broadcast %cst_57 : f32 to vector<32x64xf32>
    %131 = arith.mulf %130, %129 : vector<32x64xf32>
    %132 = math.tanh %131 : vector<32x64xf32>
    %cst_58 = arith.constant 1.000000e+00 : f32
    %133 = vector.broadcast %cst_58 : f32 to vector<32x64xf32>
    %134 = arith.addf %133, %132 : vector<32x64xf32>
    %135 = arith.mulf %124, %134 : vector<32x64xf32>
    %c0_59 = arith.constant 0 : index
    %c0_60 = arith.constant 0 : index
    %c0_61 = arith.constant 0 : index
    %136 = vector.load %arg13[%c0_59, %c0_60, %c0_61] : memref<2x64x32xf32, #tpu.memory_space<vmem>>, vector<1x64x32xf32>
    %137 = vector.shape_cast %136 : vector<1x64x32xf32> to vector<64x32xf32>
    %cst_62 = arith.constant dense<0.000000e+00> : vector<32x32xf32>
    %138 = tpu.matmul %135, %137, %cst_62 {dimension_numbers = #tpu.dot_dimension_numbers<[1], [0], [0], [1], [0, 0, 1, 1], [], []>} : vector<32x64xf32>, vector<64x32xf32>, vector<32x32xf32> -> vector<32x32xf32>
    %c0_63 = arith.constant 0 : index
    %c0_64 = arith.constant 0 : index
    %c0_65 = arith.constant 0 : index
    %139 = vector.load %arg14[%c0_63, %c0_64, %c0_65] : memref<2x1x32xf32, #tpu.memory_space<vmem>>, vector<1x1x32xf32>
    %140 = vector.shape_cast %139 : vector<1x1x32xf32> to vector<1x32xf32>
    %141 = vector.broadcast %140 : vector<1x32xf32> to vector<32x32xf32>
    %142 = arith.addf %138, %141 : vector<32x32xf32>
    %143 = arith.addf %115, %142 : vector<32x32xf32>
    %c0_66 = arith.constant 0 : index
    %c0_67 = arith.constant 0 : index
    %c0_68 = arith.constant 0 : index
    %144 = vector.load %arg15[%c0_66, %c0_67, %c0_68] : memref<2x1x32xf32, #tpu.memory_space<vmem>>, vector<1x1x32xf32>
    %145 = vector.shape_cast %144 : vector<1x1x32xf32> to vector<1x32xf32>
    %c0_69 = arith.constant 0 : index
    %c0_70 = arith.constant 0 : index
    %c0_71 = arith.constant 0 : index
    %146 = vector.load %arg16[%c0_69, %c0_70, %c0_71] : memref<2x1x32xf32, #tpu.memory_space<vmem>>, vector<1x1x32xf32>
    %147 = vector.shape_cast %146 : vector<1x1x32xf32> to vector<1x32xf32>
    %cst_72 = arith.constant dense<0.000000e+00> : vector<32xf32>
    %148 = vector.multi_reduction <add>, %143, %cst_72 [1] : vector<32x32xf32> to vector<32xf32>
    %149 = vector.shape_cast %148 : vector<32xf32> to vector<32x1xf32>
    %cst_73 = arith.constant 3.200000e+01 : f32
    %150 = vector.broadcast %cst_73 : f32 to vector<32x1xf32>
    %151 = arith.divf %149, %150 : vector<32x1xf32>
    %152 = vector.broadcast %151 : vector<32x1xf32> to vector<32x32xf32>
    %153 = arith.subf %143, %152 : vector<32x32xf32>
    %154 = arith.mulf %153, %153 : vector<32x32xf32>
    %cst_74 = arith.constant dense<0.000000e+00> : vector<32xf32>
    %155 = vector.multi_reduction <add>, %154, %cst_74 [1] : vector<32x32xf32> to vector<32xf32>
    %156 = vector.shape_cast %155 : vector<32xf32> to vector<32x1xf32>
    %cst_75 = arith.constant 3.200000e+01 : f32
    %157 = vector.broadcast %cst_75 : f32 to vector<32x1xf32>
    %158 = arith.divf %156, %157 : vector<32x1xf32>
    %cst_76 = arith.constant 9.99999996E-13 : f32
    %159 = vector.broadcast %cst_76 : f32 to vector<32x1xf32>
    %160 = arith.addf %158, %159 : vector<32x1xf32>
    %161 = math.rsqrt %160 : vector<32x1xf32>
    %162 = vector.broadcast %161 : vector<32x1xf32> to vector<32x32xf32>
    %163 = arith.mulf %153, %162 : vector<32x32xf32>
    %164 = vector.broadcast %145 : vector<1x32xf32> to vector<32x32xf32>
    %165 = arith.mulf %163, %164 : vector<32x32xf32>
    %166 = vector.broadcast %147 : vector<1x32xf32> to vector<32x32xf32>
    %167 = arith.addf %165, %166 : vector<32x32xf32>
    %c1 = arith.constant 1 : index
    %c0_77 = arith.constant 0 : index
    %c0_78 = arith.constant 0 : index
    %168 = vector.load %arg5[%c1, %c0_77, %c0_78] : memref<2x32x96xf32, #tpu.memory_space<vmem>>, vector<1x32x96xf32>
    %169 = vector.shape_cast %168 : vector<1x32x96xf32> to vector<32x96xf32>
    %cst_79 = arith.constant dense<0.000000e+00> : vector<32x96xf32>
    %170 = tpu.matmul %167, %169, %cst_79 {dimension_numbers = #tpu.dot_dimension_numbers<[1], [0], [0], [1], [0, 0, 1, 1], [], []>} : vector<32x32xf32>, vector<32x96xf32>, vector<32x96xf32> -> vector<32x96xf32>
    %c1_80 = arith.constant 1 : index
    %c0_81 = arith.constant 0 : index
    %c0_82 = arith.constant 0 : index
    %171 = vector.load %arg6[%c1_80, %c0_81, %c0_82] : memref<2x1x96xf32, #tpu.memory_space<vmem>>, vector<1x1x96xf32>
    %172 = vector.shape_cast %171 : vector<1x1x96xf32> to vector<1x96xf32>
    %173 = vector.broadcast %172 : vector<1x96xf32> to vector<32x96xf32>
    %174 = arith.addf %170, %173 : vector<32x96xf32>
    %c1_83 = arith.constant 1 : index
    %c0_84 = arith.constant 0 : index
    %c0_85 = arith.constant 0 : index
    %175 = vector.load %arg7[%c1_83, %c0_84, %c0_85] : memref<2x32x32xf32, #tpu.memory_space<vmem>>, vector<1x32x32xf32>
    %176 = vector.shape_cast %175 : vector<1x32x32xf32> to vector<32x32xf32>
    %cst_86 = arith.constant 0.000000e+00 : f32
    %177 = vector.broadcast %cst_86 : f32 to vector<32x32xf32>
    %178 = vector.extract_strided_slice %174 {offsets = [0, 0], sizes = [32, 16], strides = [1, 1]} : vector<32x96xf32> to vector<32x16xf32>
    %179 = vector.shape_cast %178 : vector<32x16xf32> to vector<4x8x16xf32>
    %180 = vector.extract_strided_slice %174 {offsets = [0, 32], sizes = [32, 16], strides = [1, 1]} : vector<32x96xf32> to vector<32x16xf32>
    %181 = vector.shape_cast %180 : vector<32x16xf32> to vector<4x8x16xf32>
    %182 = vector.extract_strided_slice %174 {offsets = [0, 64], sizes = [32, 16], strides = [1, 1]} : vector<32x96xf32> to vector<32x16xf32>
    %183 = vector.shape_cast %182 : vector<32x16xf32> to vector<4x8x16xf32>
    "tpu.trace_start"() <{level = 10 : i32, message = "bqd,bkd->bqk"}> : () -> ()
    %cst_87 = arith.constant dense<0.000000e+00> : vector<4x8x8xf32>
    %184 = tpu.matmul %179, %181, %cst_87 {dimension_numbers = #tpu.dot_dimension_numbers<[2], [2], [1], [1], [0, 0, 0, 1, 1, 1], [0], [0]>} : vector<4x8x16xf32>, vector<4x8x16xf32>, vector<4x8x8xf32> -> vector<4x8x8xf32>
    "tpu.trace_stop"() : () -> ()
    %cst_88 = arith.constant 2.500000e-01 : f32
    %185 = vector.broadcast %cst_88 : f32 to vector<4x8x8xf32>
    %186 = arith.mulf %184, %185 : vector<4x8x8xf32>
    %187 = vector.broadcast %24 : vector<4x1x8xf32> to vector<4x8x8xf32>
    %188 = arith.addf %186, %187 : vector<4x8x8xf32>
    %cst_89 = arith.constant dense<0xFF800000> : vector<4x8xf32>
    %189 = vector.multi_reduction <maximumf>, %188, %cst_89 [2] : vector<4x8x8xf32> to vector<4x8xf32>
    %190 = vector.shape_cast %189 : vector<4x8xf32> to vector<4x8x1xf32>
    %191 = vector.broadcast %190 : vector<4x8x1xf32> to vector<4x8x8xf32>
    %192 = arith.subf %188, %191 : vector<4x8x8xf32>
    %193 = math.exp %192 : vector<4x8x8xf32>
    %cst_90 = arith.constant dense<0.000000e+00> : vector<4x8xf32>
    %194 = vector.multi_reduction <add>, %193, %cst_90 [2] : vector<4x8x8xf32> to vector<4x8xf32>
    %195 = vector.shape_cast %194 : vector<4x8xf32> to vector<4x8x1xf32>
    %196 = tpu.reciprocal %195 {approx = true} : vector<4x8x1xf32> -> vector<4x8x1xf32>
    %197 = vector.broadcast %196 : vector<4x8x1xf32> to vector<4x8x8xf32>
    %198 = arith.mulf %193, %197 : vector<4x8x8xf32>
    "tpu.trace_start"() <{level = 10 : i32, message = "bqk,bkd->bqd"}> : () -> ()
    %cst_91 = arith.constant dense<0.000000e+00> : vector<4x8x16xf32>
    %199 = tpu.matmul %198, %183, %cst_91 {dimension_numbers = #tpu.dot_dimension_numbers<[2], [1], [1], [2], [0, 0, 0, 1, 1, 2], [0], [0]>} : vector<4x8x8xf32>, vector<4x8x16xf32>, vector<4x8x16xf32> -> vector<4x8x16xf32>
    "tpu.trace_stop"() : () -> ()
    %200 = vector.shape_cast %199 : vector<4x8x16xf32> to vector<32x16xf32>
    %201 = vector.extract_strided_slice %176 {offsets = [0, 0], sizes = [16, 32], strides = [1, 1]} : vector<32x32xf32> to vector<16x32xf32>
    %cst_92 = arith.constant dense<0.000000e+00> : vector<32x32xf32>
    %202 = tpu.matmul %200, %201, %cst_92 {dimension_numbers = #tpu.dot_dimension_numbers<[1], [0], [0], [1], [0, 0, 1, 1], [], []>} : vector<32x16xf32>, vector<16x32xf32>, vector<32x32xf32> -> vector<32x32xf32>
    %203 = arith.addf %177, %202 : vector<32x32xf32>
    %204 = vector.extract_strided_slice %174 {offsets = [0, 16], sizes = [32, 16], strides = [1, 1]} : vector<32x96xf32> to vector<32x16xf32>
    %205 = vector.shape_cast %204 : vector<32x16xf32> to vector<4x8x16xf32>
    %206 = vector.extract_strided_slice %174 {offsets = [0, 48], sizes = [32, 16], strides = [1, 1]} : vector<32x96xf32> to vector<32x16xf32>
    %207 = vector.shape_cast %206 : vector<32x16xf32> to vector<4x8x16xf32>
    %208 = vector.extract_strided_slice %174 {offsets = [0, 80], sizes = [32, 16], strides = [1, 1]} : vector<32x96xf32> to vector<32x16xf32>
    %209 = vector.shape_cast %208 : vector<32x16xf32> to vector<4x8x16xf32>
    "tpu.trace_start"() <{level = 10 : i32, message = "bqd,bkd->bqk"}> : () -> ()
    %cst_93 = arith.constant dense<0.000000e+00> : vector<4x8x8xf32>
    %210 = tpu.matmul %205, %207, %cst_93 {dimension_numbers = #tpu.dot_dimension_numbers<[2], [2], [1], [1], [0, 0, 0, 1, 1, 1], [0], [0]>} : vector<4x8x16xf32>, vector<4x8x16xf32>, vector<4x8x8xf32> -> vector<4x8x8xf32>
    "tpu.trace_stop"() : () -> ()
    %cst_94 = arith.constant 2.500000e-01 : f32
    %211 = vector.broadcast %cst_94 : f32 to vector<4x8x8xf32>
    %212 = arith.mulf %210, %211 : vector<4x8x8xf32>
    %213 = vector.broadcast %24 : vector<4x1x8xf32> to vector<4x8x8xf32>
    %214 = arith.addf %212, %213 : vector<4x8x8xf32>
    %cst_95 = arith.constant dense<0xFF800000> : vector<4x8xf32>
    %215 = vector.multi_reduction <maximumf>, %214, %cst_95 [2] : vector<4x8x8xf32> to vector<4x8xf32>
    %216 = vector.shape_cast %215 : vector<4x8xf32> to vector<4x8x1xf32>
    %217 = vector.broadcast %216 : vector<4x8x1xf32> to vector<4x8x8xf32>
    %218 = arith.subf %214, %217 : vector<4x8x8xf32>
    %219 = math.exp %218 : vector<4x8x8xf32>
    %cst_96 = arith.constant dense<0.000000e+00> : vector<4x8xf32>
    %220 = vector.multi_reduction <add>, %219, %cst_96 [2] : vector<4x8x8xf32> to vector<4x8xf32>
    %221 = vector.shape_cast %220 : vector<4x8xf32> to vector<4x8x1xf32>
    %222 = tpu.reciprocal %221 {approx = true} : vector<4x8x1xf32> -> vector<4x8x1xf32>
    %223 = vector.broadcast %222 : vector<4x8x1xf32> to vector<4x8x8xf32>
    %224 = arith.mulf %219, %223 : vector<4x8x8xf32>
    "tpu.trace_start"() <{level = 10 : i32, message = "bqk,bkd->bqd"}> : () -> ()
    %cst_97 = arith.constant dense<0.000000e+00> : vector<4x8x16xf32>
    %225 = tpu.matmul %224, %209, %cst_97 {dimension_numbers = #tpu.dot_dimension_numbers<[2], [1], [1], [2], [0, 0, 0, 1, 1, 2], [0], [0]>} : vector<4x8x8xf32>, vector<4x8x16xf32>, vector<4x8x16xf32> -> vector<4x8x16xf32>
    "tpu.trace_stop"() : () -> ()
    %226 = vector.shape_cast %225 : vector<4x8x16xf32> to vector<32x16xf32>
    %227 = vector.extract_strided_slice %176 {offsets = [16, 0], sizes = [16, 32], strides = [1, 1]} : vector<32x32xf32> to vector<16x32xf32>
    %cst_98 = arith.constant dense<0.000000e+00> : vector<32x32xf32>
    %228 = tpu.matmul %226, %227, %cst_98 {dimension_numbers = #tpu.dot_dimension_numbers<[1], [0], [0], [1], [0, 0, 1, 1], [], []>} : vector<32x16xf32>, vector<16x32xf32>, vector<32x32xf32> -> vector<32x32xf32>
    %229 = arith.addf %203, %228 : vector<32x32xf32>
    %c1_99 = arith.constant 1 : index
    %c0_100 = arith.constant 0 : index
    %c0_101 = arith.constant 0 : index
    %230 = vector.load %arg8[%c1_99, %c0_100, %c0_101] : memref<2x1x32xf32, #tpu.memory_space<vmem>>, vector<1x1x32xf32>
    %231 = vector.shape_cast %230 : vector<1x1x32xf32> to vector<1x32xf32>
    %232 = vector.broadcast %231 : vector<1x32xf32> to vector<32x32xf32>
    %233 = arith.addf %229, %232 : vector<32x32xf32>
    %234 = arith.addf %167, %233 : vector<32x32xf32>
    %c1_102 = arith.constant 1 : index
    %c0_103 = arith.constant 0 : index
    %c0_104 = arith.constant 0 : index
    %235 = vector.load %arg9[%c1_102, %c0_103, %c0_104] : memref<2x1x32xf32, #tpu.memory_space<vmem>>, vector<1x1x32xf32>
    %236 = vector.shape_cast %235 : vector<1x1x32xf32> to vector<1x32xf32>
    %c1_105 = arith.constant 1 : index
    %c0_106 = arith.constant 0 : index
    %c0_107 = arith.constant 0 : index
    %237 = vector.load %arg10[%c1_105, %c0_106, %c0_107] : memref<2x1x32xf32, #tpu.memory_space<vmem>>, vector<1x1x32xf32>
    %238 = vector.shape_cast %237 : vector<1x1x32xf32> to vector<1x32xf32>
    %cst_108 = arith.constant dense<0.000000e+00> : vector<32xf32>
    %239 = vector.multi_reduction <add>, %234, %cst_108 [1] : vector<32x32xf32> to vector<32xf32>
    %240 = vector.shape_cast %239 : vector<32xf32> to vector<32x1xf32>
    %cst_109 = arith.constant 3.200000e+01 : f32
    %241 = vector.broadcast %cst_109 : f32 to vector<32x1xf32>
    %242 = arith.divf %240, %241 : vector<32x1xf32>
    %243 = vector.broadcast %242 : vector<32x1xf32> to vector<32x32xf32>
    %244 = arith.subf %234, %243 : vector<32x32xf32>
    %245 = arith.mulf %244, %244 : vector<32x32xf32>
    %cst_110 = arith.constant dense<0.000000e+00> : vector<32xf32>
    %246 = vector.multi_reduction <add>, %245, %cst_110 [1] : vector<32x32xf32> to vector<32xf32>
    %247 = vector.shape_cast %246 : vector<32xf32> to vector<32x1xf32>
    %cst_111 = arith.constant 3.200000e+01 : f32
    %248 = vector.broadcast %cst_111 : f32 to vector<32x1xf32>
    %249 = arith.divf %247, %248 : vector<32x1xf32>
    %cst_112 = arith.constant 9.99999996E-13 : f32
    %250 = vector.broadcast %cst_112 : f32 to vector<32x1xf32>
    %251 = arith.addf %249, %250 : vector<32x1xf32>
    %252 = math.rsqrt %251 : vector<32x1xf32>
    %253 = vector.broadcast %252 : vector<32x1xf32> to vector<32x32xf32>
    %254 = arith.mulf %244, %253 : vector<32x32xf32>
    %255 = vector.broadcast %236 : vector<1x32xf32> to vector<32x32xf32>
    %256 = arith.mulf %254, %255 : vector<32x32xf32>
    %257 = vector.broadcast %238 : vector<1x32xf32> to vector<32x32xf32>
    %258 = arith.addf %256, %257 : vector<32x32xf32>
    %c1_113 = arith.constant 1 : index
    %c0_114 = arith.constant 0 : index
    %c0_115 = arith.constant 0 : index
    %259 = vector.load %arg11[%c1_113, %c0_114, %c0_115] : memref<2x32x64xf32, #tpu.memory_space<vmem>>, vector<1x32x64xf32>
    %260 = vector.shape_cast %259 : vector<1x32x64xf32> to vector<32x64xf32>
    %cst_116 = arith.constant dense<0.000000e+00> : vector<32x64xf32>
    %261 = tpu.matmul %258, %260, %cst_116 {dimension_numbers = #tpu.dot_dimension_numbers<[1], [0], [0], [1], [0, 0, 1, 1], [], []>} : vector<32x32xf32>, vector<32x64xf32>, vector<32x64xf32> -> vector<32x64xf32>
    %c1_117 = arith.constant 1 : index
    %c0_118 = arith.constant 0 : index
    %c0_119 = arith.constant 0 : index
    %262 = vector.load %arg12[%c1_117, %c0_118, %c0_119] : memref<2x1x64xf32, #tpu.memory_space<vmem>>, vector<1x1x64xf32>
    %263 = vector.shape_cast %262 : vector<1x1x64xf32> to vector<1x64xf32>
    %264 = vector.broadcast %263 : vector<1x64xf32> to vector<32x64xf32>
    %265 = arith.addf %261, %264 : vector<32x64xf32>
    %cst_120 = arith.constant 5.000000e-01 : f32
    %266 = vector.broadcast %cst_120 : f32 to vector<32x64xf32>
    %267 = arith.mulf %266, %265 : vector<32x64xf32>
    %cst_121 = arith.constant 4.471500e-02 : f32
    %268 = vector.broadcast %cst_121 : f32 to vector<32x64xf32>
    %269 = arith.mulf %268, %265 : vector<32x64xf32>
    %270 = arith.mulf %269, %265 : vector<32x64xf32>
    %271 = arith.mulf %270, %265 : vector<32x64xf32>
    %272 = arith.addf %265, %271 : vector<32x64xf32>
    %cst_122 = arith.constant 0.797884583 : f32
    %273 = vector.broadcast %cst_122 : f32 to vector<32x64xf32>
    %274 = arith.mulf %273, %272 : vector<32x64xf32>
    %275 = math.tanh %274 : vector<32x64xf32>
    %cst_123 = arith.constant 1.000000e+00 : f32
    %276 = vector.broadcast %cst_123 : f32 to vector<32x64xf32>
    %277 = arith.addf %276, %275 : vector<32x64xf32>
    %278 = arith.mulf %267, %277 : vector<32x64xf32>
    %c1_124 = arith.constant 1 : index
    %c0_125 = arith.constant 0 : index
    %c0_126 = arith.constant 0 : index
    %279 = vector.load %arg13[%c1_124, %c0_125, %c0_126] : memref<2x64x32xf32, #tpu.memory_space<vmem>>, vector<1x64x32xf32>
    %280 = vector.shape_cast %279 : vector<1x64x32xf32> to vector<64x32xf32>
    %cst_127 = arith.constant dense<0.000000e+00> : vector<32x32xf32>
    %281 = tpu.matmul %278, %280, %cst_127 {dimension_numbers = #tpu.dot_dimension_numbers<[1], [0], [0], [1], [0, 0, 1, 1], [], []>} : vector<32x64xf32>, vector<64x32xf32>, vector<32x32xf32> -> vector<32x32xf32>
    %c1_128 = arith.constant 1 : index
    %c0_129 = arith.constant 0 : index
    %c0_130 = arith.constant 0 : index
    %282 = vector.load %arg14[%c1_128, %c0_129, %c0_130] : memref<2x1x32xf32, #tpu.memory_space<vmem>>, vector<1x1x32xf32>
    %283 = vector.shape_cast %282 : vector<1x1x32xf32> to vector<1x32xf32>
    %284 = vector.broadcast %283 : vector<1x32xf32> to vector<32x32xf32>
    %285 = arith.addf %281, %284 : vector<32x32xf32>
    %286 = arith.addf %258, %285 : vector<32x32xf32>
    %c1_131 = arith.constant 1 : index
    %c0_132 = arith.constant 0 : index
    %c0_133 = arith.constant 0 : index
    %287 = vector.load %arg15[%c1_131, %c0_132, %c0_133] : memref<2x1x32xf32, #tpu.memory_space<vmem>>, vector<1x1x32xf32>
    %288 = vector.shape_cast %287 : vector<1x1x32xf32> to vector<1x32xf32>
    %c1_134 = arith.constant 1 : index
    %c0_135 = arith.constant 0 : index
    %c0_136 = arith.constant 0 : index
    %289 = vector.load %arg16[%c1_134, %c0_135, %c0_136] : memref<2x1x32xf32, #tpu.memory_space<vmem>>, vector<1x1x32xf32>
    %290 = vector.shape_cast %289 : vector<1x1x32xf32> to vector<1x32xf32>
    %cst_137 = arith.constant dense<0.000000e+00> : vector<32xf32>
    %291 = vector.multi_reduction <add>, %286, %cst_137 [1] : vector<32x32xf32> to vector<32xf32>
    %292 = vector.shape_cast %291 : vector<32xf32> to vector<32x1xf32>
    %cst_138 = arith.constant 3.200000e+01 : f32
    %293 = vector.broadcast %cst_138 : f32 to vector<32x1xf32>
    %294 = arith.divf %292, %293 : vector<32x1xf32>
    %295 = vector.broadcast %294 : vector<32x1xf32> to vector<32x32xf32>
    %296 = arith.subf %286, %295 : vector<32x32xf32>
    %297 = arith.mulf %296, %296 : vector<32x32xf32>
    %cst_139 = arith.constant dense<0.000000e+00> : vector<32xf32>
    %298 = vector.multi_reduction <add>, %297, %cst_139 [1] : vector<32x32xf32> to vector<32xf32>
    %299 = vector.shape_cast %298 : vector<32xf32> to vector<32x1xf32>
    %cst_140 = arith.constant 3.200000e+01 : f32
    %300 = vector.broadcast %cst_140 : f32 to vector<32x1xf32>
    %301 = arith.divf %299, %300 : vector<32x1xf32>
    %cst_141 = arith.constant 9.99999996E-13 : f32
    %302 = vector.broadcast %cst_141 : f32 to vector<32x1xf32>
    %303 = arith.addf %301, %302 : vector<32x1xf32>
    %304 = math.rsqrt %303 : vector<32x1xf32>
    %305 = vector.broadcast %304 : vector<32x1xf32> to vector<32x32xf32>
    %306 = arith.mulf %296, %305 : vector<32x32xf32>
    %307 = vector.broadcast %288 : vector<1x32xf32> to vector<32x32xf32>
    %308 = arith.mulf %306, %307 : vector<32x32xf32>
    %309 = vector.broadcast %290 : vector<1x32xf32> to vector<32x32xf32>
    %310 = arith.addf %308, %309 : vector<32x32xf32>
    %311 = tpu.iota {dimensions = array<i32: 1>} : vector<4x32xi32>
    %312 = tpu.iota {dimensions = array<i32: 0>} : vector<4x32xi32>
    %c8_i32 = arith.constant 8 : i32
    %313 = vector.broadcast %c8_i32 : i32 to vector<4x32xi32>
    %314 = arith.muli %312, %313 : vector<4x32xi32>
    %315 = arith.cmpi eq, %311, %314 : vector<4x32xi32>
    %316 = arith.extui %315 : vector<4x32xi1> to vector<4x32xi32>
    %317 = arith.sitofp %316 : vector<4x32xi32> to vector<4x32xf32>
    %cst_142 = arith.constant dense<0.000000e+00> : vector<4x32xf32>
    %318 = tpu.matmul %317, %310, %cst_142 {dimension_numbers = #tpu.dot_dimension_numbers<[1], [0], [0], [1], [0, 0, 1, 1], [], []>} : vector<4x32xf32>, vector<32x32xf32>, vector<4x32xf32> -> vector<4x32xf32>
    %c0_143 = arith.constant 0 : index
    %c0_144 = arith.constant 0 : index
    %319 = vector.load %arg17[%c0_143, %c0_144] : memref<32x32xf32, #tpu.memory_space<vmem>>, vector<32x32xf32>
    %cst_145 = arith.constant dense<0.000000e+00> : vector<4x32xf32>
    %320 = tpu.matmul %318, %319, %cst_145 {dimension_numbers = #tpu.dot_dimension_numbers<[1], [0], [0], [1], [0, 0, 1, 1], [], []>} : vector<4x32xf32>, vector<32x32xf32>, vector<4x32xf32> -> vector<4x32xf32>
    %c0_146 = arith.constant 0 : index
    %c0_147 = arith.constant 0 : index
    %321 = vector.load %arg18[%c0_146, %c0_147] : memref<1x32xf32, #tpu.memory_space<vmem>>, vector<1x32xf32>
    %322 = vector.broadcast %321 : vector<1x32xf32> to vector<4x32xf32>
    %323 = arith.addf %320, %322 : vector<4x32xf32>
    %324 = math.tanh %323 : vector<4x32xf32>
    %c0_148 = arith.constant 0 : index
    %c0_149 = arith.constant 0 : index
    %325 = vector.load %arg19[%c0_148, %c0_149] : memref<1x32xf32, #tpu.memory_space<vmem>>, vector<1x32xf32>
    %326 = vector.broadcast %325 : vector<1x32xf32> to vector<4x32xf32>
    %327 = arith.mulf %324, %326 : vector<4x32xf32>
    %cst_150 = arith.constant dense<0.000000e+00> : vector<4xf32>
    %328 = vector.multi_reduction <add>, %327, %cst_150 [1] : vector<4x32xf32> to vector<4xf32>
    %329 = vector.shape_cast %328 : vector<4xf32> to vector<4x1xf32>
    %c0_151 = arith.constant 0 : index
    %c0_152 = arith.constant 0 : index
    %330 = vector.load %arg20[%c0_151, %c0_152] : memref<1x1xf32, #tpu.memory_space<vmem>>, vector<1x1xf32>
    %331 = vector.broadcast %330 : vector<1x1xf32> to vector<4x1xf32>
    %332 = arith.addf %329, %331 : vector<4x1xf32>
    %333 = vector.extract_strided_slice %332 {offsets = [0, 0], sizes = [2, 1], strides = [1, 1]} : vector<4x1xf32> to vector<2x1xf32>
    %334 = vector.extract_strided_slice %332 {offsets = [2, 0], sizes = [2, 1], strides = [1, 1]} : vector<4x1xf32> to vector<2x1xf32>
    %335 = arith.subf %333, %334 : vector<2x1xf32>
    %cst_153 = arith.constant 0.000000e+00 : f32
    %336 = vector.broadcast %cst_153 : f32 to vector<2x1xf32>
    %337 = arith.subf %336, %335 : vector<2x1xf32>
    %338 = math.exp %337 : vector<2x1xf32>
    %cst_154 = arith.constant 1.000000e+00 : f32
    %339 = vector.broadcast %cst_154 : f32 to vector<2x1xf32>
    %340 = arith.addf %339, %338 : vector<2x1xf32>
    %cst_155 = arith.constant 1.000000e+00 : f32
    %341 = vector.broadcast %cst_155 : f32 to vector<2x1xf32>
    %342 = arith.divf %341, %340 : vector<2x1xf32>
    %343 = vector.shape_cast %342 : vector<2x1xf32> to vector<1x2x1xf32>
    %cst_156 = arith.constant dense<0.000000e+00> : vector<1xf32>
    %344 = vector.multi_reduction <add>, %343, %cst_156 [1, 2] : vector<1x2x1xf32> to vector<1xf32>
    %345 = vector.shape_cast %344 : vector<1xf32> to vector<1x1x1xf32>
    %346 = vector.extract %345[0, 0, 0] : f32 from vector<1x1x1xf32>
    %347 = vector.broadcast %346 : f32 to vector<1x1xf32>
    %cst_157 = arith.constant 2.000000e+00 : f32
    %348 = vector.broadcast %cst_157 : f32 to vector<1x1xf32>
    %349 = arith.divf %347, %348 : vector<1x1xf32>
    %c0_158 = arith.constant 0 : index
    %c0_159 = arith.constant 0 : index
    %350 = vector.load %arg21[%c0_158, %c0_159] : memref<1x1xf32, #tpu.memory_space<vmem>>, vector<1x1xf32>
    tpu.vector_store %arg21[%c0_158, %c0_159], %349 {strides = array<i32>} : memref<1x1xf32, #tpu.memory_space<vmem>>, vector<1x1xf32>,
    return
  }
  func.func @transform_0(%arg0: i32) -> (i32, i32) {
    %c0_i32 = arith.constant 0 : i32
    %c0_i32_0 = arith.constant 0 : i32
    %c0_i32_1 = arith.constant 0 : i32
    return %c0_i32, %c0_i32_0 : i32, i32
  }
  func.func @transform_1(%arg0: i32) -> (i32, i32) {
    %c0_i32 = arith.constant 0 : i32
    %c0_i32_0 = arith.constant 0 : i32
    %c0_i32_1 = arith.constant 0 : i32
    return %c0_i32, %c0_i32_0 : i32, i32
  }
  func.func @transform_2(%arg0: i32) -> (i32, i32) {
    %c0_i32 = arith.constant 0 : i32
    %c0_i32_0 = arith.constant 0 : i32
    %c0_i32_1 = arith.constant 0 : i32
    return %c0_i32, %c0_i32_0 : i32, i32
  }
  func.func @transform_3(%arg0: i32) -> (i32, i32) {
    %c0_i32 = arith.constant 0 : i32
    %c0_i32_0 = arith.constant 0 : i32
    %c0_i32_1 = arith.constant 0 : i32
    return %c0_i32, %c0_i32_0 : i32, i32
  }
  func.func @transform_4(%arg0: i32) -> (i32, i32, i32) {
    %c0_i32 = arith.constant 0 : i32
    %c0_i32_0 = arith.constant 0 : i32
    %c0_i32_1 = arith.constant 0 : i32
    %c0_i32_2 = arith.constant 0 : i32
    return %c0_i32, %c0_i32_0, %c0_i32_1 : i32, i32, i32
  }
  func.func @transform_5(%arg0: i32) -> (i32, i32, i32) {
    %c0_i32 = arith.constant 0 : i32
    %c0_i32_0 = arith.constant 0 : i32
    %c0_i32_1 = arith.constant 0 : i32
    %c0_i32_2 = arith.constant 0 : i32
    return %c0_i32, %c0_i32_0, %c0_i32_1 : i32, i32, i32
  }
  func.func @transform_6(%arg0: i32) -> (i32, i32, i32) {
    %c0_i32 = arith.constant 0 : i32
    %c0_i32_0 = arith.constant 0 : i32
    %c0_i32_1 = arith.constant 0 : i32
    %c0_i32_2 = arith.constant 0 : i32
    return %c0_i32, %c0_i32_0, %c0_i32_1 : i32, i32, i32
  }
  func.func @transform_7(%arg0: i32) -> (i32, i32, i32) {
    %c0_i32 = arith.constant 0 : i32
    %c0_i32_0 = arith.constant 0 : i32
    %c0_i32_1 = arith.constant 0 : i32
    %c0_i32_2 = arith.constant 0 : i32
    return %c0_i32, %c0_i32_0, %c0_i32_1 : i32, i32, i32
  }
  func.func @transform_8(%arg0: i32) -> (i32, i32, i32) {
    %c0_i32 = arith.constant 0 : i32
    %c0_i32_0 = arith.constant 0 : i32
    %c0_i32_1 = arith.constant 0 : i32
    %c0_i32_2 = arith.constant 0 : i32
    return %c0_i32, %c0_i32_0, %c0_i32_1 : i32, i32, i32
  }
  func.func @transform_9(%arg0: i32) -> (i32, i32, i32) {
    %c0_i32 = arith.constant 0 : i32
    %c0_i32_0 = arith.constant 0 : i32
    %c0_i32_1 = arith.constant 0 : i32
    %c0_i32_2 = arith.constant 0 : i32
    return %c0_i32, %c0_i32_0, %c0_i32_1 : i32, i32, i32
  }
  func.func @transform_10(%arg0: i32) -> (i32, i32, i32) {
    %c0_i32 = arith.constant 0 : i32
    %c0_i32_0 = arith.constant 0 : i32
    %c0_i32_1 = arith.constant 0 : i32
    %c0_i32_2 = arith.constant 0 : i32
    return %c0_i32, %c0_i32_0, %c0_i32_1 : i32, i32, i32
  }
  func.func @transform_11(%arg0: i32) -> (i32, i32, i32) {
    %c0_i32 = arith.constant 0 : i32
    %c0_i32_0 = arith.constant 0 : i32
    %c0_i32_1 = arith.constant 0 : i32
    %c0_i32_2 = arith.constant 0 : i32
    return %c0_i32, %c0_i32_0, %c0_i32_1 : i32, i32, i32
  }
  func.func @transform_12(%arg0: i32) -> (i32, i32, i32) {
    %c0_i32 = arith.constant 0 : i32
    %c0_i32_0 = arith.constant 0 : i32
    %c0_i32_1 = arith.constant 0 : i32
    %c0_i32_2 = arith.constant 0 : i32
    return %c0_i32, %c0_i32_0, %c0_i32_1 : i32, i32, i32
  }
  func.func @transform_13(%arg0: i32) -> (i32, i32, i32) {
    %c0_i32 = arith.constant 0 : i32
    %c0_i32_0 = arith.constant 0 : i32
    %c0_i32_1 = arith.constant 0 : i32
    %c0_i32_2 = arith.constant 0 : i32
    return %c0_i32, %c0_i32_0, %c0_i32_1 : i32, i32, i32
  }
  func.func @transform_14(%arg0: i32) -> (i32, i32, i32) {
    %c0_i32 = arith.constant 0 : i32
    %c0_i32_0 = arith.constant 0 : i32
    %c0_i32_1 = arith.constant 0 : i32
    %c0_i32_2 = arith.constant 0 : i32
    return %c0_i32, %c0_i32_0, %c0_i32_1 : i32, i32, i32
  }
  func.func @transform_15(%arg0: i32) -> (i32, i32, i32) {
    %c0_i32 = arith.constant 0 : i32
    %c0_i32_0 = arith.constant 0 : i32
    %c0_i32_1 = arith.constant 0 : i32
    %c0_i32_2 = arith.constant 0 : i32
    return %c0_i32, %c0_i32_0, %c0_i32_1 : i32, i32, i32
  }
  func.func @transform_16(%arg0: i32) -> (i32, i32) {
    %c0_i32 = arith.constant 0 : i32
    %c0_i32_0 = arith.constant 0 : i32
    %c0_i32_1 = arith.constant 0 : i32
    return %c0_i32, %c0_i32_0 : i32, i32
  }
  func.func @transform_17(%arg0: i32) -> (i32, i32) {
    %c0_i32 = arith.constant 0 : i32
    %c0_i32_0 = arith.constant 0 : i32
    %c0_i32_1 = arith.constant 0 : i32
    return %c0_i32, %c0_i32_0 : i32, i32
  }
  func.func @transform_18(%arg0: i32) -> (i32, i32) {
    %c0_i32 = arith.constant 0 : i32
    %c0_i32_0 = arith.constant 0 : i32
    %c0_i32_1 = arith.constant 0 : i32
    return %c0_i32, %c0_i32_0 : i32, i32
  }
  func.func @transform_19(%arg0: i32) -> (i32, i32) {
    %c0_i32 = arith.constant 0 : i32
    %c0_i32_0 = arith.constant 0 : i32
    %c0_i32_1 = arith.constant 0 : i32
    return %c0_i32, %c0_i32_0 : i32, i32
  }
  func.func @transform_20(%arg0: i32) -> (i32, i32) {
    %c0_i32 = arith.constant 0 : i32
    %c0_i32_0 = arith.constant 0 : i32
    %c0_i32_1 = arith.constant 0 : i32
    return %c0_i32, %c0_i32_0 : i32, i32
  }
}

</mosaic_0001>

<llo_original>
// kernel: quality_estimator_for_train.1
$region0: #{quality_estimator_for_train.1}
  #allocation0 [shape = 'u32[]', space=smem, size = 0x4, offset = 0x4, fixed_abs, tag = 'smem constant byte address 0x4 - core index']
  #allocation1 [shape = 'u32[72,128]{1,0:T(1,128)}', space=vmem, size = 0x9000, scoped, tag = 'internal scratch']
  #allocation2 [shape = 'f32[1,1]{1,0:T(1,128)S(1)}', space=vmem, size = 0x200, scoped, tag = 'scoped memory for quality_estimator_for_train.1']
  %s0 = inlined_call_operand.vmem [shape: f32[32,32], index: 0, kind: input, shape index: {}]
  %s1 = inlined_call_operand.vmem [shape: f32[4,8], index: 1, kind: input, shape index: {}]
  %s2 = inlined_call_operand.vmem [shape: f32[1,32], index: 2, kind: input, shape index: {}]
  %s3 = inlined_call_operand.vmem [shape: f32[1,32], index: 3, kind: input, shape index: {}]
  %s4 = inlined_call_operand.vmem [shape: f32[2,32,96], index: 4, kind: input, shape index: {}]
  %s5 = inlined_call_operand.vmem [shape: f32[2,1,96], index: 5, kind: input, shape index: {}]
  %s6 = inlined_call_operand.vmem [shape: f32[2,32,32], index: 6, kind: input, shape index: {}]
  %s7 = inlined_call_operand.vmem [shape: f32[2,1,32], index: 7, kind: input, shape index: {}]
  %s8 = inlined_call_operand.vmem [shape: f32[2,1,32], index: 8, kind: input, shape index: {}]
  %s9 = inlined_call_operand.vmem [shape: f32[2,1,32], index: 9, kind: input, shape index: {}]
  %s10 = inlined_call_operand.vmem [shape: f32[2,32,64], index: 10, kind: input, shape index: {}]
  %s11 = inlined_call_operand.vmem [shape: f32[2,1,64], index: 11, kind: input, shape index: {}]
  %s12 = inlined_call_operand.vmem [shape: f32[2,64,32], index: 12, kind: input, shape index: {}]
  %s13 = inlined_call_operand.vmem [shape: f32[2,1,32], index: 13, kind: input, shape index: {}]
  %s14 = inlined_call_operand.vmem [shape: f32[2,1,32], index: 14, kind: input, shape index: {}]
  %s15 = inlined_call_operand.vmem [shape: f32[2,1,32], index: 15, kind: input, shape index: {}]
  %s16 = inlined_call_operand.vmem [shape: f32[32,32], index: 16, kind: input, shape index: {}]
  %s17 = inlined_call_operand.vmem [shape: f32[1,32], index: 17, kind: input, shape index: {}]
  %s18 = inlined_call_operand.vmem [shape: f32[1,32], index: 18, kind: input, shape index: {}]
  %s19 = inlined_call_operand.<no memory space> [shape: f32[1,1], index: 19, kind: input, shape index: {}]
  %s20 = inlined_call_operand.hbm [shape: f32[1,1], index: 20, kind: output, shape index: {}]
  %s21 = sld [smem:[#allocation0]]
  $region90: #{quality_estimator_for_train.1} parent=0
    _
  %s23 = ssub.s32 1, %s21
  %s24 = scalar_select 0, %s23, %s21
  %v25 = vstv %s19
  %26 = vst [vmem:[#allocation2] sm:$0x1] %v25
  $region1: #{quality_estimator_for_train.1} parent=0
    #allocation3 [shape = 'u8[512]{0}', space=vmem, size = 0x400, scoped, tag = 'output window, operand 0, single buffered']
    #allocation4 [shape = 's32[1]{0}', space=sflag, size = 0x4, scoped, tag = 'scoped memory for quality_estimator_for_train.1']
    %27 = vsyncpa [#allocation4], 0
    // Predicated region
    $region2: #{quality_estimator_for_train.1} parent=1 // pred_check
      _
    $region3: #{quality_estimator_for_train.1} parent=1 // pred_check_branch
      %29 = sbr.rel (0) target = $region5
    $region4: #{quality_estimator_for_train.1} parent=1 // pred_region
      _
    $region5: #{quality_estimator_for_train.1} parent=1 // pred_fallthru
      _
    // Predicated region
    $region6: #{quality_estimator_for_train.1} parent=1 // pred_check
      _
    $region7: #{quality_estimator_for_train.1} parent=1 // pred_check_branch
      %31 = sbr.rel (0) target = $region9
    $region8: #{quality_estimator_for_train.1} parent=1 // pred_region
      _
    $region9: #{quality_estimator_for_train.1} parent=1 // pred_fallthru
      _
    // Predicated region
    $region10: #{quality_estimator_for_train.1} parent=1 // pred_check
      _
    $region11: #{quality_estimator_for_train.1} parent=1 // pred_check_branch
      %33 = sbr.rel (0) target = $region13
    $region12: #{quality_estimator_for_train.1} parent=1 // pred_region
      _
    $region13: #{quality_estimator_for_train.1} parent=1 // pred_fallthru
      _
    // Predicated region
    $region14: #{quality_estimator_for_train.1} parent=1 // pred_check
      _
    $region15: #{quality_estimator_for_train.1} parent=1 // pred_check_branch
      %35 = sbr.rel (0) target = $region17
    $region16: #{quality_estimator_for_train.1} parent=1 // pred_region
      _
    $region17: #{quality_estimator_for_train.1} parent=1 // pred_fallthru
      _
    // Predicated region
    $region18: #{quality_estimator_for_train.1} parent=1 // pred_check
      _
    $region19: #{quality_estimator_for_train.1} parent=1 // pred_check_branch
      %37 = sbr.rel (0) target = $region21
    $region20: #{quality_estimator_for_train.1} parent=1 // pred_region
      _
    $region21: #{quality_estimator_for_train.1} parent=1 // pred_fallthru
      _
    // Predicated region
    $region22: #{quality_estimator_for_train.1} parent=1 // pred_check
      _
    $region23: #{quality_estimator_for_train.1} parent=1 // pred_check_branch
      %39 = sbr.rel (0) target = $region25
    $region24: #{quality_estimator_for_train.1} parent=1 // pred_region
      _
    $region25: #{quality_estimator_for_train.1} parent=1 // pred_fallthru
      _
    // Predicated region
    $region26: #{quality_estimator_for_train.1} parent=1 // pred_check
      _
    $region27: #{quality_estimator_for_train.1} parent=1 // pred_check_branch
      %41 = sbr.rel (0) target = $region29
    $region28: #{quality_estimator_for_train.1} parent=1 // pred_region
      _
    $region29: #{quality_estimator_for_train.1} parent=1 // pred_fallthru
      _
    // Predicated region
    $region30: #{quality_estimator_for_train.1} parent=1 // pred_check
      _
    $region31: #{quality_estimator_for_train.1} parent=1 // pred_check_branch
      %43 = sbr.rel (0) target = $region33
    $region32: #{quality_estimator_for_train.1} parent=1 // pred_region
      _
    $region33: #{quality_estimator_for_train.1} parent=1 // pred_fallthru
      _
    // Predicated region
    $region34: #{quality_estimator_for_train.1} parent=1 // pred_check
      _
    $region35: #{quality_estimator_for_train.1} parent=1 // pred_check_branch
      %45 = sbr.rel (0) target = $region37
    $region36: #{quality_estimator_for_train.1} parent=1 // pred_region
      _
    $region37: #{quality_estimator_for_train.1} parent=1 // pred_fallthru
      _
    // Predicated region
    $region38: #{quality_estimator_for_train.1} parent=1 // pred_check
      _
    $region39: #{quality_estimator_for_train.1} parent=1 // pred_check_branch
      %47 = sbr.rel (0) target = $region41
    $region40: #{quality_estimator_for_train.1} parent=1 // pred_region
      _
    $region41: #{quality_estimator_for_train.1} parent=1 // pred_fallthru
      _
    // Predicated region
    $region42: #{quality_estimator_for_train.1} parent=1 // pred_check
      _
    $region43: #{quality_estimator_for_train.1} parent=1 // pred_check_branch
      %49 = sbr.rel (0) target = $region45
    $region44: #{quality_estimator_for_train.1} parent=1 // pred_region
      _
    $region45: #{quality_estimator_for_train.1} parent=1 // pred_fallthru
      _
    // Predicated region
    $region46: #{quality_estimator_for_train.1} parent=1 // pred_check
      _
    $region47: #{quality_estimator_for_train.1} parent=1 // pred_check_branch
      %51 = sbr.rel (0) target = $region49
    $region48: #{quality_estimator_for_train.1} parent=1 // pred_region
      _
    $region49: #{quality_estimator_for_train.1} parent=1 // pred_fallthru
      _
    // Predicated region
    $region50: #{quality_estimator_for_train.1} parent=1 // pred_check
      _
    $region51: #{quality_estimator_for_train.1} parent=1 // pred_check_branch
      %53 = sbr.rel (0) target = $region53
    $region52: #{quality_estimator_for_train.1} parent=1 // pred_region
      _
    $region53: #{quality_estimator_for_train.1} parent=1 // pred_fallthru
      _
    // Predicated region
    $region54: #{quality_estimator_for_train.1} parent=1 // pred_check
      _
    $region55: #{quality_estimator_for_train.1} parent=1 // pred_check_branch
      %55 = sbr.rel (0) target = $region57
    $region56: #{quality_estimator_for_train.1} parent=1 // pred_region
      _
    $region57: #{quality_estimator_for_train.1} parent=1 // pred_fallthru
      _
    // Predicated region
    $region58: #{quality_estimator_for_train.1} parent=1 // pred_check
      _
    $region59: #{quality_estimator_for_train.1} parent=1 // pred_check_branch
      %57 = sbr.rel (0) target = $region61
    $region60: #{quality_estimator_for_train.1} parent=1 // pred_region
      _
    $region61: #{quality_estimator_for_train.1} parent=1 // pred_fallthru
      _
    // Predicated region
    $region62: #{quality_estimator_for_train.1} parent=1 // pred_check
      _
    $region63: #{quality_estimator_for_train.1} parent=1 // pred_check_branch
      %59 = sbr.rel (0) target = $region65
    $region64: #{quality_estimator_for_train.1} parent=1 // pred_region
      _
    $region65: #{quality_estimator_for_train.1} parent=1 // pred_fallthru
      _
    // Predicated region
    $region66: #{quality_estimator_for_train.1} parent=1 // pred_check
      _
    $region67: #{quality_estimator_for_train.1} parent=1 // pred_check_branch
      %61 = sbr.rel (0) target = $region69
    $region68: #{quality_estimator_for_train.1} parent=1 // pred_region
      _
    $region69: #{quality_estimator_for_train.1} parent=1 // pred_fallthru
      _
    // Predicated region
    $region70: #{quality_estimator_for_train.1} parent=1 // pred_check
      _
    $region71: #{quality_estimator_for_train.1} parent=1 // pred_check_branch
      %63 = sbr.rel (0) target = $region73
    $region72: #{quality_estimator_for_train.1} parent=1 // pred_region
      _
    $region73: #{quality_estimator_for_train.1} parent=1 // pred_fallthru
      _
    // Predicated region
    $region74: #{quality_estimator_for_train.1} parent=1 // pred_check
      _
    $region75: #{quality_estimator_for_train.1} parent=1 // pred_check_branch
      %65 = sbr.rel (0) target = $region77
    $region76: #{quality_estimator_for_train.1} parent=1 // pred_region
      _
    $region77: #{quality_estimator_for_train.1} parent=1 // pred_fallthru
      _
    // Predicated region
    $region78: #{quality_estimator_for_train.1} parent=1 // pred_check
      _
    $region79: #{quality_estimator_for_train.1} parent=1 // pred_check_branch
      %67 = sbr.rel (0) target = $region81
    $region80: #{quality_estimator_for_train.1} parent=1 // pred_region
      _
    $region81: #{quality_estimator_for_train.1} parent=1 // pred_fallthru
      _
    %v68 = vld [vmem:[%s0] sm:$0xff]
    %v69 = vld [vmem:[%s0 + $0x8] sm:$0xff]
    %v70 = vld [vmem:[%s0 + $0x10] sm:$0xff]
    %v71 = vld [vmem:[%s0 + $0x18] sm:$0xff]
    %v72 = vld [vmem:[%s2] sm:$0x1]
    %v73 = vld [vmem:[%s3] sm:$0x1]
    %vm74 = vcmask 261120
    %v75 = vsel %vm74, %v68, 0.0
    %76 = vadd.xlane.f32.xlu0 %v75
    %v77 = vpop.xlane.xlu0 %76
    %v78 = vsel %vm74, %v69, 0.0
    %79 = vadd.xlane.f32.xlu0 %v78
    %v80 = vpop.xlane.xlu0 %79
    %v81 = vsel %vm74, %v70, 0.0
    %82 = vadd.xlane.f32.xlu0 %v81
    %v83 = vpop.xlane.xlu0 %82
    %v84 = vsel %vm74, %v71, 0.0
    %85 = vadd.xlane.f32.xlu0 %v84
    %v86 = vpop.xlane.xlu0 %85
    %v87 = vrcp.pop 32.0
    %v88 = vmul.f32 32.0, %v87
    %v89 = vsub.f32 1.0, %v88
    %v90 = vmul.f32 %v87, %v89
    %v91 = vadd.f32 %v87, %v90
    %vm92 = vweird.f32 %v87
    %v93 = vsel %vm92, %v87, %v91
    %v94 = vmul.f32 %v77, %v93
    %v95 = vmul.f32 %v80, %v93
    %v96 = vmul.f32 %v83, %v93
    %v97 = vmul.f32 %v86, %v93
    %v98 = vsub.f32 %v68, %v94
    %v99 = vsub.f32 %v69, %v95
    %v100 = vsub.f32 %v70, %v96
    %v101 = vsub.f32 %v71, %v97
    %v102 = vmul.f32 %v98, %v98
    %v103 = vmul.f32 %v99, %v99
    %v104 = vmul.f32 %v100, %v100
    %v105 = vmul.f32 %v101, %v101
    %v106 = vsel %vm74, %v102, 0.0
    %107 = vadd.xlane.f32.xlu0 %v106
    %v108 = vpop.xlane.xlu0 %107
    %v109 = vsel %vm74, %v103, 0.0
    %110 = vadd.xlane.f32.xlu0 %v109
    %v111 = vpop.xlane.xlu0 %110
    %v112 = vsel %vm74, %v104, 0.0
    %113 = vadd.xlane.f32.xlu0 %v112
    %v114 = vpop.xlane.xlu0 %113
    %v115 = vsel %vm74, %v105, 0.0
    %116 = vadd.xlane.f32.xlu0 %v115
    %v117 = vpop.xlane.xlu0 %116
    %v118 = vmul.f32 %v108, %v93
    %v119 = vmul.f32 %v111, %v93
    %v120 = vmul.f32 %v114, %v93
    %v121 = vmul.f32 %v117, %v93
    %v122 = vadd.f32 %v118, 1e-12
    %v123 = vadd.f32 %v119, 1e-12
    %v124 = vadd.f32 %v120, 1e-12
    %v125 = vadd.f32 %v121, 1e-12
    %v126 = vrsqrt.pop %v122
    %v127 = vmul.f32 %v126, %v122
    %v128 = vmul.f32 %v127, %v126
    %v129 = vmul.f32 0.5, %v128
    %v130 = vsub.f32 1.5, %v129
    %v131 = vmul.f32 %v126, %v130
    %vm132 = vweird.f32 %v122
    %vm133 = vweird.f32 %v126
    %vm134 = vmor %vm132, %vm133
    %v135 = vsel %vm134, %v126, %v131
    %v136 = vrsqrt.pop %v123
    %v137 = vmul.f32 %v136, %v123
    %v138 = vmul.f32 %v137, %v136
    %v139 = vmul.f32 0.5, %v138
    %v140 = vsub.f32 1.5, %v139
    %v141 = vmul.f32 %v136, %v140
    %vm142 = vweird.f32 %v123
    %vm143 = vweird.f32 %v136
    %vm144 = vmor %vm142, %vm143
    %v145 = vsel %vm144, %v136, %v141
    %v146 = vrsqrt.pop %v124
    %v147 = vmul.f32 %v146, %v124
    %v148 = vmul.f32 %v147, %v146
    %v149 = vmul.f32 0.5, %v148
    %v150 = vsub.f32 1.5, %v149
    %v151 = vmul.f32 %v146, %v150
    %vm152 = vweird.f32 %v124
    %vm153 = vweird.f32 %v146
    %vm154 = vmor %vm152, %vm153
    %v155 = vsel %vm154, %v146, %v151
    %v156 = vrsqrt.pop %v125
    %v157 = vmul.f32 %v156, %v125
    %v158 = vmul.f32 %v157, %v156
    %v159 = vmul.f32 0.5, %v158
    %v160 = vsub.f32 1.5, %v159
    %v161 = vmul.f32 %v156, %v160
    %vm162 = vweird.f32 %v125
    %vm163 = vweird.f32 %v156
    %vm164 = vmor %vm162, %vm163
    %v165 = vsel %vm164, %v156, %v161
    %v166 = vmul.f32 %v98, %v135
    %v167 = vmul.f32 %v99, %v145
    %v168 = vmul.f32 %v100, %v155
    %v169 = vmul.f32 %v101, %v165
    %v171 = vperm.slane %v72, 0
    %v173 = vmul.f32 %v166, %v171
    %v174 = vmul.f32 %v167, %v171
    %v175 = vmul.f32 %v168, %v171
    %v176 = vmul.f32 %v169, %v171
    %v178 = vperm.slane %v73, 0
    %v180 = vadd.f32 %v173, %v178
    %v181 = vadd.f32 %v174, %v178
    %v182 = vadd.f32 %v175, %v178
    %v183 = vadd.f32 %v176, %v178
    %v184 = vld [vmem:[%s1] sm:$0xf]
    %v186 = vrot.slane %v184, 1
    %v187 = vrot.slane %v184, 2
    %v188 = vrot.slane %v184, 3
    %v189 = vld [vmem:[%s4] sm:$0xff]
    %v190 = vld [vmem:[%s4 + $0x8] sm:$0xff]
    %v191 = vld [vmem:[%s4 + $0x10] sm:$0xff]
    %v192 = vld [vmem:[%s4 + $0x18] sm:$0xff]
    %v193 = vld [vmem:[%s5] sm:$0x1]
    %v195 = vperm.slane %v193, 0
    %v198 = vsel %vm74, %v180, 0
    %v201 = vsel %vm74, %v181, 0
    %v204 = vsel %vm74, %v182, 0
    %v207 = vsel %vm74, %v183, 0
    %209 = vmatpush.msra.mxu0 0.0
    %210 = vmatpush.msra.mxu0 0.0
    %211 = vmatpush.msra.mxu0 0.0
    %212 = vmatpush.msra.mxu0 0.0
    %213 = vmatpush.msra.mxu0 0.0
    %214 = vmatpush.msra.mxu0 0.0
    %215 = vmatpush.msra.mxu0 0.0
    %216 = vmatpush.msra.mxu0 0.0
    %217 = vmatpush.msra.mxu0 0.0
    %218 = vmatpush.msra.mxu0 0.0
    %219 = vmatpush.msra.mxu0 0.0
    %220 = vmatpush.msra.mxu0 0.0
    %221 = vmatpush.msra.mxu0 %v192
    %222 = vmatpush.msra.mxu0 %v191
    %223 = vmatpush.msra.mxu0 %v190
    %224 = vmatpush.msra.mxu0 %v189
    %225 = vmatmul.f32.gmra.mxu0 %v198
    %v226 = vpop.f32.mrf.mxu0
    %v227 = vadd.f32 %v195, %v226
    %228 = vmatmul.f32.gmra.mxu0 %v201
    %v229 = vpop.f32.mrf.mxu0
    %v230 = vadd.f32 %v195, %v229
    %231 = vmatmul.f32.gmra.mxu0 %v204
    %v232 = vpop.f32.mrf.mxu0
    %v233 = vadd.f32 %v195, %v232
    %234 = vmatmul.f32.gmra.mxu0 %v207
    %v235 = vpop.f32.mrf.mxu0
    %v236 = vadd.f32 %v195, %v235
    %237 = vdwg.mxu0
    %v238 = vld [vmem:[%s6] sm:$0xff]
    %v239 = vld [vmem:[%s6 + $0x8] sm:$0xff]
    %v240 = vld [vmem:[%s6 + $0x10] sm:$0xff]
    %v241 = vld [vmem:[%s6 + $0x18] sm:$0xff]
    %243 = vrot.lane.b32.xlu0 %v227, 96
    %v244 = vpop.permute.xlu0 %243
    %vm245 = vcmask 130048
    %v246 = vsel %vm245, %v227, 0
    %v248 = vsel %vm245, %v244, 0
    %250 = vmatpush.xpose.msra.mxu0 0.0
    %251 = vmatpush.xpose.msra.mxu0 0.0
    %252 = vmatpush.xpose.msra.mxu0 0.0
    %253 = vmatpush.xpose.msra.mxu0 0.0
    %254 = vmatpush.xpose.msra.mxu0 0.0
    %255 = vmatpush.xpose.msra.mxu0 0.0
    %256 = vmatpush.xpose.msra.mxu0 0.0
    %257 = vmatpush.xpose.msra.mxu0 0.0
    %258 = vmatpush.xpose.msra.mxu0 0.0
    %259 = vmatpush.xpose.msra.mxu0 0.0
    %260 = vmatpush.xpose.msra.mxu0 0.0
    %261 = vmatpush.xpose.msra.mxu0 0.0
    %262 = vmatpush.xpose.msra.mxu0 0.0
    %263 = vmatpush.xpose.msra.mxu0 0.0
    %264 = vmatpush.xpose.msra.mxu0 0.0
    %265 = vmatpush.xpose.msra.mxu0 %v248
    %266 = vmatmul.f32.gmra.mxu0 %v246
    %v267 = vpop.f32.mrf.mxu0
    %v268 = vadd.f32 0.0, %v267
    %269 = vdwg.mxu0
    %271 = vrot.lane.b32.xlu0 %v230, 96
    %v272 = vpop.permute.xlu0 %271
    %v273 = vsel %vm245, %v230, 0
    %v275 = vsel %vm245, %v272, 0
    %277 = vmatpush.xpose.msra.mxu0 0.0
    %278 = vmatpush.xpose.msra.mxu0 0.0
    %279 = vmatpush.xpose.msra.mxu0 0.0
    %280 = vmatpush.xpose.msra.mxu0 0.0
    %281 = vmatpush.xpose.msra.mxu0 0.0
    %282 = vmatpush.xpose.msra.mxu0 0.0
    %283 = vmatpush.xpose.msra.mxu0 0.0
    %284 = vmatpush.xpose.msra.mxu0 0.0
    %285 = vmatpush.xpose.msra.mxu0 0.0
    %286 = vmatpush.xpose.msra.mxu0 0.0
    %287 = vmatpush.xpose.msra.mxu0 0.0
    %288 = vmatpush.xpose.msra.mxu0 0.0
    %289 = vmatpush.xpose.msra.mxu0 0.0
    %290 = vmatpush.xpose.msra.mxu0 0.0
    %291 = vmatpush.xpose.msra.mxu0 0.0
    %292 = vmatpush.xpose.msra.mxu0 %v275
    %293 = vmatmul.f32.gmra.mxu0 %v273
    %v294 = vpop.f32.mrf.mxu0
    %v295 = vadd.f32 0.0, %v294
    %296 = vdwg.mxu0
    %298 = vrot.lane.b32.xlu0 %v233, 96
    %v299 = vpop.permute.xlu0 %298
    %v300 = vsel %vm245, %v233, 0
    %v302 = vsel %vm245, %v299, 0
    %304 = vmatpush.xpose.msra.mxu0 0.0
    %305 = vmatpush.xpose.msra.mxu0 0.0
    %306 = vmatpush.xpose.msra.mxu0 0.0
    %307 = vmatpush.xpose.msra.mxu0 0.0
    %308 = vmatpush.xpose.msra.mxu0 0.0
    %309 = vmatpush.xpose.msra.mxu0 0.0
    %310 = vmatpush.xpose.msra.mxu0 0.0
    %311 = vmatpush.xpose.msra.mxu0 0.0
    %312 = vmatpush.xpose.msra.mxu0 0.0
    %313 = vmatpush.xpose.msra.mxu0 0.0
    %314 = vmatpush.xpose.msra.mxu0 0.0
    %315 = vmatpush.xpose.msra.mxu0 0.0
    %316 = vmatpush.xpose.msra.mxu0 0.0
    %317 = vmatpush.xpose.msra.mxu0 0.0
    %318 = vmatpush.xpose.msra.mxu0 0.0
    %319 = vmatpush.xpose.msra.mxu0 %v302
    %320 = vmatmul.f32.gmra.mxu0 %v300
    %v321 = vpop.f32.mrf.mxu0
    %v322 = vadd.f32 0.0, %v321
    %323 = vdwg.mxu0
    %325 = vrot.lane.b32.xlu0 %v236, 96
    %v326 = vpop.permute.xlu0 %325
    %v327 = vsel %vm245, %v236, 0
    %v329 = vsel %vm245, %v326, 0
    %331 = vmatpush.xpose.msra.mxu0 0.0
    %332 = vmatpush.xpose.msra.mxu0 0.0
    %333 = vmatpush.xpose.msra.mxu0 0.0
    %334 = vmatpush.xpose.msra.mxu0 0.0
    %335 = vmatpush.xpose.msra.mxu0 0.0
    %336 = vmatpush.xpose.msra.mxu0 0.0
    %337 = vmatpush.xpose.msra.mxu0 0.0
    %338 = vmatpush.xpose.msra.mxu0 0.0
    %339 = vmatpush.xpose.msra.mxu0 0.0
    %340 = vmatpush.xpose.msra.mxu0 0.0
    %341 = vmatpush.xpose.msra.mxu0 0.0
    %342 = vmatpush.xpose.msra.mxu0 0.0
    %343 = vmatpush.xpose.msra.mxu0 0.0
    %344 = vmatpush.xpose.msra.mxu0 0.0
    %345 = vmatpush.xpose.msra.mxu0 0.0
    %346 = vmatpush.xpose.msra.mxu0 %v329
    %347 = vmatmul.f32.gmra.mxu0 %v327
    %v348 = vpop.f32.mrf.mxu0
    %v349 = vadd.f32 0.0, %v348
    %350 = vdwg.mxu0
    %v351 = vmul.f32 %v268, 0.25
    %v352 = vmul.f32 %v295, 0.25
    %v353 = vmul.f32 %v322, 0.25
    %v354 = vmul.f32 %v349, 0.25
    %v355 = vperm.slane %v184, 0
    %v356 = vperm.slane %v186, 0
    %v357 = vperm.slane %v187, 0
    %v358 = vperm.slane %v188, 0
    %v363 = vadd.f32 %v351, %v355
    %v364 = vadd.f32 %v352, %v356
    %v365 = vadd.f32 %v353, %v357
    %v366 = vadd.f32 %v354, %v358
    %vm367 = vcmask 64512
    %v368 = vsel %vm367, %v363, -inf
    %369 = vmax.xlane.f32.xlu0 %v368
    %v370 = vpop.xlane.xlu0 %369
    %v371 = vsel %vm367, %v364, -inf
    %372 = vmax.xlane.f32.xlu0 %v371
    %v373 = vpop.xlane.xlu0 %372
    %v374 = vsel %vm367, %v365, -inf
    %375 = vmax.xlane.f32.xlu0 %v374
    %v376 = vpop.xlane.xlu0 %375
    %v377 = vsel %vm367, %v366, -inf
    %378 = vmax.xlane.f32.xlu0 %v377
    %v379 = vpop.xlane.xlu0 %378
    %v380 = vsub.f32 %v363, %v370
    %v381 = vsub.f32 %v364, %v373
    %v382 = vsub.f32 %v365, %v376
    %v383 = vsub.f32 %v366, %v379
    %v384 = vmul.f32 %v380, 1.442695
    %v385 = vpow.pop %v384
    %v386 = vmul.f32 %v381, 1.442695
    %v387 = vpow.pop %v386
    %v388 = vmul.f32 %v382, 1.442695
    %v389 = vpow.pop %v388
    %v390 = vmul.f32 %v383, 1.442695
    %v391 = vpow.pop %v390
    %v392 = vsel %vm367, %v385, 0.0
    %393 = vadd.xlane.f32.xlu0 %v392
    %v394 = vpop.xlane.xlu0 %393
    %v395 = vsel %vm367, %v387, 0.0
    %396 = vadd.xlane.f32.xlu0 %v395
    %v397 = vpop.xlane.xlu0 %396
    %v398 = vsel %vm367, %v389, 0.0
    %399 = vadd.xlane.f32.xlu0 %v398
    %v400 = vpop.xlane.xlu0 %399
    %v401 = vsel %vm367, %v391, 0.0
    %402 = vadd.xlane.f32.xlu0 %v401
    %v403 = vpop.xlane.xlu0 %402
    %v404 = vrcp.pop %v394
    %v405 = vrcp.pop %v397
    %v406 = vrcp.pop %v400
    %v407 = vrcp.pop %v403
    %v408 = vmul.f32 %v385, %v404
    %v409 = vmul.f32 %v387, %v405
    %v410 = vmul.f32 %v389, %v406
    %v411 = vmul.f32 %v391, %v407
    %412 = vrot.lane.b32.xlu0 %v227, 64
    %v413 = vpop.permute.xlu0 %412
    %v416 = vsel %vm367, %v408, 0
    %418 = vmatpush.msra.mxu0 0.0
    %419 = vmatpush.msra.mxu0 0.0
    %420 = vmatpush.msra.mxu0 0.0
    %421 = vmatpush.msra.mxu0 0.0
    %422 = vmatpush.msra.mxu0 0.0
    %423 = vmatpush.msra.mxu0 0.0
    %424 = vmatpush.msra.mxu0 0.0
    %425 = vmatpush.msra.mxu0 0.0
    %426 = vmatpush.msra.mxu0 0.0
    %427 = vmatpush.msra.mxu0 0.0
    %428 = vmatpush.msra.mxu0 0.0
    %429 = vmatpush.msra.mxu0 0.0
    %430 = vmatpush.msra.mxu0 0.0
    %431 = vmatpush.msra.mxu0 0.0
    %432 = vmatpush.msra.mxu0 0.0
    %433 = vmatpush.msra.mxu0 %v413
    %434 = vmatmul.f32.gmra.mxu0 %v416
    %v435 = vpop.f32.mrf.mxu0
    %v436 = vadd.f32 0.0, %v435
    %437 = vdwg.mxu0
    %438 = vrot.lane.b32.xlu0 %v230, 64
    %v439 = vpop.permute.xlu0 %438
    %v442 = vsel %vm367, %v409, 0
    %444 = vmatpush.msra.mxu0 0.0
    %445 = vmatpush.msra.mxu0 0.0
    %446 = vmatpush.msra.mxu0 0.0
    %447 = vmatpush.msra.mxu0 0.0
    %448 = vmatpush.msra.mxu0 0.0
    %449 = vmatpush.msra.mxu0 0.0
    %450 = vmatpush.msra.mxu0 0.0
    %451 = vmatpush.msra.mxu0 0.0
    %452 = vmatpush.msra.mxu0 0.0
    %453 = vmatpush.msra.mxu0 0.0
    %454 = vmatpush.msra.mxu0 0.0
    %455 = vmatpush.msra.mxu0 0.0
    %456 = vmatpush.msra.mxu0 0.0
    %457 = vmatpush.msra.mxu0 0.0
    %458 = vmatpush.msra.mxu0 0.0
    %459 = vmatpush.msra.mxu0 %v439
    %460 = vmatmul.f32.gmra.mxu0 %v442
    %v461 = vpop.f32.mrf.mxu0
    %v462 = vadd.f32 0.0, %v461
    %463 = vdwg.mxu0
    %464 = vrot.lane.b32.xlu0 %v233, 64
    %v465 = vpop.permute.xlu0 %464
    %v468 = vsel %vm367, %v410, 0
    %470 = vmatpush.msra.mxu0 0.0
    %471 = vmatpush.msra.mxu0 0.0
    %472 = vmatpush.msra.mxu0 0.0
    %473 = vmatpush.msra.mxu0 0.0
    %474 = vmatpush.msra.mxu0 0.0
    %475 = vmatpush.msra.mxu0 0.0
    %476 = vmatpush.msra.mxu0 0.0
    %477 = vmatpush.msra.mxu0 0.0
    %478 = vmatpush.msra.mxu0 0.0
    %479 = vmatpush.msra.mxu0 0.0
    %480 = vmatpush.msra.mxu0 0.0
    %481 = vmatpush.msra.mxu0 0.0
    %482 = vmatpush.msra.mxu0 0.0
    %483 = vmatpush.msra.mxu0 0.0
    %484 = vmatpush.msra.mxu0 0.0
    %485 = vmatpush.msra.mxu0 %v465
    %486 = vmatmul.f32.gmra.mxu0 %v468
    %v487 = vpop.f32.mrf.mxu0
    %v488 = vadd.f32 0.0, %v487
    %489 = vdwg.mxu0
    %490 = vrot.lane.b32.xlu0 %v236, 64
    %v491 = vpop.permute.xlu0 %490
    %v494 = vsel %vm367, %v411, 0
    %496 = vmatpush.msra.mxu0 0.0
    %497 = vmatpush.msra.mxu0 0.0
    %498 = vmatpush.msra.mxu0 0.0
    %499 = vmatpush.msra.mxu0 0.0
    %500 = vmatpush.msra.mxu0 0.0
    %501 = vmatpush.msra.mxu0 0.0
    %502 = vmatpush.msra.mxu0 0.0
    %503 = vmatpush.msra.mxu0 0.0
    %504 = vmatpush.msra.mxu0 0.0
    %505 = vmatpush.msra.mxu0 0.0
    %506 = vmatpush.msra.mxu0 0.0
    %507 = vmatpush.msra.mxu0 0.0
    %508 = vmatpush.msra.mxu0 0.0
    %509 = vmatpush.msra.mxu0 0.0
    %510 = vmatpush.msra.mxu0 0.0
    %511 = vmatpush.msra.mxu0 %v491
    %512 = vmatmul.f32.gmra.mxu0 %v494
    %v513 = vpop.f32.mrf.mxu0
    %v514 = vadd.f32 0.0, %v513
    %515 = vdwg.mxu0
    %516 = vrot.lane.b32.xlu0 %v227, 112
    %v517 = vpop.permute.xlu0 %516
    %518 = vrot.lane.b32.xlu0 %v227, 80
    %v519 = vpop.permute.xlu0 %518
    %v520 = vsel %vm245, %v517, 0
    %v522 = vsel %vm245, %v519, 0
    %524 = vmatpush.xpose.msra.mxu0 0.0
    %525 = vmatpush.xpose.msra.mxu0 0.0
    %526 = vmatpush.xpose.msra.mxu0 0.0
    %527 = vmatpush.xpose.msra.mxu0 0.0
    %528 = vmatpush.xpose.msra.mxu0 0.0
    %529 = vmatpush.xpose.msra.mxu0 0.0
    %530 = vmatpush.xpose.msra.mxu0 0.0
    %531 = vmatpush.xpose.msra.mxu0 0.0
    %532 = vmatpush.xpose.msra.mxu0 0.0
    %533 = vmatpush.xpose.msra.mxu0 0.0
    %534 = vmatpush.xpose.msra.mxu0 0.0
    %535 = vmatpush.xpose.msra.mxu0 0.0
    %536 = vmatpush.xpose.msra.mxu0 0.0
    %537 = vmatpush.xpose.msra.mxu0 0.0
    %538 = vmatpush.xpose.msra.mxu0 0.0
    %539 = vmatpush.xpose.msra.mxu0 %v522
    %540 = vmatmul.f32.gmra.mxu0 %v520
    %v541 = vpop.f32.mrf.mxu0
    %v542 = vadd.f32 0.0, %v541
    %543 = vdwg.mxu0
    %544 = vrot.lane.b32.xlu0 %v230, 112
    %v545 = vpop.permute.xlu0 %544
    %546 = vrot.lane.b32.xlu0 %v230, 80
    %v547 = vpop.permute.xlu0 %546
    %v548 = vsel %vm245, %v545, 0
    %v550 = vsel %vm245, %v547, 0
    %552 = vmatpush.xpose.msra.mxu0 0.0
    %553 = vmatpush.xpose.msra.mxu0 0.0
    %554 = vmatpush.xpose.msra.mxu0 0.0
    %555 = vmatpush.xpose.msra.mxu0 0.0
    %556 = vmatpush.xpose.msra.mxu0 0.0
    %557 = vmatpush.xpose.msra.mxu0 0.0
    %558 = vmatpush.xpose.msra.mxu0 0.0
    %559 = vmatpush.xpose.msra.mxu0 0.0
    %560 = vmatpush.xpose.msra.mxu0 0.0
    %561 = vmatpush.xpose.msra.mxu0 0.0
    %562 = vmatpush.xpose.msra.mxu0 0.0
    %563 = vmatpush.xpose.msra.mxu0 0.0
    %564 = vmatpush.xpose.msra.mxu0 0.0
    %565 = vmatpush.xpose.msra.mxu0 0.0
    %566 = vmatpush.xpose.msra.mxu0 0.0
    %567 = vmatpush.xpose.msra.mxu0 %v550
    %568 = vmatmul.f32.gmra.mxu0 %v548
    %v569 = vpop.f32.mrf.mxu0
    %v570 = vadd.f32 0.0, %v569
    %571 = vdwg.mxu0
    %572 = vrot.lane.b32.xlu0 %v233, 112
    %v573 = vpop.permute.xlu0 %572
    %574 = vrot.lane.b32.xlu0 %v233, 80
    %v575 = vpop.permute.xlu0 %574
    %v576 = vsel %vm245, %v573, 0
    %v578 = vsel %vm245, %v575, 0
    %580 = vmatpush.xpose.msra.mxu0 0.0
    %581 = vmatpush.xpose.msra.mxu0 0.0
    %582 = vmatpush.xpose.msra.mxu0 0.0
    %583 = vmatpush.xpose.msra.mxu0 0.0
    %584 = vmatpush.xpose.msra.mxu0 0.0
    %585 = vmatpush.xpose.msra.mxu0 0.0
    %586 = vmatpush.xpose.msra.mxu0 0.0
    %587 = vmatpush.xpose.msra.mxu0 0.0
    %588 = vmatpush.xpose.msra.mxu0 0.0
    %589 = vmatpush.xpose.msra.mxu0 0.0
    %590 = vmatpush.xpose.msra.mxu0 0.0
    %591 = vmatpush.xpose.msra.mxu0 0.0
    %592 = vmatpush.xpose.msra.mxu0 0.0
    %593 = vmatpush.xpose.msra.mxu0 0.0
    %594 = vmatpush.xpose.msra.mxu0 0.0
    %595 = vmatpush.xpose.msra.mxu0 %v578
    %596 = vmatmul.f32.gmra.mxu0 %v576
    %v597 = vpop.f32.mrf.mxu0
    %v598 = vadd.f32 0.0, %v597
    %599 = vdwg.mxu0
    %600 = vrot.lane.b32.xlu0 %v236, 112
    %v601 = vpop.permute.xlu0 %600
    %602 = vrot.lane.b32.xlu0 %v236, 80
    %v603 = vpop.permute.xlu0 %602
    %v604 = vsel %vm245, %v601, 0
    %v606 = vsel %vm245, %v603, 0
    %608 = vmatpush.xpose.msra.mxu0 0.0
    %609 = vmatpush.xpose.msra.mxu0 0.0
    %610 = vmatpush.xpose.msra.mxu0 0.0
    %611 = vmatpush.xpose.msra.mxu0 0.0
    %612 = vmatpush.xpose.msra.mxu0 0.0
    %613 = vmatpush.xpose.msra.mxu0 0.0
    %614 = vmatpush.xpose.msra.mxu0 0.0
    %615 = vmatpush.xpose.msra.mxu0 0.0
    %616 = vmatpush.xpose.msra.mxu0 0.0
    %617 = vmatpush.xpose.msra.mxu0 0.0
    %618 = vmatpush.xpose.msra.mxu0 0.0
    %619 = vmatpush.xpose.msra.mxu0 0.0
    %620 = vmatpush.xpose.msra.mxu0 0.0
    %621 = vmatpush.xpose.msra.mxu0 0.0
    %622 = vmatpush.xpose.msra.mxu0 0.0
    %623 = vmatpush.xpose.msra.mxu0 %v606
    %624 = vmatmul.f32.gmra.mxu0 %v604
    %v625 = vpop.f32.mrf.mxu0
    %v626 = vadd.f32 0.0, %v625
    %627 = vdwg.mxu0
    %v628 = vmul.f32 %v542, 0.25
    %v629 = vmul.f32 %v570, 0.25
    %v630 = vmul.f32 %v598, 0.25
    %v631 = vmul.f32 %v626, 0.25
    %v632 = vadd.f32 %v628, %v355
    %v633 = vadd.f32 %v629, %v356
    %v634 = vadd.f32 %v630, %v357
    %v635 = vadd.f32 %v631, %v358
    %v636 = vsel %vm367, %v632, -inf
    %637 = vmax.xlane.f32.xlu0 %v636
    %v638 = vpop.xlane.xlu0 %637
    %v639 = vsel %vm367, %v633, -inf
    %640 = vmax.xlane.f32.xlu0 %v639
    %v641 = vpop.xlane.xlu0 %640
    %v642 = vsel %vm367, %v634, -inf
    %643 = vmax.xlane.f32.xlu0 %v642
    %v644 = vpop.xlane.xlu0 %643
    %v645 = vsel %vm367, %v635, -inf
    %646 = vmax.xlane.f32.xlu0 %v645
    %v647 = vpop.xlane.xlu0 %646
    %v648 = vsub.f32 %v632, %v638
    %v649 = vsub.f32 %v633, %v641
    %v650 = vsub.f32 %v634, %v644
    %v651 = vsub.f32 %v635, %v647
    %v652 = vmul.f32 %v648, 1.442695
    %v653 = vpow.pop %v652
    %v654 = vmul.f32 %v649, 1.442695
    %v655 = vpow.pop %v654
    %v656 = vmul.f32 %v650, 1.442695
    %v657 = vpow.pop %v656
    %v658 = vmul.f32 %v651, 1.442695
    %v659 = vpow.pop %v658
    %v660 = vsel %vm367, %v653, 0.0
    %661 = vadd.xlane.f32.xlu0 %v660
    %v662 = vpop.xlane.xlu0 %661
    %v663 = vsel %vm367, %v655, 0.0
    %664 = vadd.xlane.f32.xlu0 %v663
    %v665 = vpop.xlane.xlu0 %664
    %v666 = vsel %vm367, %v657, 0.0
    %667 = vadd.xlane.f32.xlu0 %v666
    %v668 = vpop.xlane.xlu0 %667
    %v669 = vsel %vm367, %v659, 0.0
    %670 = vadd.xlane.f32.xlu0 %v669
    %v671 = vpop.xlane.xlu0 %670
    %v672 = vrcp.pop %v662
    %v673 = vrcp.pop %v665
    %v674 = vrcp.pop %v668
    %v675 = vrcp.pop %v671
    %v676 = vmul.f32 %v653, %v672
    %v677 = vmul.f32 %v655, %v673
    %v678 = vmul.f32 %v657, %v674
    %v679 = vmul.f32 %v659, %v675
    %680 = vrot.lane.b32.xlu0 %v227, 48
    %v681 = vpop.permute.xlu0 %680
    %v684 = vsel %vm367, %v676, 0
    %686 = vmatpush.msra.mxu0 0.0
    %687 = vmatpush.msra.mxu0 0.0
    %688 = vmatpush.msra.mxu0 0.0
    %689 = vmatpush.msra.mxu0 0.0
    %690 = vmatpush.msra.mxu0 0.0
    %691 = vmatpush.msra.mxu0 0.0
    %692 = vmatpush.msra.mxu0 0.0
    %693 = vmatpush.msra.mxu0 0.0
    %694 = vmatpush.msra.mxu0 0.0
    %695 = vmatpush.msra.mxu0 0.0
    %696 = vmatpush.msra.mxu0 0.0
    %697 = vmatpush.msra.mxu0 0.0
    %698 = vmatpush.msra.mxu0 0.0
    %699 = vmatpush.msra.mxu0 0.0
    %700 = vmatpush.msra.mxu0 0.0
    %701 = vmatpush.msra.mxu0 %v681
    %702 = vmatmul.f32.gmra.mxu0 %v684
    %v703 = vpop.f32.mrf.mxu0
    %v704 = vadd.f32 0.0, %v703
    %705 = vdwg.mxu0
    %706 = vrot.lane.b32.xlu0 %v230, 48
    %v707 = vpop.permute.xlu0 %706
    %v710 = vsel %vm367, %v677, 0
    %712 = vmatpush.msra.mxu0 0.0
    %713 = vmatpush.msra.mxu0 0.0
    %714 = vmatpush.msra.mxu0 0.0
    %715 = vmatpush.msra.mxu0 0.0
    %716 = vmatpush.msra.mxu0 0.0
    %717 = vmatpush.msra.mxu0 0.0
    %718 = vmatpush.msra.mxu0 0.0
    %719 = vmatpush.msra.mxu0 0.0
    %720 = vmatpush.msra.mxu0 0.0
    %721 = vmatpush.msra.mxu0 0.0
    %722 = vmatpush.msra.mxu0 0.0
    %723 = vmatpush.msra.mxu0 0.0
    %724 = vmatpush.msra.mxu0 0.0
    %725 = vmatpush.msra.mxu0 0.0
    %726 = vmatpush.msra.mxu0 0.0
    %727 = vmatpush.msra.mxu0 %v707
    %728 = vmatmul.f32.gmra.mxu0 %v710
    %v729 = vpop.f32.mrf.mxu0
    %v730 = vadd.f32 0.0, %v729
    %731 = vdwg.mxu0
    %732 = vrot.lane.b32.xlu0 %v233, 48
    %v733 = vpop.permute.xlu0 %732
    %v736 = vsel %vm367, %v678, 0
    %738 = vmatpush.msra.mxu0 0.0
    %739 = vmatpush.msra.mxu0 0.0
    %740 = vmatpush.msra.mxu0 0.0
    %741 = vmatpush.msra.mxu0 0.0
    %742 = vmatpush.msra.mxu0 0.0
    %743 = vmatpush.msra.mxu0 0.0
    %744 = vmatpush.msra.mxu0 0.0
    %745 = vmatpush.msra.mxu0 0.0
    %746 = vmatpush.msra.mxu0 0.0
    %747 = vmatpush.msra.mxu0 0.0
    %748 = vmatpush.msra.mxu0 0.0
    %749 = vmatpush.msra.mxu0 0.0
    %750 = vmatpush.msra.mxu0 0.0
    %751 = vmatpush.msra.mxu0 0.0
    %752 = vmatpush.msra.mxu0 0.0
    %753 = vmatpush.msra.mxu0 %v733
    %754 = vmatmul.f32.gmra.mxu0 %v736
    %v755 = vpop.f32.mrf.mxu0
    %v756 = vadd.f32 0.0, %v755
    %757 = vdwg.mxu0
    %758 = vrot.lane.b32.xlu0 %v236, 48
    %v759 = vpop.permute.xlu0 %758
    %v762 = vsel %vm367, %v679, 0
    %764 = vmatpush.msra.mxu0 0.0
    %765 = vmatpush.msra.mxu0 0.0
    %766 = vmatpush.msra.mxu0 0.0
    %767 = vmatpush.msra.mxu0 0.0
    %768 = vmatpush.msra.mxu0 0.0
    %769 = vmatpush.msra.mxu0 0.0
    %770 = vmatpush.msra.mxu0 0.0
    %771 = vmatpush.msra.mxu0 0.0
    %772 = vmatpush.msra.mxu0 0.0
    %773 = vmatpush.msra.mxu0 0.0
    %774 = vmatpush.msra.mxu0 0.0
    %775 = vmatpush.msra.mxu0 0.0
    %776 = vmatpush.msra.mxu0 0.0
    %777 = vmatpush.msra.mxu0 0.0
    %778 = vmatpush.msra.mxu0 0.0
    %779 = vmatpush.msra.mxu0 %v759
    %780 = vmatmul.f32.gmra.mxu0 %v762
    %v781 = vpop.f32.mrf.mxu0
    %v782 = vadd.f32 0.0, %v781
    %783 = vdwg.mxu0
    %v785 = vsel %vm245, %v704, 0
    %v788 = vsel %vm245, %v730, 0
    %v791 = vsel %vm245, %v756, 0
    %v794 = vsel %vm245, %v782, 0
    %796 = vmatpush.msra.mxu0 0.0
    %797 = vmatpush.msra.mxu0 0.0
    %798 = vmatpush.msra.mxu0 0.0
    %799 = vmatpush.msra.mxu0 0.0
    %800 = vmatpush.msra.mxu0 0.0
    %801 = vmatpush.msra.mxu0 0.0
    %802 = vmatpush.msra.mxu0 0.0
    %803 = vmatpush.msra.mxu0 0.0
    %804 = vmatpush.msra.mxu0 0.0
    %805 = vmatpush.msra.mxu0 0.0
    %806 = vmatpush.msra.mxu0 0.0
    %807 = vmatpush.msra.mxu0 0.0
    %808 = vmatpush.msra.mxu0 0.0
    %809 = vmatpush.msra.mxu0 0.0
    %810 = vmatpush.msra.mxu0 %v241
    %811 = vmatpush.msra.mxu0 %v240
    %812 = vmatmul.f32.gmra.mxu0 %v785
    %v813 = vpop.f32.mrf.mxu0
    %v814 = vadd.f32 0.0, %v813
    %815 = vmatmul.f32.gmra.mxu0 %v788
    %v816 = vpop.f32.mrf.mxu0
    %v817 = vadd.f32 0.0, %v816
    %818 = vmatmul.f32.gmra.mxu0 %v791
    %v819 = vpop.f32.mrf.mxu0
    %v820 = vadd.f32 0.0, %v819
    %821 = vmatmul.f32.gmra.mxu0 %v794
    %v822 = vpop.f32.mrf.mxu0
    %v823 = vadd.f32 0.0, %v822
    %824 = vdwg.mxu0
    %v826 = vsel %vm245, %v436, 0
    %v829 = vsel %vm245, %v462, 0
    %v832 = vsel %vm245, %v488, 0
    %v835 = vsel %vm245, %v514, 0
    %837 = vmatpush.msra.mxu0 0.0
    %838 = vmatpush.msra.mxu0 0.0
    %839 = vmatpush.msra.mxu0 0.0
    %840 = vmatpush.msra.mxu0 0.0
    %841 = vmatpush.msra.mxu0 0.0
    %842 = vmatpush.msra.mxu0 0.0
    %843 = vmatpush.msra.mxu0 0.0
    %844 = vmatpush.msra.mxu0 0.0
    %845 = vmatpush.msra.mxu0 0.0
    %846 = vmatpush.msra.mxu0 0.0
    %847 = vmatpush.msra.mxu0 0.0
    %848 = vmatpush.msra.mxu0 0.0
    %849 = vmatpush.msra.mxu0 0.0
    %850 = vmatpush.msra.mxu0 0.0
    %851 = vmatpush.msra.mxu0 %v239
    %852 = vmatpush.msra.mxu0 %v238
    %853 = vmatmul.f32.gmra.mxu0 %v826
    %v854 = vpop.f32.mrf.mxu0
    %v855 = vadd.f32 %v814, %v854
    %856 = vmatmul.f32.gmra.mxu0 %v829
    %v857 = vpop.f32.mrf.mxu0
    %v858 = vadd.f32 %v817, %v857
    %859 = vmatmul.f32.gmra.mxu0 %v832
    %v860 = vpop.f32.mrf.mxu0
    %v861 = vadd.f32 %v820, %v860
    %862 = vmatmul.f32.gmra.mxu0 %v835
    %v863 = vpop.f32.mrf.mxu0
    %v864 = vadd.f32 %v823, %v863
    %865 = vdwg.mxu0
    %v866 = vld [vmem:[%s7] sm:$0x1]
    %v868 = vperm.slane %v866, 0
    %v870 = vadd.f32 %v855, %v868
    %v871 = vadd.f32 %v858, %v868
    %v872 = vadd.f32 %v861, %v868
    %v873 = vadd.f32 %v864, %v868
    %v874 = vadd.f32 %v180, %v870
    %v875 = vadd.f32 %v181, %v871
    %v876 = vadd.f32 %v182, %v872
    %v877 = vadd.f32 %v183, %v873
    %v878 = vld [vmem:[%s8] sm:$0x1]
    %v879 = vld [vmem:[%s9] sm:$0x1]
    %v880 = vsel %vm74, %v874, 0.0
    %881 = vadd.xlane.f32.xlu0 %v880
    %v882 = vpop.xlane.xlu0 %881
    %v883 = vsel %vm74, %v875, 0.0
    %884 = vadd.xlane.f32.xlu0 %v883
    %v885 = vpop.xlane.xlu0 %884
    %v886 = vsel %vm74, %v876, 0.0
    %887 = vadd.xlane.f32.xlu0 %v886
    %v888 = vpop.xlane.xlu0 %887
    %v889 = vsel %vm74, %v877, 0.0
    %890 = vadd.xlane.f32.xlu0 %v889
    %v891 = vpop.xlane.xlu0 %890
    %v892 = vmul.f32 %v882, %v93
    %v893 = vmul.f32 %v885, %v93
    %v894 = vmul.f32 %v888, %v93
    %v895 = vmul.f32 %v891, %v93
    %v896 = vsub.f32 %v874, %v892
    %v897 = vsub.f32 %v875, %v893
    %v898 = vsub.f32 %v876, %v894
    %v899 = vsub.f32 %v877, %v895
    %v900 = vmul.f32 %v896, %v896
    %v901 = vmul.f32 %v897, %v897
    %v902 = vmul.f32 %v898, %v898
    %v903 = vmul.f32 %v899, %v899
    %v904 = vsel %vm74, %v900, 0.0
    %905 = vadd.xlane.f32.xlu0 %v904
    %v906 = vpop.xlane.xlu0 %905
    %v907 = vsel %vm74, %v901, 0.0
    %908 = vadd.xlane.f32.xlu0 %v907
    %v909 = vpop.xlane.xlu0 %908
    %v910 = vsel %vm74, %v902, 0.0
    %911 = vadd.xlane.f32.xlu0 %v910
    %v912 = vpop.xlane.xlu0 %911
    %v913 = vsel %vm74, %v903, 0.0
    %914 = vadd.xlane.f32.xlu0 %v913
    %v915 = vpop.xlane.xlu0 %914
    %v916 = vmul.f32 %v906, %v93
    %v917 = vmul.f32 %v909, %v93
    %v918 = vmul.f32 %v912, %v93
    %v919 = vmul.f32 %v915, %v93
    %v920 = vadd.f32 %v916, 1e-12
    %v921 = vadd.f32 %v917, 1e-12
    %v922 = vadd.f32 %v918, 1e-12
    %v923 = vadd.f32 %v919, 1e-12
    %v924 = vrsqrt.pop %v920
    %v925 = vmul.f32 %v924, %v920
    %v926 = vmul.f32 %v925, %v924
    %v927 = vmul.f32 0.5, %v926
    %v928 = vsub.f32 1.5, %v927
    %v929 = vmul.f32 %v924, %v928
    %vm930 = vweird.f32 %v920
    %vm931 = vweird.f32 %v924
    %vm932 = vmor %vm930, %vm931
    %v933 = vsel %vm932, %v924, %v929
    %v934 = vrsqrt.pop %v921
    %v935 = vmul.f32 %v934, %v921
    %v936 = vmul.f32 %v935, %v934
    %v937 = vmul.f32 0.5, %v936
    %v938 = vsub.f32 1.5, %v937
    %v939 = vmul.f32 %v934, %v938
    %vm940 = vweird.f32 %v921
    %vm941 = vweird.f32 %v934
    %vm942 = vmor %vm940, %vm941
    %v943 = vsel %vm942, %v934, %v939
    %v944 = vrsqrt.pop %v922
    %v945 = vmul.f32 %v944, %v922
    %v946 = vmul.f32 %v945, %v944
    %v947 = vmul.f32 0.5, %v946
    %v948 = vsub.f32 1.5, %v947
    %v949 = vmul.f32 %v944, %v948
    %vm950 = vweird.f32 %v922
    %vm951 = vweird.f32 %v944
    %vm952 = vmor %vm950, %vm951
    %v953 = vsel %vm952, %v944, %v949
    %v954 = vrsqrt.pop %v923
    %v955 = vmul.f32 %v954, %v923
    %v956 = vmul.f32 %v955, %v954
    %v957 = vmul.f32 0.5, %v956
    %v958 = vsub.f32 1.5, %v957
    %v959 = vmul.f32 %v954, %v958
    %vm960 = vweird.f32 %v923
    %vm961 = vweird.f32 %v954
    %vm962 = vmor %vm960, %vm961
    %v963 = vsel %vm962, %v954, %v959
    %v964 = vmul.f32 %v896, %v933
    %v965 = vmul.f32 %v897, %v943
    %v966 = vmul.f32 %v898, %v953
    %v967 = vmul.f32 %v899, %v963
    %v969 = vperm.slane %v878, 0
    %v971 = vmul.f32 %v964, %v969
    %v972 = vmul.f32 %v965, %v969
    %v973 = vmul.f32 %v966, %v969
    %v974 = vmul.f32 %v967, %v969
    %v976 = vperm.slane %v879, 0
    %v978 = vadd.f32 %v971, %v976
    %v979 = vadd.f32 %v972, %v976
    %v980 = vadd.f32 %v973, %v976
    %v981 = vadd.f32 %v974, %v976
    %v982 = vld [vmem:[%s10] sm:$0xff]
    %v983 = vld [vmem:[%s10 + $0x8] sm:$0xff]
    %v984 = vld [vmem:[%s10 + $0x10] sm:$0xff]
    %v985 = vld [vmem:[%s10 + $0x18] sm:$0xff]
    %v986 = vld [vmem:[%s11] sm:$0x1]
    %v988 = vperm.slane %v986, 0
    %v991 = vsel %vm74, %v978, 0
    %v994 = vsel %vm74, %v979, 0
    %v997 = vsel %vm74, %v980, 0
    %v1000 = vsel %vm74, %v981, 0
    %1002 = vmatpush.msra.mxu0 0.0
    %1003 = vmatpush.msra.mxu0 0.0
    %1004 = vmatpush.msra.mxu0 0.0
    %1005 = vmatpush.msra.mxu0 0.0
    %1006 = vmatpush.msra.mxu0 0.0
    %1007 = vmatpush.msra.mxu0 0.0
    %1008 = vmatpush.msra.mxu0 0.0
    %1009 = vmatpush.msra.mxu0 0.0
    %1010 = vmatpush.msra.mxu0 0.0
    %1011 = vmatpush.msra.mxu0 0.0
    %1012 = vmatpush.msra.mxu0 0.0
    %1013 = vmatpush.msra.mxu0 0.0
    %1014 = vmatpush.msra.mxu0 %v985
    %1015 = vmatpush.msra.mxu0 %v984
    %1016 = vmatpush.msra.mxu0 %v983
    %1017 = vmatpush.msra.mxu0 %v982
    %1018 = vmatmul.f32.gmra.mxu0 %v991
    %v1019 = vpop.f32.mrf.mxu0
    %v1020 = vadd.f32 %v988, %v1019
    %1021 = vmatmul.f32.gmra.mxu0 %v994
    %v1022 = vpop.f32.mrf.mxu0
    %v1023 = vadd.f32 %v988, %v1022
    %1024 = vmatmul.f32.gmra.mxu0 %v997
    %v1025 = vpop.f32.mrf.mxu0
    %v1026 = vadd.f32 %v988, %v1025
    %1027 = vmatmul.f32.gmra.mxu0 %v1000
    %v1028 = vpop.f32.mrf.mxu0
    %v1029 = vadd.f32 %v988, %v1028
    %1030 = vdwg.mxu0
    %v1031 = vmul.f32 %v1020, 0.5
    %v1032 = vmul.f32 %v1023, 0.5
    %v1033 = vmul.f32 %v1026, 0.5
    %v1034 = vmul.f32 %v1029, 0.5
    %v1035 = vmul.f32 %v1020, 0.044715
    %v1036 = vmul.f32 %v1023, 0.044715
    %v1037 = vmul.f32 %v1026, 0.044715
    %v1038 = vmul.f32 %v1029, 0.044715
    %v1039 = vmul.f32 %v1035, %v1020
    %v1040 = vmul.f32 %v1036, %v1023
    %v1041 = vmul.f32 %v1037, %v1026
    %v1042 = vmul.f32 %v1038, %v1029
    %v1043 = vmul.f32 %v1039, %v1020
    %v1044 = vmul.f32 %v1040, %v1023
    %v1045 = vmul.f32 %v1041, %v1026
    %v1046 = vmul.f32 %v1042, %v1029
    %v1047 = vadd.f32 %v1020, %v1043
    %v1048 = vadd.f32 %v1023, %v1044
    %v1049 = vadd.f32 %v1026, %v1045
    %v1050 = vadd.f32 %v1029, %v1046
    %v1051 = vmul.f32 %v1047, 0.7978846
    %v1052 = vmul.f32 %v1048, 0.7978846
    %v1053 = vmul.f32 %v1049, 0.7978846
    %v1054 = vmul.f32 %v1050, 0.7978846
    %v1055 = vtanh.pop %v1051
    %v1056 = vtanh.pop %v1052
    %v1057 = vtanh.pop %v1053
    %v1058 = vtanh.pop %v1054
    %v1059 = vadd.f32 %v1055, 1.0
    %v1060 = vadd.f32 %v1056, 1.0
    %v1061 = vadd.f32 %v1057, 1.0
    %v1062 = vadd.f32 %v1058, 1.0
    %v1063 = vmul.f32 %v1031, %v1059
    %v1064 = vmul.f32 %v1032, %v1060
    %v1065 = vmul.f32 %v1033, %v1061
    %v1066 = vmul.f32 %v1034, %v1062
    %v1067 = vld [vmem:[%s12] sm:$0xff]
    %v1068 = vld [vmem:[%s12 + $0x8] sm:$0xff]
    %v1069 = vld [vmem:[%s12 + $0x10] sm:$0xff]
    %v1070 = vld [vmem:[%s12 + $0x18] sm:$0xff]
    %v1071 = vld [vmem:[%s12 + $0x20] sm:$0xff]
    %v1072 = vld [vmem:[%s12 + $0x28] sm:$0xff]
    %v1073 = vld [vmem:[%s12 + $0x30] sm:$0xff]
    %v1074 = vld [vmem:[%s12 + $0x38] sm:$0xff]
    %v1075 = vld [vmem:[%s13] sm:$0x1]
    %v1077 = vperm.slane %v1075, 0
    %vm1079 = vcmask 523264
    %v1081 = vsel %vm1079, %v1063, 0
    %v1084 = vsel %vm1079, %v1064, 0
    %v1087 = vsel %vm1079, %v1065, 0
    %v1090 = vsel %vm1079, %v1066, 0
    %1092 = vmatpush.msra.mxu0 0.0
    %1093 = vmatpush.msra.mxu0 0.0
    %1094 = vmatpush.msra.mxu0 0.0
    %1095 = vmatpush.msra.mxu0 0.0
    %1096 = vmatpush.msra.mxu0 0.0
    %1097 = vmatpush.msra.mxu0 0.0
    %1098 = vmatpush.msra.mxu0 0.0
    %1099 = vmatpush.msra.mxu0 0.0
    %1100 = vmatpush.msra.mxu0 %v1074
    %1101 = vmatpush.msra.mxu0 %v1073
    %1102 = vmatpush.msra.mxu0 %v1072
    %1103 = vmatpush.msra.mxu0 %v1071
    %1104 = vmatpush.msra.mxu0 %v1070
    %1105 = vmatpush.msra.mxu0 %v1069
    %1106 = vmatpush.msra.mxu0 %v1068
    %1107 = vmatpush.msra.mxu0 %v1067
    %1108 = vmatmul.f32.gmra.mxu0 %v1081
    %v1109 = vpop.f32.mrf.mxu0
    %v1110 = vadd.f32 %v1077, %v1109
    %1111 = vmatmul.f32.gmra.mxu0 %v1084
    %v1112 = vpop.f32.mrf.mxu0
    %v1113 = vadd.f32 %v1077, %v1112
    %1114 = vmatmul.f32.gmra.mxu0 %v1087
    %v1115 = vpop.f32.mrf.mxu0
    %v1116 = vadd.f32 %v1077, %v1115
    %1117 = vmatmul.f32.gmra.mxu0 %v1090
    %v1118 = vpop.f32.mrf.mxu0
    %v1119 = vadd.f32 %v1077, %v1118
    %1120 = vdwg.mxu0
    %v1121 = vadd.f32 %v978, %v1110
    %v1122 = vadd.f32 %v979, %v1113
    %v1123 = vadd.f32 %v980, %v1116
    %v1124 = vadd.f32 %v981, %v1119
    %v1125 = vld [vmem:[%s14] sm:$0x1]
    %v1126 = vld [vmem:[%s15] sm:$0x1]
    %v1127 = vsel %vm74, %v1121, 0.0
    %1128 = vadd.xlane.f32.xlu0 %v1127
    %v1129 = vpop.xlane.xlu0 %1128
    %v1130 = vsel %vm74, %v1122, 0.0
    %1131 = vadd.xlane.f32.xlu0 %v1130
    %v1132 = vpop.xlane.xlu0 %1131
    %v1133 = vsel %vm74, %v1123, 0.0
    %1134 = vadd.xlane.f32.xlu0 %v1133
    %v1135 = vpop.xlane.xlu0 %1134
    %v1136 = vsel %vm74, %v1124, 0.0
    %1137 = vadd.xlane.f32.xlu0 %v1136
    %v1138 = vpop.xlane.xlu0 %1137
    %v1139 = vmul.f32 %v1129, %v93
    %v1140 = vmul.f32 %v1132, %v93
    %v1141 = vmul.f32 %v1135, %v93
    %v1142 = vmul.f32 %v1138, %v93
    %v1143 = vsub.f32 %v1121, %v1139
    %v1144 = vsub.f32 %v1122, %v1140
    %v1145 = vsub.f32 %v1123, %v1141
    %v1146 = vsub.f32 %v1124, %v1142
    %v1147 = vmul.f32 %v1143, %v1143
    %v1148 = vmul.f32 %v1144, %v1144
    %v1149 = vmul.f32 %v1145, %v1145
    %v1150 = vmul.f32 %v1146, %v1146
    %v1151 = vsel %vm74, %v1147, 0.0
    %1152 = vadd.xlane.f32.xlu0 %v1151
    %v1153 = vpop.xlane.xlu0 %1152
    %v1154 = vsel %vm74, %v1148, 0.0
    %1155 = vadd.xlane.f32.xlu0 %v1154
    %v1156 = vpop.xlane.xlu0 %1155
    %v1157 = vsel %vm74, %v1149, 0.0
    %1158 = vadd.xlane.f32.xlu0 %v1157
    %v1159 = vpop.xlane.xlu0 %1158
    %v1160 = vsel %vm74, %v1150, 0.0
    %1161 = vadd.xlane.f32.xlu0 %v1160
    %v1162 = vpop.xlane.xlu0 %1161
    %v1163 = vmul.f32 %v1153, %v93
    %v1164 = vmul.f32 %v1156, %v93
    %v1165 = vmul.f32 %v1159, %v93
    %v1166 = vmul.f32 %v1162, %v93
    %v1167 = vadd.f32 %v1163, 1e-12
    %v1168 = vadd.f32 %v1164, 1e-12
    %v1169 = vadd.f32 %v1165, 1e-12
    %v1170 = vadd.f32 %v1166, 1e-12
    %v1171 = vrsqrt.pop %v1167
    %v1172 = vmul.f32 %v1171, %v1167
    %v1173 = vmul.f32 %v1172, %v1171
    %v1174 = vmul.f32 0.5, %v1173
    %v1175 = vsub.f32 1.5, %v1174
    %v1176 = vmul.f32 %v1171, %v1175
    %vm1177 = vweird.f32 %v1167
    %vm1178 = vweird.f32 %v1171
    %vm1179 = vmor %vm1177, %vm1178
    %v1180 = vsel %vm1179, %v1171, %v1176
    %v1181 = vrsqrt.pop %v1168
    %v1182 = vmul.f32 %v1181, %v1168
    %v1183 = vmul.f32 %v1182, %v1181
    %v1184 = vmul.f32 0.5, %v1183
    %v1185 = vsub.f32 1.5, %v1184
    %v1186 = vmul.f32 %v1181, %v1185
    %vm1187 = vweird.f32 %v1168
    %vm1188 = vweird.f32 %v1181
    %vm1189 = vmor %vm1187, %vm1188
    %v1190 = vsel %vm1189, %v1181, %v1186
    %v1191 = vrsqrt.pop %v1169
    %v1192 = vmul.f32 %v1191, %v1169
    %v1193 = vmul.f32 %v1192, %v1191
    %v1194 = vmul.f32 0.5, %v1193
    %v1195 = vsub.f32 1.5, %v1194
    %v1196 = vmul.f32 %v1191, %v1195
    %vm1197 = vweird.f32 %v1169
    %vm1198 = vweird.f32 %v1191
    %vm1199 = vmor %vm1197, %vm1198
    %v1200 = vsel %vm1199, %v1191, %v1196
    %v1201 = vrsqrt.pop %v1170
    %v1202 = vmul.f32 %v1201, %v1170
    %v1203 = vmul.f32 %v1202, %v1201
    %v1204 = vmul.f32 0.5, %v1203
    %v1205 = vsub.f32 1.5, %v1204
    %v1206 = vmul.f32 %v1201, %v1205
    %vm1207 = vweird.f32 %v1170
    %vm1208 = vweird.f32 %v1201
    %vm1209 = vmor %vm1207, %vm1208
    %v1210 = vsel %vm1209, %v1201, %v1206
    %v1211 = vmul.f32 %v1143, %v1180
    %v1212 = vmul.f32 %v1144, %v1190
    %v1213 = vmul.f32 %v1145, %v1200
    %v1214 = vmul.f32 %v1146, %v1210
    %v1216 = vperm.slane %v1125, 0
    %v1218 = vmul.f32 %v1211, %v1216
    %v1219 = vmul.f32 %v1212, %v1216
    %v1220 = vmul.f32 %v1213, %v1216
    %v1221 = vmul.f32 %v1214, %v1216
    %v1223 = vperm.slane %v1126, 0
    %v1225 = vadd.f32 %v1218, %v1223
    %v1226 = vadd.f32 %v1219, %v1223
    %v1227 = vadd.f32 %v1220, %v1223
    %v1228 = vadd.f32 %v1221, %v1223
    %s1229 = scalar_lea.vmem %s4, 32
    %v1230 = vld [vmem:[%s1229] sm:$0xff]
    %v1231 = vld [vmem:[%s1229 + $0x8] sm:$0xff]
    %v1232 = vld [vmem:[%s1229 + $0x10] sm:$0xff]
    %v1233 = vld [vmem:[%s1229 + $0x18] sm:$0xff]
    %s1234 = scalar_lea.vmem %s5, 1
    %v1235 = vld [vmem:[%s1234] sm:$0x1]
    %v1237 = vperm.slane %v1235, 0
    %v1240 = vsel %vm74, %v1225, 0
    %v1243 = vsel %vm74, %v1226, 0
    %v1246 = vsel %vm74, %v1227, 0
    %v1249 = vsel %vm74, %v1228, 0
    %1251 = vmatpush.msra.mxu0 0.0
    %1252 = vmatpush.msra.mxu0 0.0
    %1253 = vmatpush.msra.mxu0 0.0
    %1254 = vmatpush.msra.mxu0 0.0
    %1255 = vmatpush.msra.mxu0 0.0
    %1256 = vmatpush.msra.mxu0 0.0
    %1257 = vmatpush.msra.mxu0 0.0
    %1258 = vmatpush.msra.mxu0 0.0
    %1259 = vmatpush.msra.mxu0 0.0
    %1260 = vmatpush.msra.mxu0 0.0
    %1261 = vmatpush.msra.mxu0 0.0
    %1262 = vmatpush.msra.mxu0 0.0
    %1263 = vmatpush.msra.mxu0 %v1233
    %1264 = vmatpush.msra.mxu0 %v1232
    %1265 = vmatpush.msra.mxu0 %v1231
    %1266 = vmatpush.msra.mxu0 %v1230
    %1267 = vmatmul.f32.gmra.mxu0 %v1240
    %v1268 = vpop.f32.mrf.mxu0
    %v1269 = vadd.f32 %v1237, %v1268
    %1270 = vmatmul.f32.gmra.mxu0 %v1243
    %v1271 = vpop.f32.mrf.mxu0
    %v1272 = vadd.f32 %v1237, %v1271
    %1273 = vmatmul.f32.gmra.mxu0 %v1246
    %v1274 = vpop.f32.mrf.mxu0
    %v1275 = vadd.f32 %v1237, %v1274
    %1276 = vmatmul.f32.gmra.mxu0 %v1249
    %v1277 = vpop.f32.mrf.mxu0
    %v1278 = vadd.f32 %v1237, %v1277
    %1279 = vdwg.mxu0
    %s1280 = scalar_lea.vmem %s6, 32
    %v1281 = vld [vmem:[%s1280] sm:$0xff]
    %v1282 = vld [vmem:[%s1280 + $0x8] sm:$0xff]
    %v1283 = vld [vmem:[%s1280 + $0x10] sm:$0xff]
    %v1284 = vld [vmem:[%s1280 + $0x18] sm:$0xff]
    %1286 = vrot.lane.b32.xlu0 %v1269, 96
    %v1287 = vpop.permute.xlu0 %1286
    %v1288 = vsel %vm245, %v1269, 0
    %v1290 = vsel %vm245, %v1287, 0
    %1292 = vmatpush.xpose.msra.mxu0 0.0
    %1293 = vmatpush.xpose.msra.mxu0 0.0
    %1294 = vmatpush.xpose.msra.mxu0 0.0
    %1295 = vmatpush.xpose.msra.mxu0 0.0
    %1296 = vmatpush.xpose.msra.mxu0 0.0
    %1297 = vmatpush.xpose.msra.mxu0 0.0
    %1298 = vmatpush.xpose.msra.mxu0 0.0
    %1299 = vmatpush.xpose.msra.mxu0 0.0
    %1300 = vmatpush.xpose.msra.mxu0 0.0
    %1301 = vmatpush.xpose.msra.mxu0 0.0
    %1302 = vmatpush.xpose.msra.mxu0 0.0
    %1303 = vmatpush.xpose.msra.mxu0 0.0
    %1304 = vmatpush.xpose.msra.mxu0 0.0
    %1305 = vmatpush.xpose.msra.mxu0 0.0
    %1306 = vmatpush.xpose.msra.mxu0 0.0
    %1307 = vmatpush.xpose.msra.mxu0 %v1290
    %1308 = vmatmul.f32.gmra.mxu0 %v1288
    %v1309 = vpop.f32.mrf.mxu0
    %v1310 = vadd.f32 0.0, %v1309
    %1311 = vdwg.mxu0
    %1313 = vrot.lane.b32.xlu0 %v1272, 96
    %v1314 = vpop.permute.xlu0 %1313
    %v1315 = vsel %vm245, %v1272, 0
    %v1317 = vsel %vm245, %v1314, 0
    %1319 = vmatpush.xpose.msra.mxu0 0.0
    %1320 = vmatpush.xpose.msra.mxu0 0.0
    %1321 = vmatpush.xpose.msra.mxu0 0.0
    %1322 = vmatpush.xpose.msra.mxu0 0.0
    %1323 = vmatpush.xpose.msra.mxu0 0.0
    %1324 = vmatpush.xpose.msra.mxu0 0.0
    %1325 = vmatpush.xpose.msra.mxu0 0.0
    %1326 = vmatpush.xpose.msra.mxu0 0.0
    %1327 = vmatpush.xpose.msra.mxu0 0.0
    %1328 = vmatpush.xpose.msra.mxu0 0.0
    %1329 = vmatpush.xpose.msra.mxu0 0.0
    %1330 = vmatpush.xpose.msra.mxu0 0.0
    %1331 = vmatpush.xpose.msra.mxu0 0.0
    %1332 = vmatpush.xpose.msra.mxu0 0.0
    %1333 = vmatpush.xpose.msra.mxu0 0.0
    %1334 = vmatpush.xpose.msra.mxu0 %v1317
    %1335 = vmatmul.f32.gmra.mxu0 %v1315
    %v1336 = vpop.f32.mrf.mxu0
    %v1337 = vadd.f32 0.0, %v1336
    %1338 = vdwg.mxu0
    %1340 = vrot.lane.b32.xlu0 %v1275, 96
    %v1341 = vpop.permute.xlu0 %1340
    %v1342 = vsel %vm245, %v1275, 0
    %v1344 = vsel %vm245, %v1341, 0
    %1346 = vmatpush.xpose.msra.mxu0 0.0
    %1347 = vmatpush.xpose.msra.mxu0 0.0
    %1348 = vmatpush.xpose.msra.mxu0 0.0
    %1349 = vmatpush.xpose.msra.mxu0 0.0
    %1350 = vmatpush.xpose.msra.mxu0 0.0
    %1351 = vmatpush.xpose.msra.mxu0 0.0
    %1352 = vmatpush.xpose.msra.mxu0 0.0
    %1353 = vmatpush.xpose.msra.mxu0 0.0
    %1354 = vmatpush.xpose.msra.mxu0 0.0
    %1355 = vmatpush.xpose.msra.mxu0 0.0
    %1356 = vmatpush.xpose.msra.mxu0 0.0
    %1357 = vmatpush.xpose.msra.mxu0 0.0
    %1358 = vmatpush.xpose.msra.mxu0 0.0
    %1359 = vmatpush.xpose.msra.mxu0 0.0
    %1360 = vmatpush.xpose.msra.mxu0 0.0
    %1361 = vmatpush.xpose.msra.mxu0 %v1344
    %1362 = vmatmul.f32.gmra.mxu0 %v1342
    %v1363 = vpop.f32.mrf.mxu0
    %v1364 = vadd.f32 0.0, %v1363
    %1365 = vdwg.mxu0
    %1367 = vrot.lane.b32.xlu0 %v1278, 96
    %v1368 = vpop.permute.xlu0 %1367
    %v1369 = vsel %vm245, %v1278, 0
    %v1371 = vsel %vm245, %v1368, 0
    %1373 = vmatpush.xpose.msra.mxu0 0.0
    %1374 = vmatpush.xpose.msra.mxu0 0.0
    %1375 = vmatpush.xpose.msra.mxu0 0.0
    %1376 = vmatpush.xpose.msra.mxu0 0.0
    %1377 = vmatpush.xpose.msra.mxu0 0.0
    %1378 = vmatpush.xpose.msra.mxu0 0.0
    %1379 = vmatpush.xpose.msra.mxu0 0.0
    %1380 = vmatpush.xpose.msra.mxu0 0.0
    %1381 = vmatpush.xpose.msra.mxu0 0.0
    %1382 = vmatpush.xpose.msra.mxu0 0.0
    %1383 = vmatpush.xpose.msra.mxu0 0.0
    %1384 = vmatpush.xpose.msra.mxu0 0.0
    %1385 = vmatpush.xpose.msra.mxu0 0.0
    %1386 = vmatpush.xpose.msra.mxu0 0.0
    %1387 = vmatpush.xpose.msra.mxu0 0.0
    %1388 = vmatpush.xpose.msra.mxu0 %v1371
    %1389 = vmatmul.f32.gmra.mxu0 %v1369
    %v1390 = vpop.f32.mrf.mxu0
    %v1391 = vadd.f32 0.0, %v1390
    %1392 = vdwg.mxu0
    %v1393 = vmul.f32 %v1310, 0.25
    %v1394 = vmul.f32 %v1337, 0.25
    %v1395 = vmul.f32 %v1364, 0.25
    %v1396 = vmul.f32 %v1391, 0.25
    %v1397 = vadd.f32 %v1393, %v355
    %v1398 = vadd.f32 %v1394, %v356
    %v1399 = vadd.f32 %v1395, %v357
    %v1400 = vadd.f32 %v1396, %v358
    %v1401 = vsel %vm367, %v1397, -inf
    %1402 = vmax.xlane.f32.xlu0 %v1401
    %v1403 = vpop.xlane.xlu0 %1402
    %v1404 = vsel %vm367, %v1398, -inf
    %1405 = vmax.xlane.f32.xlu0 %v1404
    %v1406 = vpop.xlane.xlu0 %1405
    %v1407 = vsel %vm367, %v1399, -inf
    %1408 = vmax.xlane.f32.xlu0 %v1407
    %v1409 = vpop.xlane.xlu0 %1408
    %v1410 = vsel %vm367, %v1400, -inf
    %1411 = vmax.xlane.f32.xlu0 %v1410
    %v1412 = vpop.xlane.xlu0 %1411
    %v1413 = vsub.f32 %v1397, %v1403
    %v1414 = vsub.f32 %v1398, %v1406
    %v1415 = vsub.f32 %v1399, %v1409
    %v1416 = vsub.f32 %v1400, %v1412
    %v1417 = vmul.f32 %v1413, 1.442695
    %v1418 = vpow.pop %v1417
    %v1419 = vmul.f32 %v1414, 1.442695
    %v1420 = vpow.pop %v1419
    %v1421 = vmul.f32 %v1415, 1.442695
    %v1422 = vpow.pop %v1421
    %v1423 = vmul.f32 %v1416, 1.442695
    %v1424 = vpow.pop %v1423
    %v1425 = vsel %vm367, %v1418, 0.0
    %1426 = vadd.xlane.f32.xlu0 %v1425
    %v1427 = vpop.xlane.xlu0 %1426
    %v1428 = vsel %vm367, %v1420, 0.0
    %1429 = vadd.xlane.f32.xlu0 %v1428
    %v1430 = vpop.xlane.xlu0 %1429
    %v1431 = vsel %vm367, %v1422, 0.0
    %1432 = vadd.xlane.f32.xlu0 %v1431
    %v1433 = vpop.xlane.xlu0 %1432
    %v1434 = vsel %vm367, %v1424, 0.0
    %1435 = vadd.xlane.f32.xlu0 %v1434
    %v1436 = vpop.xlane.xlu0 %1435
    %v1437 = vrcp.pop %v1427
    %v1438 = vrcp.pop %v1430
    %v1439 = vrcp.pop %v1433
    %v1440 = vrcp.pop %v1436
    %v1441 = vmul.f32 %v1418, %v1437
    %v1442 = vmul.f32 %v1420, %v1438
    %v1443 = vmul.f32 %v1422, %v1439
    %v1444 = vmul.f32 %v1424, %v1440
    %1445 = vrot.lane.b32.xlu0 %v1269, 64
    %v1446 = vpop.permute.xlu0 %1445
    %v1449 = vsel %vm367, %v1441, 0
    %1451 = vmatpush.msra.mxu0 0.0
    %1452 = vmatpush.msra.mxu0 0.0
    %1453 = vmatpush.msra.mxu0 0.0
    %1454 = vmatpush.msra.mxu0 0.0
    %1455 = vmatpush.msra.mxu0 0.0
    %1456 = vmatpush.msra.mxu0 0.0
    %1457 = vmatpush.msra.mxu0 0.0
    %1458 = vmatpush.msra.mxu0 0.0
    %1459 = vmatpush.msra.mxu0 0.0
    %1460 = vmatpush.msra.mxu0 0.0
    %1461 = vmatpush.msra.mxu0 0.0
    %1462 = vmatpush.msra.mxu0 0.0
    %1463 = vmatpush.msra.mxu0 0.0
    %1464 = vmatpush.msra.mxu0 0.0
    %1465 = vmatpush.msra.mxu0 0.0
    %1466 = vmatpush.msra.mxu0 %v1446
    %1467 = vmatmul.f32.gmra.mxu0 %v1449
    %v1468 = vpop.f32.mrf.mxu0
    %v1469 = vadd.f32 0.0, %v1468
    %1470 = vdwg.mxu0
    %1471 = vrot.lane.b32.xlu0 %v1272, 64
    %v1472 = vpop.permute.xlu0 %1471
    %v1475 = vsel %vm367, %v1442, 0
    %1477 = vmatpush.msra.mxu0 0.0
    %1478 = vmatpush.msra.mxu0 0.0
    %1479 = vmatpush.msra.mxu0 0.0
    %1480 = vmatpush.msra.mxu0 0.0
    %1481 = vmatpush.msra.mxu0 0.0
    %1482 = vmatpush.msra.mxu0 0.0
    %1483 = vmatpush.msra.mxu0 0.0
    %1484 = vmatpush.msra.mxu0 0.0
    %1485 = vmatpush.msra.mxu0 0.0
    %1486 = vmatpush.msra.mxu0 0.0
    %1487 = vmatpush.msra.mxu0 0.0
    %1488 = vmatpush.msra.mxu0 0.0
    %1489 = vmatpush.msra.mxu0 0.0
    %1490 = vmatpush.msra.mxu0 0.0
    %1491 = vmatpush.msra.mxu0 0.0
    %1492 = vmatpush.msra.mxu0 %v1472
    %1493 = vmatmul.f32.gmra.mxu0 %v1475
    %v1494 = vpop.f32.mrf.mxu0
    %v1495 = vadd.f32 0.0, %v1494
    %1496 = vdwg.mxu0
    %1497 = vrot.lane.b32.xlu0 %v1275, 64
    %v1498 = vpop.permute.xlu0 %1497
    %v1501 = vsel %vm367, %v1443, 0
    %1503 = vmatpush.msra.mxu0 0.0
    %1504 = vmatpush.msra.mxu0 0.0
    %1505 = vmatpush.msra.mxu0 0.0
    %1506 = vmatpush.msra.mxu0 0.0
    %1507 = vmatpush.msra.mxu0 0.0
    %1508 = vmatpush.msra.mxu0 0.0
    %1509 = vmatpush.msra.mxu0 0.0
    %1510 = vmatpush.msra.mxu0 0.0
    %1511 = vmatpush.msra.mxu0 0.0
    %1512 = vmatpush.msra.mxu0 0.0
    %1513 = vmatpush.msra.mxu0 0.0
    %1514 = vmatpush.msra.mxu0 0.0
    %1515 = vmatpush.msra.mxu0 0.0
    %1516 = vmatpush.msra.mxu0 0.0
    %1517 = vmatpush.msra.mxu0 0.0
    %1518 = vmatpush.msra.mxu0 %v1498
    %1519 = vmatmul.f32.gmra.mxu0 %v1501
    %v1520 = vpop.f32.mrf.mxu0
    %v1521 = vadd.f32 0.0, %v1520
    %1522 = vdwg.mxu0
    %1523 = vrot.lane.b32.xlu0 %v1278, 64
    %v1524 = vpop.permute.xlu0 %1523
    %v1527 = vsel %vm367, %v1444, 0
    %1529 = vmatpush.msra.mxu0 0.0
    %1530 = vmatpush.msra.mxu0 0.0
    %1531 = vmatpush.msra.mxu0 0.0
    %1532 = vmatpush.msra.mxu0 0.0
    %1533 = vmatpush.msra.mxu0 0.0
    %1534 = vmatpush.msra.mxu0 0.0
    %1535 = vmatpush.msra.mxu0 0.0
    %1536 = vmatpush.msra.mxu0 0.0
    %1537 = vmatpush.msra.mxu0 0.0
    %1538 = vmatpush.msra.mxu0 0.0
    %1539 = vmatpush.msra.mxu0 0.0
    %1540 = vmatpush.msra.mxu0 0.0
    %1541 = vmatpush.msra.mxu0 0.0
    %1542 = vmatpush.msra.mxu0 0.0
    %1543 = vmatpush.msra.mxu0 0.0
    %1544 = vmatpush.msra.mxu0 %v1524
    %1545 = vmatmul.f32.gmra.mxu0 %v1527
    %v1546 = vpop.f32.mrf.mxu0
    %v1547 = vadd.f32 0.0, %v1546
    %1548 = vdwg.mxu0
    %1549 = vrot.lane.b32.xlu0 %v1269, 112
    %v1550 = vpop.permute.xlu0 %1549
    %1551 = vrot.lane.b32.xlu0 %v1269, 80
    %v1552 = vpop.permute.xlu0 %1551
    %v1553 = vsel %vm245, %v1550, 0
    %v1555 = vsel %vm245, %v1552, 0
    %1557 = vmatpush.xpose.msra.mxu0 0.0
    %1558 = vmatpush.xpose.msra.mxu0 0.0
    %1559 = vmatpush.xpose.msra.mxu0 0.0
    %1560 = vmatpush.xpose.msra.mxu0 0.0
    %1561 = vmatpush.xpose.msra.mxu0 0.0
    %1562 = vmatpush.xpose.msra.mxu0 0.0
    %1563 = vmatpush.xpose.msra.mxu0 0.0
    %1564 = vmatpush.xpose.msra.mxu0 0.0
    %1565 = vmatpush.xpose.msra.mxu0 0.0
    %1566 = vmatpush.xpose.msra.mxu0 0.0
    %1567 = vmatpush.xpose.msra.mxu0 0.0
    %1568 = vmatpush.xpose.msra.mxu0 0.0
    %1569 = vmatpush.xpose.msra.mxu0 0.0
    %1570 = vmatpush.xpose.msra.mxu0 0.0
    %1571 = vmatpush.xpose.msra.mxu0 0.0
    %1572 = vmatpush.xpose.msra.mxu0 %v1555
    %1573 = vmatmul.f32.gmra.mxu0 %v1553
    %v1574 = vpop.f32.mrf.mxu0
    %v1575 = vadd.f32 0.0, %v1574
    %1576 = vdwg.mxu0
    %1577 = vrot.lane.b32.xlu0 %v1272, 112
    %v1578 = vpop.permute.xlu0 %1577
    %1579 = vrot.lane.b32.xlu0 %v1272, 80
    %v1580 = vpop.permute.xlu0 %1579
    %v1581 = vsel %vm245, %v1578, 0
    %v1583 = vsel %vm245, %v1580, 0
    %1585 = vmatpush.xpose.msra.mxu0 0.0
    %1586 = vmatpush.xpose.msra.mxu0 0.0
    %1587 = vmatpush.xpose.msra.mxu0 0.0
    %1588 = vmatpush.xpose.msra.mxu0 0.0
    %1589 = vmatpush.xpose.msra.mxu0 0.0
    %1590 = vmatpush.xpose.msra.mxu0 0.0
    %1591 = vmatpush.xpose.msra.mxu0 0.0
    %1592 = vmatpush.xpose.msra.mxu0 0.0
    %1593 = vmatpush.xpose.msra.mxu0 0.0
    %1594 = vmatpush.xpose.msra.mxu0 0.0
    %1595 = vmatpush.xpose.msra.mxu0 0.0
    %1596 = vmatpush.xpose.msra.mxu0 0.0
    %1597 = vmatpush.xpose.msra.mxu0 0.0
    %1598 = vmatpush.xpose.msra.mxu0 0.0
    %1599 = vmatpush.xpose.msra.mxu0 0.0
    %1600 = vmatpush.xpose.msra.mxu0 %v1583
    %1601 = vmatmul.f32.gmra.mxu0 %v1581
    %v1602 = vpop.f32.mrf.mxu0
    %v1603 = vadd.f32 0.0, %v1602
    %1604 = vdwg.mxu0
    %1605 = vrot.lane.b32.xlu0 %v1275, 112
    %v1606 = vpop.permute.xlu0 %1605
    %1607 = vrot.lane.b32.xlu0 %v1275, 80
    %v1608 = vpop.permute.xlu0 %1607
    %v1609 = vsel %vm245, %v1606, 0
    %v1611 = vsel %vm245, %v1608, 0
    %1613 = vmatpush.xpose.msra.mxu0 0.0
    %1614 = vmatpush.xpose.msra.mxu0 0.0
    %1615 = vmatpush.xpose.msra.mxu0 0.0
    %1616 = vmatpush.xpose.msra.mxu0 0.0
    %1617 = vmatpush.xpose.msra.mxu0 0.0
    %1618 = vmatpush.xpose.msra.mxu0 0.0
    %1619 = vmatpush.xpose.msra.mxu0 0.0
    %1620 = vmatpush.xpose.msra.mxu0 0.0
    %1621 = vmatpush.xpose.msra.mxu0 0.0
    %1622 = vmatpush.xpose.msra.mxu0 0.0
    %1623 = vmatpush.xpose.msra.mxu0 0.0
    %1624 = vmatpush.xpose.msra.mxu0 0.0
    %1625 = vmatpush.xpose.msra.mxu0 0.0
    %1626 = vmatpush.xpose.msra.mxu0 0.0
    %1627 = vmatpush.xpose.msra.mxu0 0.0
    %1628 = vmatpush.xpose.msra.mxu0 %v1611
    %1629 = vmatmul.f32.gmra.mxu0 %v1609
    %v1630 = vpop.f32.mrf.mxu0
    %v1631 = vadd.f32 0.0, %v1630
    %1632 = vdwg.mxu0
    %1633 = vrot.lane.b32.xlu0 %v1278, 112
    %v1634 = vpop.permute.xlu0 %1633
    %1635 = vrot.lane.b32.xlu0 %v1278, 80
    %v1636 = vpop.permute.xlu0 %1635
    %v1637 = vsel %vm245, %v1634, 0
    %v1639 = vsel %vm245, %v1636, 0
    %1641 = vmatpush.xpose.msra.mxu0 0.0
    %1642 = vmatpush.xpose.msra.mxu0 0.0
    %1643 = vmatpush.xpose.msra.mxu0 0.0
    %1644 = vmatpush.xpose.msra.mxu0 0.0
    %1645 = vmatpush.xpose.msra.mxu0 0.0
    %1646 = vmatpush.xpose.msra.mxu0 0.0
    %1647 = vmatpush.xpose.msra.mxu0 0.0
    %1648 = vmatpush.xpose.msra.mxu0 0.0
    %1649 = vmatpush.xpose.msra.mxu0 0.0
    %1650 = vmatpush.xpose.msra.mxu0 0.0
    %1651 = vmatpush.xpose.msra.mxu0 0.0
    %1652 = vmatpush.xpose.msra.mxu0 0.0
    %1653 = vmatpush.xpose.msra.mxu0 0.0
    %1654 = vmatpush.xpose.msra.mxu0 0.0
    %1655 = vmatpush.xpose.msra.mxu0 0.0
    %1656 = vmatpush.xpose.msra.mxu0 %v1639
    %1657 = vmatmul.f32.gmra.mxu0 %v1637
    %v1658 = vpop.f32.mrf.mxu0
    %v1659 = vadd.f32 0.0, %v1658
    %1660 = vdwg.mxu0
    %v1661 = vmul.f32 %v1575, 0.25
    %v1662 = vmul.f32 %v1603, 0.25
    %v1663 = vmul.f32 %v1631, 0.25
    %v1664 = vmul.f32 %v1659, 0.25
    %v1665 = vadd.f32 %v1661, %v355
    %v1666 = vadd.f32 %v1662, %v356
    %v1667 = vadd.f32 %v1663, %v357
    %v1668 = vadd.f32 %v1664, %v358
    %v1669 = vsel %vm367, %v1665, -inf
    %1670 = vmax.xlane.f32.xlu0 %v1669
    %v1671 = vpop.xlane.xlu0 %1670
    %v1672 = vsel %vm367, %v1666, -inf
    %1673 = vmax.xlane.f32.xlu0 %v1672
    %v1674 = vpop.xlane.xlu0 %1673
    %v1675 = vsel %vm367, %v1667, -inf
    %1676 = vmax.xlane.f32.xlu0 %v1675
    %v1677 = vpop.xlane.xlu0 %1676
    %v1678 = vsel %vm367, %v1668, -inf
    %1679 = vmax.xlane.f32.xlu0 %v1678
    %v1680 = vpop.xlane.xlu0 %1679
    %v1681 = vsub.f32 %v1665, %v1671
    %v1682 = vsub.f32 %v1666, %v1674
    %v1683 = vsub.f32 %v1667, %v1677
    %v1684 = vsub.f32 %v1668, %v1680
    %v1685 = vmul.f32 %v1681, 1.442695
    %v1686 = vpow.pop %v1685
    %v1687 = vmul.f32 %v1682, 1.442695
    %v1688 = vpow.pop %v1687
    %v1689 = vmul.f32 %v1683, 1.442695
    %v1690 = vpow.pop %v1689
    %v1691 = vmul.f32 %v1684, 1.442695
    %v1692 = vpow.pop %v1691
    %v1693 = vsel %vm367, %v1686, 0.0
    %1694 = vadd.xlane.f32.xlu0 %v1693
    %v1695 = vpop.xlane.xlu0 %1694
    %v1696 = vsel %vm367, %v1688, 0.0
    %1697 = vadd.xlane.f32.xlu0 %v1696
    %v1698 = vpop.xlane.xlu0 %1697
    %v1699 = vsel %vm367, %v1690, 0.0
    %1700 = vadd.xlane.f32.xlu0 %v1699
    %v1701 = vpop.xlane.xlu0 %1700
    %v1702 = vsel %vm367, %v1692, 0.0
    %1703 = vadd.xlane.f32.xlu0 %v1702
    %v1704 = vpop.xlane.xlu0 %1703
    %v1705 = vrcp.pop %v1695
    %v1706 = vrcp.pop %v1698
    %v1707 = vrcp.pop %v1701
    %v1708 = vrcp.pop %v1704
    %v1709 = vmul.f32 %v1686, %v1705
    %v1710 = vmul.f32 %v1688, %v1706
    %v1711 = vmul.f32 %v1690, %v1707
    %v1712 = vmul.f32 %v1692, %v1708
    %1713 = vrot.lane.b32.xlu0 %v1269, 48
    %v1714 = vpop.permute.xlu0 %1713
    %v1717 = vsel %vm367, %v1709, 0
    %1719 = vmatpush.msra.mxu0 0.0
    %1720 = vmatpush.msra.mxu0 0.0
    %1721 = vmatpush.msra.mxu0 0.0
    %1722 = vmatpush.msra.mxu0 0.0
    %1723 = vmatpush.msra.mxu0 0.0
    %1724 = vmatpush.msra.mxu0 0.0
    %1725 = vmatpush.msra.mxu0 0.0
    %1726 = vmatpush.msra.mxu0 0.0
    %1727 = vmatpush.msra.mxu0 0.0
    %1728 = vmatpush.msra.mxu0 0.0
    %1729 = vmatpush.msra.mxu0 0.0
    %1730 = vmatpush.msra.mxu0 0.0
    %1731 = vmatpush.msra.mxu0 0.0
    %1732 = vmatpush.msra.mxu0 0.0
    %1733 = vmatpush.msra.mxu0 0.0
    %1734 = vmatpush.msra.mxu0 %v1714
    %1735 = vmatmul.f32.gmra.mxu0 %v1717
    %v1736 = vpop.f32.mrf.mxu0
    %v1737 = vadd.f32 0.0, %v1736
    %1738 = vdwg.mxu0
    %1739 = vrot.lane.b32.xlu0 %v1272, 48
    %v1740 = vpop.permute.xlu0 %1739
    %v1743 = vsel %vm367, %v1710, 0
    %1745 = vmatpush.msra.mxu0 0.0
    %1746 = vmatpush.msra.mxu0 0.0
    %1747 = vmatpush.msra.mxu0 0.0
    %1748 = vmatpush.msra.mxu0 0.0
    %1749 = vmatpush.msra.mxu0 0.0
    %1750 = vmatpush.msra.mxu0 0.0
    %1751 = vmatpush.msra.mxu0 0.0
    %1752 = vmatpush.msra.mxu0 0.0
    %1753 = vmatpush.msra.mxu0 0.0
    %1754 = vmatpush.msra.mxu0 0.0
    %1755 = vmatpush.msra.mxu0 0.0
    %1756 = vmatpush.msra.mxu0 0.0
    %1757 = vmatpush.msra.mxu0 0.0
    %1758 = vmatpush.msra.mxu0 0.0
    %1759 = vmatpush.msra.mxu0 0.0
    %1760 = vmatpush.msra.mxu0 %v1740
    %1761 = vmatmul.f32.gmra.mxu0 %v1743
    %v1762 = vpop.f32.mrf.mxu0
    %v1763 = vadd.f32 0.0, %v1762
    %1764 = vdwg.mxu0
    %1765 = vrot.lane.b32.xlu0 %v1275, 48
    %v1766 = vpop.permute.xlu0 %1765
    %v1769 = vsel %vm367, %v1711, 0
    %1771 = vmatpush.msra.mxu0 0.0
    %1772 = vmatpush.msra.mxu0 0.0
    %1773 = vmatpush.msra.mxu0 0.0
    %1774 = vmatpush.msra.mxu0 0.0
    %1775 = vmatpush.msra.mxu0 0.0
    %1776 = vmatpush.msra.mxu0 0.0
    %1777 = vmatpush.msra.mxu0 0.0
    %1778 = vmatpush.msra.mxu0 0.0
    %1779 = vmatpush.msra.mxu0 0.0
    %1780 = vmatpush.msra.mxu0 0.0
    %1781 = vmatpush.msra.mxu0 0.0
    %1782 = vmatpush.msra.mxu0 0.0
    %1783 = vmatpush.msra.mxu0 0.0
    %1784 = vmatpush.msra.mxu0 0.0
    %1785 = vmatpush.msra.mxu0 0.0
    %1786 = vmatpush.msra.mxu0 %v1766
    %1787 = vmatmul.f32.gmra.mxu0 %v1769
    %v1788 = vpop.f32.mrf.mxu0
    %v1789 = vadd.f32 0.0, %v1788
    %1790 = vdwg.mxu0
    %1791 = vrot.lane.b32.xlu0 %v1278, 48
    %v1792 = vpop.permute.xlu0 %1791
    %v1795 = vsel %vm367, %v1712, 0
    %1797 = vmatpush.msra.mxu0 0.0
    %1798 = vmatpush.msra.mxu0 0.0
    %1799 = vmatpush.msra.mxu0 0.0
    %1800 = vmatpush.msra.mxu0 0.0
    %1801 = vmatpush.msra.mxu0 0.0
    %1802 = vmatpush.msra.mxu0 0.0
    %1803 = vmatpush.msra.mxu0 0.0
    %1804 = vmatpush.msra.mxu0 0.0
    %1805 = vmatpush.msra.mxu0 0.0
    %1806 = vmatpush.msra.mxu0 0.0
    %1807 = vmatpush.msra.mxu0 0.0
    %1808 = vmatpush.msra.mxu0 0.0
    %1809 = vmatpush.msra.mxu0 0.0
    %1810 = vmatpush.msra.mxu0 0.0
    %1811 = vmatpush.msra.mxu0 0.0
    %1812 = vmatpush.msra.mxu0 %v1792
    %1813 = vmatmul.f32.gmra.mxu0 %v1795
    %v1814 = vpop.f32.mrf.mxu0
    %v1815 = vadd.f32 0.0, %v1814
    %1816 = vdwg.mxu0
    %v1818 = vsel %vm245, %v1737, 0
    %v1821 = vsel %vm245, %v1763, 0
    %v1824 = vsel %vm245, %v1789, 0
    %v1827 = vsel %vm245, %v1815, 0
    %1829 = vmatpush.msra.mxu0 0.0
    %1830 = vmatpush.msra.mxu0 0.0
    %1831 = vmatpush.msra.mxu0 0.0
    %1832 = vmatpush.msra.mxu0 0.0
    %1833 = vmatpush.msra.mxu0 0.0
    %1834 = vmatpush.msra.mxu0 0.0
    %1835 = vmatpush.msra.mxu0 0.0
    %1836 = vmatpush.msra.mxu0 0.0
    %1837 = vmatpush.msra.mxu0 0.0
    %1838 = vmatpush.msra.mxu0 0.0
    %1839 = vmatpush.msra.mxu0 0.0
    %1840 = vmatpush.msra.mxu0 0.0
    %1841 = vmatpush.msra.mxu0 0.0
    %1842 = vmatpush.msra.mxu0 0.0
    %1843 = vmatpush.msra.mxu0 %v1284
    %1844 = vmatpush.msra.mxu0 %v1283
    %1845 = vmatmul.f32.gmra.mxu0 %v1818
    %v1846 = vpop.f32.mrf.mxu0
    %v1847 = vadd.f32 0.0, %v1846
    %1848 = vmatmul.f32.gmra.mxu0 %v1821
    %v1849 = vpop.f32.mrf.mxu0
    %v1850 = vadd.f32 0.0, %v1849
    %1851 = vmatmul.f32.gmra.mxu0 %v1824
    %v1852 = vpop.f32.mrf.mxu0
    %v1853 = vadd.f32 0.0, %v1852
    %1854 = vmatmul.f32.gmra.mxu0 %v1827
    %v1855 = vpop.f32.mrf.mxu0
    %v1856 = vadd.f32 0.0, %v1855
    %1857 = vdwg.mxu0
    %v1859 = vsel %vm245, %v1469, 0
    %v1862 = vsel %vm245, %v1495, 0
    %v1865 = vsel %vm245, %v1521, 0
    %v1868 = vsel %vm245, %v1547, 0
    %1870 = vmatpush.msra.mxu0 0.0
    %1871 = vmatpush.msra.mxu0 0.0
    %1872 = vmatpush.msra.mxu0 0.0
    %1873 = vmatpush.msra.mxu0 0.0
    %1874 = vmatpush.msra.mxu0 0.0
    %1875 = vmatpush.msra.mxu0 0.0
    %1876 = vmatpush.msra.mxu0 0.0
    %1877 = vmatpush.msra.mxu0 0.0
    %1878 = vmatpush.msra.mxu0 0.0
    %1879 = vmatpush.msra.mxu0 0.0
    %1880 = vmatpush.msra.mxu0 0.0
    %1881 = vmatpush.msra.mxu0 0.0
    %1882 = vmatpush.msra.mxu0 0.0
    %1883 = vmatpush.msra.mxu0 0.0
    %1884 = vmatpush.msra.mxu0 %v1282
    %1885 = vmatpush.msra.mxu0 %v1281
    %1886 = vmatmul.f32.gmra.mxu0 %v1859
    %v1887 = vpop.f32.mrf.mxu0
    %v1888 = vadd.f32 %v1847, %v1887
    %1889 = vmatmul.f32.gmra.mxu0 %v1862
    %v1890 = vpop.f32.mrf.mxu0
    %v1891 = vadd.f32 %v1850, %v1890
    %1892 = vmatmul.f32.gmra.mxu0 %v1865
    %v1893 = vpop.f32.mrf.mxu0
    %v1894 = vadd.f32 %v1853, %v1893
    %1895 = vmatmul.f32.gmra.mxu0 %v1868
    %v1896 = vpop.f32.mrf.mxu0
    %v1897 = vadd.f32 %v1856, %v1896
    %1898 = vdwg.mxu0
    %s1899 = scalar_lea.vmem %s7, 1
    %v1900 = vld [vmem:[%s1899] sm:$0x1]
    %v1902 = vperm.slane %v1900, 0
    %v1904 = vadd.f32 %v1888, %v1902
    %v1905 = vadd.f32 %v1891, %v1902
    %v1906 = vadd.f32 %v1894, %v1902
    %v1907 = vadd.f32 %v1897, %v1902
    %v1908 = vadd.f32 %v1225, %v1904
    %v1909 = vadd.f32 %v1226, %v1905
    %v1910 = vadd.f32 %v1227, %v1906
    %v1911 = vadd.f32 %v1228, %v1907
    %s1912 = scalar_lea.vmem %s8, 1
    %v1913 = vld [vmem:[%s1912] sm:$0x1]
    %s1914 = scalar_lea.vmem %s9, 1
    %v1915 = vld [vmem:[%s1914] sm:$0x1]
    %v1916 = vsel %vm74, %v1908, 0.0
    %1917 = vadd.xlane.f32.xlu0 %v1916
    %v1918 = vpop.xlane.xlu0 %1917
    %v1919 = vsel %vm74, %v1909, 0.0
    %1920 = vadd.xlane.f32.xlu0 %v1919
    %v1921 = vpop.xlane.xlu0 %1920
    %v1922 = vsel %vm74, %v1910, 0.0
    %1923 = vadd.xlane.f32.xlu0 %v1922
    %v1924 = vpop.xlane.xlu0 %1923
    %v1925 = vsel %vm74, %v1911, 0.0
    %1926 = vadd.xlane.f32.xlu0 %v1925
    %v1927 = vpop.xlane.xlu0 %1926
    %v1928 = vmul.f32 %v1918, %v93
    %v1929 = vmul.f32 %v1921, %v93
    %v1930 = vmul.f32 %v1924, %v93
    %v1931 = vmul.f32 %v1927, %v93
    %v1932 = vsub.f32 %v1908, %v1928
    %v1933 = vsub.f32 %v1909, %v1929
    %v1934 = vsub.f32 %v1910, %v1930
    %v1935 = vsub.f32 %v1911, %v1931
    %v1936 = vmul.f32 %v1932, %v1932
    %v1937 = vmul.f32 %v1933, %v1933
    %v1938 = vmul.f32 %v1934, %v1934
    %v1939 = vmul.f32 %v1935, %v1935
    %v1940 = vsel %vm74, %v1936, 0.0
    %1941 = vadd.xlane.f32.xlu0 %v1940
    %v1942 = vpop.xlane.xlu0 %1941
    %v1943 = vsel %vm74, %v1937, 0.0
    %1944 = vadd.xlane.f32.xlu0 %v1943
    %v1945 = vpop.xlane.xlu0 %1944
    %v1946 = vsel %vm74, %v1938, 0.0
    %1947 = vadd.xlane.f32.xlu0 %v1946
    %v1948 = vpop.xlane.xlu0 %1947
    %v1949 = vsel %vm74, %v1939, 0.0
    %1950 = vadd.xlane.f32.xlu0 %v1949
    %v1951 = vpop.xlane.xlu0 %1950
    %v1952 = vmul.f32 %v1942, %v93
    %v1953 = vmul.f32 %v1945, %v93
    %v1954 = vmul.f32 %v1948, %v93
    %v1955 = vmul.f32 %v1951, %v93
    %v1956 = vadd.f32 %v1952, 1e-12
    %v1957 = vadd.f32 %v1953, 1e-12
    %v1958 = vadd.f32 %v1954, 1e-12
    %v1959 = vadd.f32 %v1955, 1e-12
    %v1960 = vrsqrt.pop %v1956
    %v1961 = vmul.f32 %v1960, %v1956
    %v1962 = vmul.f32 %v1961, %v1960
    %v1963 = vmul.f32 0.5, %v1962
    %v1964 = vsub.f32 1.5, %v1963
    %v1965 = vmul.f32 %v1960, %v1964
    %vm1966 = vweird.f32 %v1956
    %vm1967 = vweird.f32 %v1960
    %vm1968 = vmor %vm1966, %vm1967
    %v1969 = vsel %vm1968, %v1960, %v1965
    %v1970 = vrsqrt.pop %v1957
    %v1971 = vmul.f32 %v1970, %v1957
    %v1972 = vmul.f32 %v1971, %v1970
    %v1973 = vmul.f32 0.5, %v1972
    %v1974 = vsub.f32 1.5, %v1973
    %v1975 = vmul.f32 %v1970, %v1974
    %vm1976 = vweird.f32 %v1957
    %vm1977 = vweird.f32 %v1970
    %vm1978 = vmor %vm1976, %vm1977
    %v1979 = vsel %vm1978, %v1970, %v1975
    %v1980 = vrsqrt.pop %v1958
    %v1981 = vmul.f32 %v1980, %v1958
    %v1982 = vmul.f32 %v1981, %v1980
    %v1983 = vmul.f32 0.5, %v1982
    %v1984 = vsub.f32 1.5, %v1983
    %v1985 = vmul.f32 %v1980, %v1984
    %vm1986 = vweird.f32 %v1958
    %vm1987 = vweird.f32 %v1980
    %vm1988 = vmor %vm1986, %vm1987
    %v1989 = vsel %vm1988, %v1980, %v1985
    %v1990 = vrsqrt.pop %v1959
    %v1991 = vmul.f32 %v1990, %v1959
    %v1992 = vmul.f32 %v1991, %v1990
    %v1993 = vmul.f32 0.5, %v1992
    %v1994 = vsub.f32 1.5, %v1993
    %v1995 = vmul.f32 %v1990, %v1994
    %vm1996 = vweird.f32 %v1959
    %vm1997 = vweird.f32 %v1990
    %vm1998 = vmor %vm1996, %vm1997
    %v1999 = vsel %vm1998, %v1990, %v1995
    %v2000 = vmul.f32 %v1932, %v1969
    %v2001 = vmul.f32 %v1933, %v1979
    %v2002 = vmul.f32 %v1934, %v1989
    %v2003 = vmul.f32 %v1935, %v1999
    %v2005 = vperm.slane %v1913, 0
    %v2007 = vmul.f32 %v2000, %v2005
    %v2008 = vmul.f32 %v2001, %v2005
    %v2009 = vmul.f32 %v2002, %v2005
    %v2010 = vmul.f32 %v2003, %v2005
    %v2012 = vperm.slane %v1915, 0
    %v2014 = vadd.f32 %v2007, %v2012
    %v2015 = vadd.f32 %v2008, %v2012
    %v2016 = vadd.f32 %v2009, %v2012
    %v2017 = vadd.f32 %v2010, %v2012
    %s2018 = scalar_lea.vmem %s10, 32
    %v2019 = vld [vmem:[%s2018] sm:$0xff]
    %v2020 = vld [vmem:[%s2018 + $0x8] sm:$0xff]
    %v2021 = vld [vmem:[%s2018 + $0x10] sm:$0xff]
    %v2022 = vld [vmem:[%s2018 + $0x18] sm:$0xff]
    %s2023 = scalar_lea.vmem %s11, 1
    %v2024 = vld [vmem:[%s2023] sm:$0x1]
    %v2026 = vperm.slane %v2024, 0
    %v2029 = vsel %vm74, %v2014, 0
    %v2032 = vsel %vm74, %v2015, 0
    %v2035 = vsel %vm74, %v2016, 0
    %v2038 = vsel %vm74, %v2017, 0
    %2040 = vmatpush.msra.mxu0 0.0
    %2041 = vmatpush.msra.mxu0 0.0
    %2042 = vmatpush.msra.mxu0 0.0
    %2043 = vmatpush.msra.mxu0 0.0
    %2044 = vmatpush.msra.mxu0 0.0
    %2045 = vmatpush.msra.mxu0 0.0
    %2046 = vmatpush.msra.mxu0 0.0
    %2047 = vmatpush.msra.mxu0 0.0
    %2048 = vmatpush.msra.mxu0 0.0
    %2049 = vmatpush.msra.mxu0 0.0
    %2050 = vmatpush.msra.mxu0 0.0
    %2051 = vmatpush.msra.mxu0 0.0
    %2052 = vmatpush.msra.mxu0 %v2022
    %2053 = vmatpush.msra.mxu0 %v2021
    %2054 = vmatpush.msra.mxu0 %v2020
    %2055 = vmatpush.msra.mxu0 %v2019
    %2056 = vmatmul.f32.gmra.mxu0 %v2029
    %v2057 = vpop.f32.mrf.mxu0
    %v2058 = vadd.f32 %v2026, %v2057
    %2059 = vmatmul.f32.gmra.mxu0 %v2032
    %v2060 = vpop.f32.mrf.mxu0
    %v2061 = vadd.f32 %v2026, %v2060
    %2062 = vmatmul.f32.gmra.mxu0 %v2035
    %v2063 = vpop.f32.mrf.mxu0
    %v2064 = vadd.f32 %v2026, %v2063
    %2065 = vmatmul.f32.gmra.mxu0 %v2038
    %v2066 = vpop.f32.mrf.mxu0
    %v2067 = vadd.f32 %v2026, %v2066
    %2068 = vdwg.mxu0
    %v2069 = vmul.f32 %v2058, 0.5
    %v2070 = vmul.f32 %v2061, 0.5
    %v2071 = vmul.f32 %v2064, 0.5
    %v2072 = vmul.f32 %v2067, 0.5
    %v2073 = vmul.f32 %v2058, 0.044715
    %v2074 = vmul.f32 %v2061, 0.044715
    %v2075 = vmul.f32 %v2064, 0.044715
    %v2076 = vmul.f32 %v2067, 0.044715
    %v2077 = vmul.f32 %v2073, %v2058
    %v2078 = vmul.f32 %v2074, %v2061
    %v2079 = vmul.f32 %v2075, %v2064
    %v2080 = vmul.f32 %v2076, %v2067
    %v2081 = vmul.f32 %v2077, %v2058
    %v2082 = vmul.f32 %v2078, %v2061
    %v2083 = vmul.f32 %v2079, %v2064
    %v2084 = vmul.f32 %v2080, %v2067
    %v2085 = vadd.f32 %v2058, %v2081
    %v2086 = vadd.f32 %v2061, %v2082
    %v2087 = vadd.f32 %v2064, %v2083
    %v2088 = vadd.f32 %v2067, %v2084
    %v2089 = vmul.f32 %v2085, 0.7978846
    %v2090 = vmul.f32 %v2086, 0.7978846
    %v2091 = vmul.f32 %v2087, 0.7978846
    %v2092 = vmul.f32 %v2088, 0.7978846
    %v2093 = vtanh.pop %v2089
    %v2094 = vtanh.pop %v2090
    %v2095 = vtanh.pop %v2091
    %v2096 = vtanh.pop %v2092
    %v2097 = vadd.f32 %v2093, 1.0
    %v2098 = vadd.f32 %v2094, 1.0
    %v2099 = vadd.f32 %v2095, 1.0
    %v2100 = vadd.f32 %v2096, 1.0
    %v2101 = vmul.f32 %v2069, %v2097
    %v2102 = vmul.f32 %v2070, %v2098
    %v2103 = vmul.f32 %v2071, %v2099
    %v2104 = vmul.f32 %v2072, %v2100
    %s2105 = scalar_lea.vmem %s12, 64
    %v2106 = vld [vmem:[%s2105] sm:$0xff]
    %v2107 = vld [vmem:[%s2105 + $0x8] sm:$0xff]
    %v2108 = vld [vmem:[%s2105 + $0x10] sm:$0xff]
    %v2109 = vld [vmem:[%s2105 + $0x18] sm:$0xff]
    %v2110 = vld [vmem:[%s2105 + $0x20] sm:$0xff]
    %v2111 = vld [vmem:[%s2105 + $0x28] sm:$0xff]
    %v2112 = vld [vmem:[%s2105 + $0x30] sm:$0xff]
    %v2113 = vld [vmem:[%s2105 + $0x38] sm:$0xff]
    %s2114 = scalar_lea.vmem %s13, 1
    %v2115 = vld [vmem:[%s2114] sm:$0x1]
    %v2117 = vperm.slane %v2115, 0
    %v2120 = vsel %vm1079, %v2101, 0
    %v2123 = vsel %vm1079, %v2102, 0
    %v2126 = vsel %vm1079, %v2103, 0
    %v2129 = vsel %vm1079, %v2104, 0
    %2131 = vmatpush.msra.mxu0 0.0
    %2132 = vmatpush.msra.mxu0 0.0
    %2133 = vmatpush.msra.mxu0 0.0
    %2134 = vmatpush.msra.mxu0 0.0
    %2135 = vmatpush.msra.mxu0 0.0
    %2136 = vmatpush.msra.mxu0 0.0
    %2137 = vmatpush.msra.mxu0 0.0
    %2138 = vmatpush.msra.mxu0 0.0
    %2139 = vmatpush.msra.mxu0 %v2113
    %2140 = vmatpush.msra.mxu0 %v2112
    %2141 = vmatpush.msra.mxu0 %v2111
    %2142 = vmatpush.msra.mxu0 %v2110
    %2143 = vmatpush.msra.mxu0 %v2109
    %2144 = vmatpush.msra.mxu0 %v2108
    %2145 = vmatpush.msra.mxu0 %v2107
    %2146 = vmatpush.msra.mxu0 %v2106
    %2147 = vmatmul.f32.gmra.mxu0 %v2120
    %v2148 = vpop.f32.mrf.mxu0
    %v2149 = vadd.f32 %v2117, %v2148
    %2150 = vmatmul.f32.gmra.mxu0 %v2123
    %v2151 = vpop.f32.mrf.mxu0
    %v2152 = vadd.f32 %v2117, %v2151
    %2153 = vmatmul.f32.gmra.mxu0 %v2126
    %v2154 = vpop.f32.mrf.mxu0
    %v2155 = vadd.f32 %v2117, %v2154
    %2156 = vmatmul.f32.gmra.mxu0 %v2129
    %v2157 = vpop.f32.mrf.mxu0
    %v2158 = vadd.f32 %v2117, %v2157
    %2159 = vdwg.mxu0
    %v2160 = vadd.f32 %v2014, %v2149
    %v2161 = vadd.f32 %v2015, %v2152
    %v2162 = vadd.f32 %v2016, %v2155
    %v2163 = vadd.f32 %v2017, %v2158
    %s2164 = scalar_lea.vmem %s14, 1
    %v2165 = vld [vmem:[%s2164] sm:$0x1]
    %s2166 = scalar_lea.vmem %s15, 1
    %v2167 = vld [vmem:[%s2166] sm:$0x1]
    %v2168 = vsel %vm74, %v2160, 0.0
    %2169 = vadd.xlane.f32.xlu0 %v2168
    %v2170 = vpop.xlane.xlu0 %2169
    %v2171 = vsel %vm74, %v2161, 0.0
    %2172 = vadd.xlane.f32.xlu0 %v2171
    %v2173 = vpop.xlane.xlu0 %2172
    %v2174 = vsel %vm74, %v2162, 0.0
    %2175 = vadd.xlane.f32.xlu0 %v2174
    %v2176 = vpop.xlane.xlu0 %2175
    %v2177 = vsel %vm74, %v2163, 0.0
    %2178 = vadd.xlane.f32.xlu0 %v2177
    %v2179 = vpop.xlane.xlu0 %2178
    %v2180 = vmul.f32 %v2170, %v93
    %v2181 = vmul.f32 %v2173, %v93
    %v2182 = vmul.f32 %v2176, %v93
    %v2183 = vmul.f32 %v2179, %v93
    %v2184 = vsub.f32 %v2160, %v2180
    %v2185 = vsub.f32 %v2161, %v2181
    %v2186 = vsub.f32 %v2162, %v2182
    %v2187 = vsub.f32 %v2163, %v2183
    %v2188 = vmul.f32 %v2184, %v2184
    %v2189 = vmul.f32 %v2185, %v2185
    %v2190 = vmul.f32 %v2186, %v2186
    %v2191 = vmul.f32 %v2187, %v2187
    %v2192 = vsel %vm74, %v2188, 0.0
    %2193 = vadd.xlane.f32.xlu0 %v2192
    %v2194 = vpop.xlane.xlu0 %2193
    %v2195 = vsel %vm74, %v2189, 0.0
    %2196 = vadd.xlane.f32.xlu0 %v2195
    %v2197 = vpop.xlane.xlu0 %2196
    %v2198 = vsel %vm74, %v2190, 0.0
    %2199 = vadd.xlane.f32.xlu0 %v2198
    %v2200 = vpop.xlane.xlu0 %2199
    %v2201 = vsel %vm74, %v2191, 0.0
    %2202 = vadd.xlane.f32.xlu0 %v2201
    %v2203 = vpop.xlane.xlu0 %2202
    %v2204 = vmul.f32 %v2194, %v93
    %v2205 = vmul.f32 %v2197, %v93
    %v2206 = vmul.f32 %v2200, %v93
    %v2207 = vmul.f32 %v2203, %v93
    %v2208 = vadd.f32 %v2204, 1e-12
    %v2209 = vadd.f32 %v2205, 1e-12
    %v2210 = vadd.f32 %v2206, 1e-12
    %v2211 = vadd.f32 %v2207, 1e-12
    %v2212 = vrsqrt.pop %v2208
    %v2213 = vmul.f32 %v2212, %v2208
    %v2214 = vmul.f32 %v2213, %v2212
    %v2215 = vmul.f32 0.5, %v2214
    %v2216 = vsub.f32 1.5, %v2215
    %v2217 = vmul.f32 %v2212, %v2216
    %vm2218 = vweird.f32 %v2208
    %vm2219 = vweird.f32 %v2212
    %vm2220 = vmor %vm2218, %vm2219
    %v2221 = vsel %vm2220, %v2212, %v2217
    %v2222 = vrsqrt.pop %v2209
    %v2223 = vmul.f32 %v2222, %v2209
    %v2224 = vmul.f32 %v2223, %v2222
    %v2225 = vmul.f32 0.5, %v2224
    %v2226 = vsub.f32 1.5, %v2225
    %v2227 = vmul.f32 %v2222, %v2226
    %vm2228 = vweird.f32 %v2209
    %vm2229 = vweird.f32 %v2222
    %vm2230 = vmor %vm2228, %vm2229
    %v2231 = vsel %vm2230, %v2222, %v2227
    %v2232 = vrsqrt.pop %v2210
    %v2233 = vmul.f32 %v2232, %v2210
    %v2234 = vmul.f32 %v2233, %v2232
    %v2235 = vmul.f32 0.5, %v2234
    %v2236 = vsub.f32 1.5, %v2235
    %v2237 = vmul.f32 %v2232, %v2236
    %vm2238 = vweird.f32 %v2210
    %vm2239 = vweird.f32 %v2232
    %vm2240 = vmor %vm2238, %vm2239
    %v2241 = vsel %vm2240, %v2232, %v2237
    %v2242 = vrsqrt.pop %v2211
    %v2243 = vmul.f32 %v2242, %v2211
    %v2244 = vmul.f32 %v2243, %v2242
    %v2245 = vmul.f32 0.5, %v2244
    %v2246 = vsub.f32 1.5, %v2245
    %v2247 = vmul.f32 %v2242, %v2246
    %vm2248 = vweird.f32 %v2211
    %vm2249 = vweird.f32 %v2242
    %vm2250 = vmor %vm2248, %vm2249
    %v2251 = vsel %vm2250, %v2242, %v2247
    %v2252 = vmul.f32 %v2184, %v2221
    %v2253 = vmul.f32 %v2185, %v2231
    %v2254 = vmul.f32 %v2186, %v2241
    %v2255 = vmul.f32 %v2187, %v2251
    %v2257 = vperm.slane %v2165, 0
    %v2259 = vmul.f32 %v2252, %v2257
    %v2260 = vmul.f32 %v2253, %v2257
    %v2261 = vmul.f32 %v2254, %v2257
    %v2262 = vmul.f32 %v2255, %v2257
    %v2264 = vperm.slane %v2167, 0
    %v2266 = vadd.f32 %v2259, %v2264
    %v2267 = vadd.f32 %v2260, %v2264
    %v2268 = vadd.f32 %v2261, %v2264
    %v2269 = vadd.f32 %v2262, %v2264
    %v2270 = vlaneseq
    %v2271 = vand.u32 %v2270, 127
    %v2272 = vlaneseq
    %v2273 = vshrl.u32 %v2272, 7
    %v2274 = vmul.u32 %v2273, 8
    %vm2275 = vcmp.eq.s32.totalorder %v2271, %v2274
    %v2276 = vsel %vm2275, 1, 0
    %v2277 = vcvt.s32.f32 %v2276
    %v2279 = vsel %vm74, %v2277, 0
    %2281 = vmatpush.msra.mxu0 0.0
    %2282 = vmatpush.msra.mxu0 0.0
    %2283 = vmatpush.msra.mxu0 0.0
    %2284 = vmatpush.msra.mxu0 0.0
    %2285 = vmatpush.msra.mxu0 0.0
    %2286 = vmatpush.msra.mxu0 0.0
    %2287 = vmatpush.msra.mxu0 0.0
    %2288 = vmatpush.msra.mxu0 0.0
    %2289 = vmatpush.msra.mxu0 0.0
    %2290 = vmatpush.msra.mxu0 0.0
    %2291 = vmatpush.msra.mxu0 0.0
    %2292 = vmatpush.msra.mxu0 0.0
    %2293 = vmatpush.msra.mxu0 %v2269
    %2294 = vmatpush.msra.mxu0 %v2268
    %2295 = vmatpush.msra.mxu0 %v2267
    %2296 = vmatpush.msra.mxu0 %v2266
    %2297 = vmatmul.f32.gmra.mxu0 %v2279
    %v2298 = vpop.f32.mrf.mxu0
    %v2299 = vadd.f32 0.0, %v2298
    %2300 = vdwg.mxu0
    %v2301 = vld [vmem:[%s16] sm:$0xff]
    %v2302 = vld [vmem:[%s16 + $0x8] sm:$0xff]
    %v2303 = vld [vmem:[%s16 + $0x10] sm:$0xff]
    %v2304 = vld [vmem:[%s16 + $0x18] sm:$0xff]
    %v2305 = vld [vmem:[%s17] sm:$0x1]
    %v2307 = vperm.slane %v2305, 0
    %v2310 = vsel %vm74, %v2299, 0
    %2312 = vmatpush.msra.mxu0 0.0
    %2313 = vmatpush.msra.mxu0 0.0
    %2314 = vmatpush.msra.mxu0 0.0
    %2315 = vmatpush.msra.mxu0 0.0
    %2316 = vmatpush.msra.mxu0 0.0
    %2317 = vmatpush.msra.mxu0 0.0
    %2318 = vmatpush.msra.mxu0 0.0
    %2319 = vmatpush.msra.mxu0 0.0
    %2320 = vmatpush.msra.mxu0 0.0
    %2321 = vmatpush.msra.mxu0 0.0
    %2322 = vmatpush.msra.mxu0 0.0
    %2323 = vmatpush.msra.mxu0 0.0
    %2324 = vmatpush.msra.mxu0 %v2304
    %2325 = vmatpush.msra.mxu0 %v2303
    %2326 = vmatpush.msra.mxu0 %v2302
    %2327 = vmatpush.msra.mxu0 %v2301
    %2328 = vmatmul.f32.gmra.mxu0 %v2310
    %v2329 = vpop.f32.mrf.mxu0
    %v2330 = vadd.f32 %v2307, %v2329
    %2331 = vdwg.mxu0
    %v2332 = vtanh.pop %v2330
    %v2333 = vld [vmem:[%s18] sm:$0x1]
    %v2335 = vperm.slane %v2333, 0
    %v2337 = vmul.f32 %v2332, %v2335
    %vm2338 = vcmask 257024
    %v2339 = vsel %vm2338, %v2337, 0.0
    %2340 = vadd.xlane.f32.xlu0 %v2339
    %v2341 = vpop.xlane.xlu0 %2340
    %v2342 = vld [vmem:[#allocation2] sm:$0x1]
    %v2344 = vperm.slane %v2342, 0
    %v2346 = vadd.f32 %v2341, %v2344
    %v2348 = vrot.slane %v2346, 2
    %v2350 = vsub.f32 %v2346, %v2348
    %v2351 = vsub.f32 0.0, %v2350
    %v2352 = vmul.f32 %v2351, 1.442695
    %v2353 = vpow.pop %v2352
    %v2354 = vadd.f32 %v2353, 1.0
    %v2355 = vrcp.pop %v2354
    %v2356 = vmul.f32 %v2354, %v2355
    %v2357 = vsub.f32 1.0, %v2356
    %v2358 = vmul.f32 %v2355, %v2357
    %v2359 = vadd.f32 %v2355, %v2358
    %vm2360 = vweird.f32 %v2354
    %vm2361 = vweird.f32 %v2355
    %vm2362 = vmor %vm2360, %vm2361
    %v2363 = vsel %vm2362, %v2355, %v2359
    %v2364 = vand.u32 2147483647, %v2354
    %vm2365 = vcmp.eq.f32.partialorder %v2364, 8.507059e+37
    %v2366 = vand.u32 %v2354, 2147483648
    %v2367 = vor.u32 1.1754944e-38, %v2366
    %v2368 = vsel %vm2365, %v2367, %v2363
    %v2369 = vmul.f32 1.0, %v2368
    %vm2370 = vcmask 1024
    %v2371 = vsel %vm2370, %v2369, 0.0
    %2372 = vadd.xlane.f32.xlu0 %v2371
    %v2373 = vpop.xlane.xlu0 %2372
    %v2374 = vrot.slane %v2373, 4
    %v2375 = vadd.f32 %v2373, %v2374
    %v2376 = vrot.slane %v2375, 2
    %v2377 = vadd.f32 %v2375, %v2376
    %v2378 = vrot.slane %v2377, 1
    %v2379 = vadd.f32 %v2377, %v2378
    %s2380 = vtos %v2379
    %v2381 = vstv %s2380
    %v2382 = vrcp.pop 2.0
    %v2383 = vmul.f32 2.0, %v2382
    %v2384 = vsub.f32 1.0, %v2383
    %v2385 = vmul.f32 %v2382, %v2384
    %v2386 = vadd.f32 %v2382, %v2385
    %vm2387 = vweird.f32 %v2382
    %v2388 = vsel %vm2387, %v2382, %v2386
    %v2389 = vmul.f32 %v2381, %v2388
    %vm2390 = vcmask 0
    %2391 = vst.msk [vmem:[#allocation3] sm:$0x1] %vm2390, %v2389
    // Predicated region
    $region82: #{quality_estimator_for_train.1} parent=1 // pred_check
      _
    $region83: #{quality_estimator_for_train.1} parent=1 // pred_check_branch
      %2393 = sbr.rel (0) target = $region85
    $region84: #{quality_estimator_for_train.1} parent=1 // pred_region
      %2395 = vsyncadd [#allocation4], 0
      %s2397 = sshll.u32 [#allocation3], 4
      %s2398 = int_to_ptr.vmem [resolvable:$true] %s2397
      %s2399 = sshll.u32 %s20, 4
      %s2400 = int_to_ptr.hbm [resolvable:$true] %s2399
      %2402 = dma.vmem_to_hbm [thread:$0]  %s2398, 16, %s2400, [#allocation4]
    $region85: #{quality_estimator_for_train.1} parent=1 // pred_fallthru
      _
    // Predicated region
    $region86: #{quality_estimator_for_train.1} parent=1 // pred_check
      _
    $region87: #{quality_estimator_for_train.1} parent=1 // pred_check_branch
      %2404 = sbr.rel (0) target = $region89
    $region88: #{quality_estimator_for_train.1} parent=1 // pred_region
      %2406 = dma.done [#allocation4], 16
    $region89: #{quality_estimator_for_train.1} parent=1 // pred_fallthru
      _
    %2407 = vsyncpa [#allocation4], 1

</llo_original>
